<compile_context>
chip_gen: v7x
topology: tpu7x:2x2x1
jax: 0.10.0
libtpu: 0.0.40
codegen_flags: <defaults>
</compile_context>

<pallas_src>
import functools

import jax
import jax.numpy as jnp
import numpy as np
from jax.experimental import pallas as pl
from jax.experimental.pallas import tpu as pltpu


_TAPS = tuple((dy, dx) for dy in (-1, 0, 1) for dx in (-1, 0, 1))


def resblock_kernel(x_ref, w1_ref, b1_ref, w2_ref, b2_ref, mask_ref, o_ref,
                    hpad_ref, *, width, pad):
    """One image: residual block with folded BatchNorm, (C, P) layout."""
    x = x_ref[0]                                    # (C, P) float32
    C, P = x.shape
    hidden = w1_ref.shape[1]

    # ReLU, then place in a zero-padded scratch so every 3x3 tap is a static
    # lane slice.  The pad of W+1 zeros on each side absorbs out-of-range rows;
    # the per-tap mask kills out-of-range columns.
    hpad_ref[...] = jnp.zeros_like(hpad_ref)
    hpad_ref[:, pad:pad + P] = jnp.maximum(x, 0.0)

    # ---- conv 3x3 (bias-free) with BN1 scale folded into the weights -------
    acc1 = jnp.zeros((hidden, P), jnp.float32)
    for t, (dy, dx) in enumerate(_TAPS):
        off = pad + dy * width + dx
        hs = hpad_ref[:, off:off + P] * mask_ref[t:t + 1, :]   # (C, P)
        wt = w1_ref[t]                                         # (hidden, C)
        for c in range(C):       # tiny contraction -> VPU outer products
            acc1 = acc1 + wt[:, c:c + 1] * hs[c:c + 1, :]
    y1 = jnp.maximum(acc1 + b1_ref[...], 0.0)                  # ReLU(BN1(conv1))

    # ---- conv 1x1 (bias-free) with BN2 scale folded -------------------------
    w2 = w2_ref[...]                                           # (C, hidden)
    acc2 = jnp.zeros((C, P), jnp.float32)
    for h in range(hidden):
        acc2 = acc2 + w2[:, h:h + 1] * y1[h:h + 1, :]

    # residual add
    o_ref[0] = (x + acc2 + b2_ref[...]).astype(o_ref.dtype)


def resblock_forward(x_nchw, params, eps=1e-5):
    """Pallas implementation of ResBlock.forward (eval-mode BatchNorm)."""
    B, C, H, W = x_nchw.shape
    w1 = params["conv1_w"]            # (hidden, C, 3, 3)
    w2 = params["conv2_w"]            # (C, hidden, 1, 1)
    hidden = w1.shape[0]
    P = H * W
    pad = W + 1

    # Fold eval-mode BatchNorm into per-channel scale/shift (hoisted here).
    s1 = params["bn1_gamma"] / jnp.sqrt(params["bn1_var"] + eps)
    b1 = (params["bn1_beta"] - s1 * params["bn1_mean"]).reshape(hidden, 1)
    s2 = params["bn2_gamma"] / jnp.sqrt(params["bn2_var"] + eps)
    b2 = (params["bn2_beta"] - s2 * params["bn2_mean"]).reshape(C, 1)

    # (9, hidden, C): one (hidden, C) matrix per 3x3 tap, BN1 scale folded in.
    w1_taps = jnp.stack([w1[:, :, dy + 1, dx + 1] for (dy, dx) in _TAPS], axis=0)
    w1f = (w1_taps * s1[None, :, None]).astype(jnp.float32)
    w2f = (w2[:, :, 0, 0] * s2[:, None]).astype(jnp.float32)      # (C, hidden)

    # Per-tap image-border validity masks over the flattened pixel axis.
    yy, xx = jnp.meshgrid(jnp.arange(H), jnp.arange(W), indexing="ij")
    mask = jnp.stack(
        [((yy + dy >= 0) & (yy + dy < H) & (xx + dx >= 0) & (xx + dx < W)).reshape(-1)
         for (dy, dx) in _TAPS], axis=0).astype(jnp.float32)        # (9, P)

    x_flat = x_nchw.reshape(B, C, P).astype(jnp.float32)

    kernel = functools.partial(resblock_kernel, width=W, pad=pad)

    flops = B * (2 * 9 * C * hidden * P + 2 * C * hidden * P + 6 * C * P + 2 * hidden * P)
    bytes_accessed = (2 * B * C * P + 9 * hidden * C + hidden + C * hidden + C + 9 * P) * 4

    out_flat = pl.pallas_call(
        kernel,
        out_shape=jax.ShapeDtypeStruct((B, C, P), x_nchw.dtype),
        grid_spec=pltpu.PrefetchScalarGridSpec(
            num_scalar_prefetch=0,
            grid=(B,),                              # one full image per grid step
            in_specs=[
                pl.BlockSpec((1, C, P), lambda b: (b, 0, 0)),        # x (lane-dense)
                pl.BlockSpec((9, hidden, C), lambda b: (0, 0, 0)),   # folded 3x3 weights
                pl.BlockSpec((hidden, 1), lambda b: (0, 0)),         # BN1 shift
                pl.BlockSpec((C, hidden), lambda b: (0, 0)),         # folded 1x1 weights
                pl.BlockSpec((C, 1), lambda b: (0, 0)),              # BN2 shift
                pl.BlockSpec((9, P), lambda b: (0, 0)),              # border masks
            ],
            out_specs=pl.BlockSpec((1, C, P), lambda b: (b, 0, 0)),  # y (lane-dense)
            scratch_shapes=[pltpu.VMEM((C, P + 2 * pad), jnp.float32)],
        ),
        compiler_params=pltpu.CompilerParams(
            dimension_semantics=("parallel",)),     # no cross-step state -> megacore-safe
        cost_estimate=pl.CostEstimate(flops=flops, transcendentals=0,
                                      bytes_accessed=bytes_accessed),
    )(x_flat, w1f, b1, w2f, b2, mask)

    return out_flat.reshape(B, C, H, W)


def resblock_reference(x, params, eps=1e-5):
    """Pure-JAX reference mirroring the PyTorch forward (eval-mode BatchNorm)."""
    def bn(z, g, b, m, v):
        inv = 1.0 / jnp.sqrt(v + eps)
        return (g[None, :, None, None] * (z - m[None, :, None, None])
                * inv[None, :, None, None] + b[None, :, None, None])

    h = jax.nn.relu(x)
    h = jax.lax.conv_general_dilated(
        h, params["conv1_w"], window_strides=(1, 1), padding=((1, 1), (1, 1)),
        dimension_numbers=("NCHW", "OIHW", "NCHW"))
    h = bn(h, params["bn1_gamma"], params["bn1_beta"], params["bn1_mean"], params["bn1_var"])
    h = jax.nn.relu(h)
    h = jax.lax.conv_general_dilated(
        h, params["conv2_w"], window_strides=(1, 1), padding=((0, 0), (0, 0)),
        dimension_numbers=("NCHW", "OIHW", "NCHW"))
    h = bn(h, params["bn2_gamma"], params["bn2_beta"], params["bn2_mean"], params["bn2_var"])
    return x + h


if __name__ == "__main__":
    # Small shapes consistent with the module: in_channels=4, hidden_channels=32.
    B, C, H, W = 2, 4, 16, 16
    hidden = 32

    key = jax.random.PRNGKey(0)
    ks = jax.random.split(key, 11)
    x = jax.random.normal(ks[0], (B, C, H, W), jnp.float32)
    params = {
        "conv1_w": 0.2 * jax.random.normal(ks[1], (hidden, C, 3, 3), jnp.float32),
        "bn1_gamma": 1.0 + 0.1 * jax.random.normal(ks[2], (hidden,), jnp.float32),
        "bn1_beta": 0.1 * jax.random.normal(ks[3], (hidden,), jnp.float32),
        "bn1_mean": 0.1 * jax.random.normal(ks[4], (hidden,), jnp.float32),
        "bn1_var": jax.random.uniform(ks[5], (hidden,), jnp.float32, 0.5, 1.5),
        "conv2_w": 0.2 * jax.random.normal(ks[6], (C, hidden, 1, 1), jnp.float32),
        "bn2_gamma": 1.0 + 0.1 * jax.random.normal(ks[7], (C,), jnp.float32),
        "bn2_beta": 0.1 * jax.random.normal(ks[8], (C,), jnp.float32),
        "bn2_mean": 0.1 * jax.random.normal(ks[9], (C,), jnp.float32),
        "bn2_var": jax.random.uniform(ks[10], (C,), jnp.float32, 0.5, 1.5),
    }

    out = resblock_forward(x, params)
    jax.block_until_ready(out)

    ref = resblock_reference(x, params)
    np.testing.assert_allclose(np.asarray(out), np.asarray(ref), rtol=1e-4, atol=1e-4)

    print("KERNEL_OK")
</pallas_src>

<mosaic_0001>
module attributes {stable_mosaic.version = 11 : i64} {
  func.func @resblock_kernel(%arg0: i32, %arg1: memref<1x4x256xf32, #tpu.memory_space<vmem>>, %arg2: memref<9x32x4xf32, #tpu.memory_space<vmem>>, %arg3: memref<32x1xf32, #tpu.memory_space<vmem>>, %arg4: memref<4x32xf32, #tpu.memory_space<vmem>>, %arg5: memref<4x1xf32, #tpu.memory_space<vmem>>, %arg6: memref<9x256xf32, #tpu.memory_space<vmem>>, %arg7: memref<1x4x256xf32, #tpu.memory_space<vmem>>, %arg8: memref<4x290xf32, #tpu.memory_space<vmem>>) attributes {dimension_semantics = [#tpu.dimension_semantics<parallel>], iteration_bounds = array<i64: 2>, scalar_prefetch = 0 : i64, scratch_operands = 1 : i64, tpu.core_type = #tpu.core_type<tc>, window_params = [{transform_indices = @transform_0, window_bounds = array<i64: 1, 4, 256>}, {pipeline_mode = #tpu.pipeline_mode<synchronous>, transform_indices = @transform_1, window_bounds = array<i64: 9, 32, 4>}, {pipeline_mode = #tpu.pipeline_mode<synchronous>, transform_indices = @transform_2, window_bounds = array<i64: 32, 1>}, {pipeline_mode = #tpu.pipeline_mode<synchronous>, transform_indices = @transform_3, window_bounds = array<i64: 4, 32>}, {pipeline_mode = #tpu.pipeline_mode<synchronous>, transform_indices = @transform_4, window_bounds = array<i64: 4, 1>}, {pipeline_mode = #tpu.pipeline_mode<synchronous>, transform_indices = @transform_5, window_bounds = array<i64: 9, 256>}, {transform_indices = @transform_6, window_bounds = array<i64: 1, 4, 256>}]} {
    %c0 = arith.constant 0 : index
    %c0_0 = arith.constant 0 : index
    %c0_1 = arith.constant 0 : index
    %0 = vector.load %arg1[%c0, %c0_0, %c0_1] : memref<1x4x256xf32, #tpu.memory_space<vmem>>, vector<1x4x256xf32>
    %1 = vector.shape_cast %0 : vector<1x4x256xf32> to vector<4x256xf32>
    %cst = arith.constant 0.000000e+00 : f32
    %2 = vector.broadcast %cst : f32 to vector<4x290xf32>
    %c0_2 = arith.constant 0 : index
    %c0_3 = arith.constant 0 : index
    %3 = vector.load %arg8[%c0_2, %c0_3] : memref<4x290xf32, #tpu.memory_space<vmem>>, vector<4x290xf32>
    tpu.vector_store %arg8[%c0_2, %c0_3], %2 {strides = array<i32>} : memref<4x290xf32, #tpu.memory_space<vmem>>, vector<4x290xf32>,
    %cst_4 = arith.constant 0.000000e+00 : f32
    %4 = vector.broadcast %cst_4 : f32 to vector<4x256xf32>
    %5 = arith.maximumf %1, %4 : vector<4x256xf32>
    %c0_5 = arith.constant 0 : index
    %c17 = arith.constant 17 : index
    %6 = vector.load %arg8[%c0_5, %c17] : memref<4x290xf32, #tpu.memory_space<vmem>>, vector<4x256xf32>
    tpu.vector_store %arg8[%c0_5, %c17], %5 {strides = array<i32>} : memref<4x290xf32, #tpu.memory_space<vmem>>, vector<4x256xf32>,
    %cst_6 = arith.constant 0.000000e+00 : f32
    %7 = vector.broadcast %cst_6 : f32 to vector<32x256xf32>
    %c0_7 = arith.constant 0 : index
    %c0_8 = arith.constant 0 : index
    %8 = vector.load %arg8[%c0_7, %c0_8] : memref<4x290xf32, #tpu.memory_space<vmem>>, vector<4x256xf32>
    %c0_9 = arith.constant 0 : index
    %c0_10 = arith.constant 0 : index
    %9 = vector.load %arg6[%c0_9, %c0_10] : memref<9x256xf32, #tpu.memory_space<vmem>>, vector<1x256xf32>
    %10 = vector.broadcast %9 : vector<1x256xf32> to vector<4x256xf32>
    %11 = arith.mulf %8, %10 : vector<4x256xf32>
    %c0_11 = arith.constant 0 : index
    %c0_12 = arith.constant 0 : index
    %c0_13 = arith.constant 0 : index
    %12 = vector.load %arg2[%c0_11, %c0_12, %c0_13] : memref<9x32x4xf32, #tpu.memory_space<vmem>>, vector<1x32x4xf32>
    %13 = vector.shape_cast %12 : vector<1x32x4xf32> to vector<32x4xf32>
    %14 = vector.extract_strided_slice %13 {offsets = [0, 0], sizes = [32, 1], strides = [1, 1]} : vector<32x4xf32> to vector<32x1xf32>
    %15 = vector.extract_strided_slice %11 {offsets = [0, 0], sizes = [1, 256], strides = [1, 1]} : vector<4x256xf32> to vector<1x256xf32>
    %16 = vector.broadcast %14 : vector<32x1xf32> to vector<32x256xf32>
    %17 = vector.broadcast %15 : vector<1x256xf32> to vector<32x256xf32>
    %18 = arith.mulf %16, %17 : vector<32x256xf32>
    %19 = arith.addf %7, %18 : vector<32x256xf32>
    %20 = vector.extract_strided_slice %13 {offsets = [0, 1], sizes = [32, 1], strides = [1, 1]} : vector<32x4xf32> to vector<32x1xf32>
    %21 = vector.extract_strided_slice %11 {offsets = [1, 0], sizes = [1, 256], strides = [1, 1]} : vector<4x256xf32> to vector<1x256xf32>
    %22 = vector.broadcast %20 : vector<32x1xf32> to vector<32x256xf32>
    %23 = vector.broadcast %21 : vector<1x256xf32> to vector<32x256xf32>
    %24 = arith.mulf %22, %23 : vector<32x256xf32>
    %25 = arith.addf %19, %24 : vector<32x256xf32>
    %26 = vector.extract_strided_slice %13 {offsets = [0, 2], sizes = [32, 1], strides = [1, 1]} : vector<32x4xf32> to vector<32x1xf32>
    %27 = vector.extract_strided_slice %11 {offsets = [2, 0], sizes = [1, 256], strides = [1, 1]} : vector<4x256xf32> to vector<1x256xf32>
    %28 = vector.broadcast %26 : vector<32x1xf32> to vector<32x256xf32>
    %29 = vector.broadcast %27 : vector<1x256xf32> to vector<32x256xf32>
    %30 = arith.mulf %28, %29 : vector<32x256xf32>
    %31 = arith.addf %25, %30 : vector<32x256xf32>
    %32 = vector.extract_strided_slice %13 {offsets = [0, 3], sizes = [32, 1], strides = [1, 1]} : vector<32x4xf32> to vector<32x1xf32>
    %33 = vector.extract_strided_slice %11 {offsets = [3, 0], sizes = [1, 256], strides = [1, 1]} : vector<4x256xf32> to vector<1x256xf32>
    %34 = vector.broadcast %32 : vector<32x1xf32> to vector<32x256xf32>
    %35 = vector.broadcast %33 : vector<1x256xf32> to vector<32x256xf32>
    %36 = arith.mulf %34, %35 : vector<32x256xf32>
    %37 = arith.addf %31, %36 : vector<32x256xf32>
    %c0_14 = arith.constant 0 : index
    %c1 = arith.constant 1 : index
    %38 = vector.load %arg8[%c0_14, %c1] : memref<4x290xf32, #tpu.memory_space<vmem>>, vector<4x256xf32>
    %c1_15 = arith.constant 1 : index
    %c0_16 = arith.constant 0 : index
    %39 = vector.load %arg6[%c1_15, %c0_16] : memref<9x256xf32, #tpu.memory_space<vmem>>, vector<1x256xf32>
    %40 = vector.broadcast %39 : vector<1x256xf32> to vector<4x256xf32>
    %41 = arith.mulf %38, %40 : vector<4x256xf32>
    %c1_17 = arith.constant 1 : index
    %c0_18 = arith.constant 0 : index
    %c0_19 = arith.constant 0 : index
    %42 = vector.load %arg2[%c1_17, %c0_18, %c0_19] : memref<9x32x4xf32, #tpu.memory_space<vmem>>, vector<1x32x4xf32>
    %43 = vector.shape_cast %42 : vector<1x32x4xf32> to vector<32x4xf32>
    %44 = vector.extract_strided_slice %43 {offsets = [0, 0], sizes = [32, 1], strides = [1, 1]} : vector<32x4xf32> to vector<32x1xf32>
    %45 = vector.extract_strided_slice %41 {offsets = [0, 0], sizes = [1, 256], strides = [1, 1]} : vector<4x256xf32> to vector<1x256xf32>
    %46 = vector.broadcast %44 : vector<32x1xf32> to vector<32x256xf32>
    %47 = vector.broadcast %45 : vector<1x256xf32> to vector<32x256xf32>
    %48 = arith.mulf %46, %47 : vector<32x256xf32>
    %49 = arith.addf %37, %48 : vector<32x256xf32>
    %50 = vector.extract_strided_slice %43 {offsets = [0, 1], sizes = [32, 1], strides = [1, 1]} : vector<32x4xf32> to vector<32x1xf32>
    %51 = vector.extract_strided_slice %41 {offsets = [1, 0], sizes = [1, 256], strides = [1, 1]} : vector<4x256xf32> to vector<1x256xf32>
    %52 = vector.broadcast %50 : vector<32x1xf32> to vector<32x256xf32>
    %53 = vector.broadcast %51 : vector<1x256xf32> to vector<32x256xf32>
    %54 = arith.mulf %52, %53 : vector<32x256xf32>
    %55 = arith.addf %49, %54 : vector<32x256xf32>
    %56 = vector.extract_strided_slice %43 {offsets = [0, 2], sizes = [32, 1], strides = [1, 1]} : vector<32x4xf32> to vector<32x1xf32>
    %57 = vector.extract_strided_slice %41 {offsets = [2, 0], sizes = [1, 256], strides = [1, 1]} : vector<4x256xf32> to vector<1x256xf32>
    %58 = vector.broadcast %56 : vector<32x1xf32> to vector<32x256xf32>
    %59 = vector.broadcast %57 : vector<1x256xf32> to vector<32x256xf32>
    %60 = arith.mulf %58, %59 : vector<32x256xf32>
    %61 = arith.addf %55, %60 : vector<32x256xf32>
    %62 = vector.extract_strided_slice %43 {offsets = [0, 3], sizes = [32, 1], strides = [1, 1]} : vector<32x4xf32> to vector<32x1xf32>
    %63 = vector.extract_strided_slice %41 {offsets = [3, 0], sizes = [1, 256], strides = [1, 1]} : vector<4x256xf32> to vector<1x256xf32>
    %64 = vector.broadcast %62 : vector<32x1xf32> to vector<32x256xf32>
    %65 = vector.broadcast %63 : vector<1x256xf32> to vector<32x256xf32>
    %66 = arith.mulf %64, %65 : vector<32x256xf32>
    %67 = arith.addf %61, %66 : vector<32x256xf32>
    %c0_20 = arith.constant 0 : index
    %c2 = arith.constant 2 : index
    %68 = vector.load %arg8[%c0_20, %c2] : memref<4x290xf32, #tpu.memory_space<vmem>>, vector<4x256xf32>
    %c2_21 = arith.constant 2 : index
    %c0_22 = arith.constant 0 : index
    %69 = vector.load %arg6[%c2_21, %c0_22] : memref<9x256xf32, #tpu.memory_space<vmem>>, vector<1x256xf32>
    %70 = vector.broadcast %69 : vector<1x256xf32> to vector<4x256xf32>
    %71 = arith.mulf %68, %70 : vector<4x256xf32>
    %c2_23 = arith.constant 2 : index
    %c0_24 = arith.constant 0 : index
    %c0_25 = arith.constant 0 : index
    %72 = vector.load %arg2[%c2_23, %c0_24, %c0_25] : memref<9x32x4xf32, #tpu.memory_space<vmem>>, vector<1x32x4xf32>
    %73 = vector.shape_cast %72 : vector<1x32x4xf32> to vector<32x4xf32>
    %74 = vector.extract_strided_slice %73 {offsets = [0, 0], sizes = [32, 1], strides = [1, 1]} : vector<32x4xf32> to vector<32x1xf32>
    %75 = vector.extract_strided_slice %71 {offsets = [0, 0], sizes = [1, 256], strides = [1, 1]} : vector<4x256xf32> to vector<1x256xf32>
    %76 = vector.broadcast %74 : vector<32x1xf32> to vector<32x256xf32>
    %77 = vector.broadcast %75 : vector<1x256xf32> to vector<32x256xf32>
    %78 = arith.mulf %76, %77 : vector<32x256xf32>
    %79 = arith.addf %67, %78 : vector<32x256xf32>
    %80 = vector.extract_strided_slice %73 {offsets = [0, 1], sizes = [32, 1], strides = [1, 1]} : vector<32x4xf32> to vector<32x1xf32>
    %81 = vector.extract_strided_slice %71 {offsets = [1, 0], sizes = [1, 256], strides = [1, 1]} : vector<4x256xf32> to vector<1x256xf32>
    %82 = vector.broadcast %80 : vector<32x1xf32> to vector<32x256xf32>
    %83 = vector.broadcast %81 : vector<1x256xf32> to vector<32x256xf32>
    %84 = arith.mulf %82, %83 : vector<32x256xf32>
    %85 = arith.addf %79, %84 : vector<32x256xf32>
    %86 = vector.extract_strided_slice %73 {offsets = [0, 2], sizes = [32, 1], strides = [1, 1]} : vector<32x4xf32> to vector<32x1xf32>
    %87 = vector.extract_strided_slice %71 {offsets = [2, 0], sizes = [1, 256], strides = [1, 1]} : vector<4x256xf32> to vector<1x256xf32>
    %88 = vector.broadcast %86 : vector<32x1xf32> to vector<32x256xf32>
    %89 = vector.broadcast %87 : vector<1x256xf32> to vector<32x256xf32>
    %90 = arith.mulf %88, %89 : vector<32x256xf32>
    %91 = arith.addf %85, %90 : vector<32x256xf32>
    %92 = vector.extract_strided_slice %73 {offsets = [0, 3], sizes = [32, 1], strides = [1, 1]} : vector<32x4xf32> to vector<32x1xf32>
    %93 = vector.extract_strided_slice %71 {offsets = [3, 0], sizes = [1, 256], strides = [1, 1]} : vector<4x256xf32> to vector<1x256xf32>
    %94 = vector.broadcast %92 : vector<32x1xf32> to vector<32x256xf32>
    %95 = vector.broadcast %93 : vector<1x256xf32> to vector<32x256xf32>
    %96 = arith.mulf %94, %95 : vector<32x256xf32>
    %97 = arith.addf %91, %96 : vector<32x256xf32>
    %c0_26 = arith.constant 0 : index
    %c16 = arith.constant 16 : index
    %98 = vector.load %arg8[%c0_26, %c16] : memref<4x290xf32, #tpu.memory_space<vmem>>, vector<4x256xf32>
    %c3 = arith.constant 3 : index
    %c0_27 = arith.constant 0 : index
    %99 = vector.load %arg6[%c3, %c0_27] : memref<9x256xf32, #tpu.memory_space<vmem>>, vector<1x256xf32>
    %100 = vector.broadcast %99 : vector<1x256xf32> to vector<4x256xf32>
    %101 = arith.mulf %98, %100 : vector<4x256xf32>
    %c3_28 = arith.constant 3 : index
    %c0_29 = arith.constant 0 : index
    %c0_30 = arith.constant 0 : index
    %102 = vector.load %arg2[%c3_28, %c0_29, %c0_30] : memref<9x32x4xf32, #tpu.memory_space<vmem>>, vector<1x32x4xf32>
    %103 = vector.shape_cast %102 : vector<1x32x4xf32> to vector<32x4xf32>
    %104 = vector.extract_strided_slice %103 {offsets = [0, 0], sizes = [32, 1], strides = [1, 1]} : vector<32x4xf32> to vector<32x1xf32>
    %105 = vector.extract_strided_slice %101 {offsets = [0, 0], sizes = [1, 256], strides = [1, 1]} : vector<4x256xf32> to vector<1x256xf32>
    %106 = vector.broadcast %104 : vector<32x1xf32> to vector<32x256xf32>
    %107 = vector.broadcast %105 : vector<1x256xf32> to vector<32x256xf32>
    %108 = arith.mulf %106, %107 : vector<32x256xf32>
    %109 = arith.addf %97, %108 : vector<32x256xf32>
    %110 = vector.extract_strided_slice %103 {offsets = [0, 1], sizes = [32, 1], strides = [1, 1]} : vector<32x4xf32> to vector<32x1xf32>
    %111 = vector.extract_strided_slice %101 {offsets = [1, 0], sizes = [1, 256], strides = [1, 1]} : vector<4x256xf32> to vector<1x256xf32>
    %112 = vector.broadcast %110 : vector<32x1xf32> to vector<32x256xf32>
    %113 = vector.broadcast %111 : vector<1x256xf32> to vector<32x256xf32>
    %114 = arith.mulf %112, %113 : vector<32x256xf32>
    %115 = arith.addf %109, %114 : vector<32x256xf32>
    %116 = vector.extract_strided_slice %103 {offsets = [0, 2], sizes = [32, 1], strides = [1, 1]} : vector<32x4xf32> to vector<32x1xf32>
    %117 = vector.extract_strided_slice %101 {offsets = [2, 0], sizes = [1, 256], strides = [1, 1]} : vector<4x256xf32> to vector<1x256xf32>
    %118 = vector.broadcast %116 : vector<32x1xf32> to vector<32x256xf32>
    %119 = vector.broadcast %117 : vector<1x256xf32> to vector<32x256xf32>
    %120 = arith.mulf %118, %119 : vector<32x256xf32>
    %121 = arith.addf %115, %120 : vector<32x256xf32>
    %122 = vector.extract_strided_slice %103 {offsets = [0, 3], sizes = [32, 1], strides = [1, 1]} : vector<32x4xf32> to vector<32x1xf32>
    %123 = vector.extract_strided_slice %101 {offsets = [3, 0], sizes = [1, 256], strides = [1, 1]} : vector<4x256xf32> to vector<1x256xf32>
    %124 = vector.broadcast %122 : vector<32x1xf32> to vector<32x256xf32>
    %125 = vector.broadcast %123 : vector<1x256xf32> to vector<32x256xf32>
    %126 = arith.mulf %124, %125 : vector<32x256xf32>
    %127 = arith.addf %121, %126 : vector<32x256xf32>
    %c0_31 = arith.constant 0 : index
    %c17_32 = arith.constant 17 : index
    %128 = vector.load %arg8[%c0_31, %c17_32] : memref<4x290xf32, #tpu.memory_space<vmem>>, vector<4x256xf32>
    %c4 = arith.constant 4 : index
    %c0_33 = arith.constant 0 : index
    %129 = vector.load %arg6[%c4, %c0_33] : memref<9x256xf32, #tpu.memory_space<vmem>>, vector<1x256xf32>
    %130 = vector.broadcast %129 : vector<1x256xf32> to vector<4x256xf32>
    %131 = arith.mulf %128, %130 : vector<4x256xf32>
    %c4_34 = arith.constant 4 : index
    %c0_35 = arith.constant 0 : index
    %c0_36 = arith.constant 0 : index
    %132 = vector.load %arg2[%c4_34, %c0_35, %c0_36] : memref<9x32x4xf32, #tpu.memory_space<vmem>>, vector<1x32x4xf32>
    %133 = vector.shape_cast %132 : vector<1x32x4xf32> to vector<32x4xf32>
    %134 = vector.extract_strided_slice %133 {offsets = [0, 0], sizes = [32, 1], strides = [1, 1]} : vector<32x4xf32> to vector<32x1xf32>
    %135 = vector.extract_strided_slice %131 {offsets = [0, 0], sizes = [1, 256], strides = [1, 1]} : vector<4x256xf32> to vector<1x256xf32>
    %136 = vector.broadcast %134 : vector<32x1xf32> to vector<32x256xf32>
    %137 = vector.broadcast %135 : vector<1x256xf32> to vector<32x256xf32>
    %138 = arith.mulf %136, %137 : vector<32x256xf32>
    %139 = arith.addf %127, %138 : vector<32x256xf32>
    %140 = vector.extract_strided_slice %133 {offsets = [0, 1], sizes = [32, 1], strides = [1, 1]} : vector<32x4xf32> to vector<32x1xf32>
    %141 = vector.extract_strided_slice %131 {offsets = [1, 0], sizes = [1, 256], strides = [1, 1]} : vector<4x256xf32> to vector<1x256xf32>
    %142 = vector.broadcast %140 : vector<32x1xf32> to vector<32x256xf32>
    %143 = vector.broadcast %141 : vector<1x256xf32> to vector<32x256xf32>
    %144 = arith.mulf %142, %143 : vector<32x256xf32>
    %145 = arith.addf %139, %144 : vector<32x256xf32>
    %146 = vector.extract_strided_slice %133 {offsets = [0, 2], sizes = [32, 1], strides = [1, 1]} : vector<32x4xf32> to vector<32x1xf32>
    %147 = vector.extract_strided_slice %131 {offsets = [2, 0], sizes = [1, 256], strides = [1, 1]} : vector<4x256xf32> to vector<1x256xf32>
    %148 = vector.broadcast %146 : vector<32x1xf32> to vector<32x256xf32>
    %149 = vector.broadcast %147 : vector<1x256xf32> to vector<32x256xf32>
    %150 = arith.mulf %148, %149 : vector<32x256xf32>
    %151 = arith.addf %145, %150 : vector<32x256xf32>
    %152 = vector.extract_strided_slice %133 {offsets = [0, 3], sizes = [32, 1], strides = [1, 1]} : vector<32x4xf32> to vector<32x1xf32>
    %153 = vector.extract_strided_slice %131 {offsets = [3, 0], sizes = [1, 256], strides = [1, 1]} : vector<4x256xf32> to vector<1x256xf32>
    %154 = vector.broadcast %152 : vector<32x1xf32> to vector<32x256xf32>
    %155 = vector.broadcast %153 : vector<1x256xf32> to vector<32x256xf32>
    %156 = arith.mulf %154, %155 : vector<32x256xf32>
    %157 = arith.addf %151, %156 : vector<32x256xf32>
    %c0_37 = arith.constant 0 : index
    %c18 = arith.constant 18 : index
    %158 = vector.load %arg8[%c0_37, %c18] : memref<4x290xf32, #tpu.memory_space<vmem>>, vector<4x256xf32>
    %c5 = arith.constant 5 : index
    %c0_38 = arith.constant 0 : index
    %159 = vector.load %arg6[%c5, %c0_38] : memref<9x256xf32, #tpu.memory_space<vmem>>, vector<1x256xf32>
    %160 = vector.broadcast %159 : vector<1x256xf32> to vector<4x256xf32>
    %161 = arith.mulf %158, %160 : vector<4x256xf32>
    %c5_39 = arith.constant 5 : index
    %c0_40 = arith.constant 0 : index
    %c0_41 = arith.constant 0 : index
    %162 = vector.load %arg2[%c5_39, %c0_40, %c0_41] : memref<9x32x4xf32, #tpu.memory_space<vmem>>, vector<1x32x4xf32>
    %163 = vector.shape_cast %162 : vector<1x32x4xf32> to vector<32x4xf32>
    %164 = vector.extract_strided_slice %163 {offsets = [0, 0], sizes = [32, 1], strides = [1, 1]} : vector<32x4xf32> to vector<32x1xf32>
    %165 = vector.extract_strided_slice %161 {offsets = [0, 0], sizes = [1, 256], strides = [1, 1]} : vector<4x256xf32> to vector<1x256xf32>
    %166 = vector.broadcast %164 : vector<32x1xf32> to vector<32x256xf32>
    %167 = vector.broadcast %165 : vector<1x256xf32> to vector<32x256xf32>
    %168 = arith.mulf %166, %167 : vector<32x256xf32>
    %169 = arith.addf %157, %168 : vector<32x256xf32>
    %170 = vector.extract_strided_slice %163 {offsets = [0, 1], sizes = [32, 1], strides = [1, 1]} : vector<32x4xf32> to vector<32x1xf32>
    %171 = vector.extract_strided_slice %161 {offsets = [1, 0], sizes = [1, 256], strides = [1, 1]} : vector<4x256xf32> to vector<1x256xf32>
    %172 = vector.broadcast %170 : vector<32x1xf32> to vector<32x256xf32>
    %173 = vector.broadcast %171 : vector<1x256xf32> to vector<32x256xf32>
    %174 = arith.mulf %172, %173 : vector<32x256xf32>
    %175 = arith.addf %169, %174 : vector<32x256xf32>
    %176 = vector.extract_strided_slice %163 {offsets = [0, 2], sizes = [32, 1], strides = [1, 1]} : vector<32x4xf32> to vector<32x1xf32>
    %177 = vector.extract_strided_slice %161 {offsets = [2, 0], sizes = [1, 256], strides = [1, 1]} : vector<4x256xf32> to vector<1x256xf32>
    %178 = vector.broadcast %176 : vector<32x1xf32> to vector<32x256xf32>
    %179 = vector.broadcast %177 : vector<1x256xf32> to vector<32x256xf32>
    %180 = arith.mulf %178, %179 : vector<32x256xf32>
    %181 = arith.addf %175, %180 : vector<32x256xf32>
    %182 = vector.extract_strided_slice %163 {offsets = [0, 3], sizes = [32, 1], strides = [1, 1]} : vector<32x4xf32> to vector<32x1xf32>
    %183 = vector.extract_strided_slice %161 {offsets = [3, 0], sizes = [1, 256], strides = [1, 1]} : vector<4x256xf32> to vector<1x256xf32>
    %184 = vector.broadcast %182 : vector<32x1xf32> to vector<32x256xf32>
    %185 = vector.broadcast %183 : vector<1x256xf32> to vector<32x256xf32>
    %186 = arith.mulf %184, %185 : vector<32x256xf32>
    %187 = arith.addf %181, %186 : vector<32x256xf32>
    %c0_42 = arith.constant 0 : index
    %c32 = arith.constant 32 : index
    %188 = vector.load %arg8[%c0_42, %c32] : memref<4x290xf32, #tpu.memory_space<vmem>>, vector<4x256xf32>
    %c6 = arith.constant 6 : index
    %c0_43 = arith.constant 0 : index
    %189 = vector.load %arg6[%c6, %c0_43] : memref<9x256xf32, #tpu.memory_space<vmem>>, vector<1x256xf32>
    %190 = vector.broadcast %189 : vector<1x256xf32> to vector<4x256xf32>
    %191 = arith.mulf %188, %190 : vector<4x256xf32>
    %c6_44 = arith.constant 6 : index
    %c0_45 = arith.constant 0 : index
    %c0_46 = arith.constant 0 : index
    %192 = vector.load %arg2[%c6_44, %c0_45, %c0_46] : memref<9x32x4xf32, #tpu.memory_space<vmem>>, vector<1x32x4xf32>
    %193 = vector.shape_cast %192 : vector<1x32x4xf32> to vector<32x4xf32>
    %194 = vector.extract_strided_slice %193 {offsets = [0, 0], sizes = [32, 1], strides = [1, 1]} : vector<32x4xf32> to vector<32x1xf32>
    %195 = vector.extract_strided_slice %191 {offsets = [0, 0], sizes = [1, 256], strides = [1, 1]} : vector<4x256xf32> to vector<1x256xf32>
    %196 = vector.broadcast %194 : vector<32x1xf32> to vector<32x256xf32>
    %197 = vector.broadcast %195 : vector<1x256xf32> to vector<32x256xf32>
    %198 = arith.mulf %196, %197 : vector<32x256xf32>
    %199 = arith.addf %187, %198 : vector<32x256xf32>
    %200 = vector.extract_strided_slice %193 {offsets = [0, 1], sizes = [32, 1], strides = [1, 1]} : vector<32x4xf32> to vector<32x1xf32>
    %201 = vector.extract_strided_slice %191 {offsets = [1, 0], sizes = [1, 256], strides = [1, 1]} : vector<4x256xf32> to vector<1x256xf32>
    %202 = vector.broadcast %200 : vector<32x1xf32> to vector<32x256xf32>
    %203 = vector.broadcast %201 : vector<1x256xf32> to vector<32x256xf32>
    %204 = arith.mulf %202, %203 : vector<32x256xf32>
    %205 = arith.addf %199, %204 : vector<32x256xf32>
    %206 = vector.extract_strided_slice %193 {offsets = [0, 2], sizes = [32, 1], strides = [1, 1]} : vector<32x4xf32> to vector<32x1xf32>
    %207 = vector.extract_strided_slice %191 {offsets = [2, 0], sizes = [1, 256], strides = [1, 1]} : vector<4x256xf32> to vector<1x256xf32>
    %208 = vector.broadcast %206 : vector<32x1xf32> to vector<32x256xf32>
    %209 = vector.broadcast %207 : vector<1x256xf32> to vector<32x256xf32>
    %210 = arith.mulf %208, %209 : vector<32x256xf32>
    %211 = arith.addf %205, %210 : vector<32x256xf32>
    %212 = vector.extract_strided_slice %193 {offsets = [0, 3], sizes = [32, 1], strides = [1, 1]} : vector<32x4xf32> to vector<32x1xf32>
    %213 = vector.extract_strided_slice %191 {offsets = [3, 0], sizes = [1, 256], strides = [1, 1]} : vector<4x256xf32> to vector<1x256xf32>
    %214 = vector.broadcast %212 : vector<32x1xf32> to vector<32x256xf32>
    %215 = vector.broadcast %213 : vector<1x256xf32> to vector<32x256xf32>
    %216 = arith.mulf %214, %215 : vector<32x256xf32>
    %217 = arith.addf %211, %216 : vector<32x256xf32>
    %c0_47 = arith.constant 0 : index
    %c33 = arith.constant 33 : index
    %218 = vector.load %arg8[%c0_47, %c33] : memref<4x290xf32, #tpu.memory_space<vmem>>, vector<4x256xf32>
    %c7 = arith.constant 7 : index
    %c0_48 = arith.constant 0 : index
    %219 = vector.load %arg6[%c7, %c0_48] : memref<9x256xf32, #tpu.memory_space<vmem>>, vector<1x256xf32>
    %220 = vector.broadcast %219 : vector<1x256xf32> to vector<4x256xf32>
    %221 = arith.mulf %218, %220 : vector<4x256xf32>
    %c7_49 = arith.constant 7 : index
    %c0_50 = arith.constant 0 : index
    %c0_51 = arith.constant 0 : index
    %222 = vector.load %arg2[%c7_49, %c0_50, %c0_51] : memref<9x32x4xf32, #tpu.memory_space<vmem>>, vector<1x32x4xf32>
    %223 = vector.shape_cast %222 : vector<1x32x4xf32> to vector<32x4xf32>
    %224 = vector.extract_strided_slice %223 {offsets = [0, 0], sizes = [32, 1], strides = [1, 1]} : vector<32x4xf32> to vector<32x1xf32>
    %225 = vector.extract_strided_slice %221 {offsets = [0, 0], sizes = [1, 256], strides = [1, 1]} : vector<4x256xf32> to vector<1x256xf32>
    %226 = vector.broadcast %224 : vector<32x1xf32> to vector<32x256xf32>
    %227 = vector.broadcast %225 : vector<1x256xf32> to vector<32x256xf32>
    %228 = arith.mulf %226, %227 : vector<32x256xf32>
    %229 = arith.addf %217, %228 : vector<32x256xf32>
    %230 = vector.extract_strided_slice %223 {offsets = [0, 1], sizes = [32, 1], strides = [1, 1]} : vector<32x4xf32> to vector<32x1xf32>
    %231 = vector.extract_strided_slice %221 {offsets = [1, 0], sizes = [1, 256], strides = [1, 1]} : vector<4x256xf32> to vector<1x256xf32>
    %232 = vector.broadcast %230 : vector<32x1xf32> to vector<32x256xf32>
    %233 = vector.broadcast %231 : vector<1x256xf32> to vector<32x256xf32>
    %234 = arith.mulf %232, %233 : vector<32x256xf32>
    %235 = arith.addf %229, %234 : vector<32x256xf32>
    %236 = vector.extract_strided_slice %223 {offsets = [0, 2], sizes = [32, 1], strides = [1, 1]} : vector<32x4xf32> to vector<32x1xf32>
    %237 = vector.extract_strided_slice %221 {offsets = [2, 0], sizes = [1, 256], strides = [1, 1]} : vector<4x256xf32> to vector<1x256xf32>
    %238 = vector.broadcast %236 : vector<32x1xf32> to vector<32x256xf32>
    %239 = vector.broadcast %237 : vector<1x256xf32> to vector<32x256xf32>
    %240 = arith.mulf %238, %239 : vector<32x256xf32>
    %241 = arith.addf %235, %240 : vector<32x256xf32>
    %242 = vector.extract_strided_slice %223 {offsets = [0, 3], sizes = [32, 1], strides = [1, 1]} : vector<32x4xf32> to vector<32x1xf32>
    %243 = vector.extract_strided_slice %221 {offsets = [3, 0], sizes = [1, 256], strides = [1, 1]} : vector<4x256xf32> to vector<1x256xf32>
    %244 = vector.broadcast %242 : vector<32x1xf32> to vector<32x256xf32>
    %245 = vector.broadcast %243 : vector<1x256xf32> to vector<32x256xf32>
    %246 = arith.mulf %244, %245 : vector<32x256xf32>
    %247 = arith.addf %241, %246 : vector<32x256xf32>
    %c0_52 = arith.constant 0 : index
    %c34 = arith.constant 34 : index
    %248 = vector.load %arg8[%c0_52, %c34] : memref<4x290xf32, #tpu.memory_space<vmem>>, vector<4x256xf32>
    %c8 = arith.constant 8 : index
    %c0_53 = arith.constant 0 : index
    %249 = vector.load %arg6[%c8, %c0_53] : memref<9x256xf32, #tpu.memory_space<vmem>>, vector<1x256xf32>
    %250 = vector.broadcast %249 : vector<1x256xf32> to vector<4x256xf32>
    %251 = arith.mulf %248, %250 : vector<4x256xf32>
    %c8_54 = arith.constant 8 : index
    %c0_55 = arith.constant 0 : index
    %c0_56 = arith.constant 0 : index
    %252 = vector.load %arg2[%c8_54, %c0_55, %c0_56] : memref<9x32x4xf32, #tpu.memory_space<vmem>>, vector<1x32x4xf32>
    %253 = vector.shape_cast %252 : vector<1x32x4xf32> to vector<32x4xf32>
    %254 = vector.extract_strided_slice %253 {offsets = [0, 0], sizes = [32, 1], strides = [1, 1]} : vector<32x4xf32> to vector<32x1xf32>
    %255 = vector.extract_strided_slice %251 {offsets = [0, 0], sizes = [1, 256], strides = [1, 1]} : vector<4x256xf32> to vector<1x256xf32>
    %256 = vector.broadcast %254 : vector<32x1xf32> to vector<32x256xf32>
    %257 = vector.broadcast %255 : vector<1x256xf32> to vector<32x256xf32>
    %258 = arith.mulf %256, %257 : vector<32x256xf32>
    %259 = arith.addf %247, %258 : vector<32x256xf32>
    %260 = vector.extract_strided_slice %253 {offsets = [0, 1], sizes = [32, 1], strides = [1, 1]} : vector<32x4xf32> to vector<32x1xf32>
    %261 = vector.extract_strided_slice %251 {offsets = [1, 0], sizes = [1, 256], strides = [1, 1]} : vector<4x256xf32> to vector<1x256xf32>
    %262 = vector.broadcast %260 : vector<32x1xf32> to vector<32x256xf32>
    %263 = vector.broadcast %261 : vector<1x256xf32> to vector<32x256xf32>
    %264 = arith.mulf %262, %263 : vector<32x256xf32>
    %265 = arith.addf %259, %264 : vector<32x256xf32>
    %266 = vector.extract_strided_slice %253 {offsets = [0, 2], sizes = [32, 1], strides = [1, 1]} : vector<32x4xf32> to vector<32x1xf32>
    %267 = vector.extract_strided_slice %251 {offsets = [2, 0], sizes = [1, 256], strides = [1, 1]} : vector<4x256xf32> to vector<1x256xf32>
    %268 = vector.broadcast %266 : vector<32x1xf32> to vector<32x256xf32>
    %269 = vector.broadcast %267 : vector<1x256xf32> to vector<32x256xf32>
    %270 = arith.mulf %268, %269 : vector<32x256xf32>
    %271 = arith.addf %265, %270 : vector<32x256xf32>
    %272 = vector.extract_strided_slice %253 {offsets = [0, 3], sizes = [32, 1], strides = [1, 1]} : vector<32x4xf32> to vector<32x1xf32>
    %273 = vector.extract_strided_slice %251 {offsets = [3, 0], sizes = [1, 256], strides = [1, 1]} : vector<4x256xf32> to vector<1x256xf32>
    %274 = vector.broadcast %272 : vector<32x1xf32> to vector<32x256xf32>
    %275 = vector.broadcast %273 : vector<1x256xf32> to vector<32x256xf32>
    %276 = arith.mulf %274, %275 : vector<32x256xf32>
    %277 = arith.addf %271, %276 : vector<32x256xf32>
    %c0_57 = arith.constant 0 : index
    %c0_58 = arith.constant 0 : index
    %278 = vector.load %arg3[%c0_57, %c0_58] : memref<32x1xf32, #tpu.memory_space<vmem>>, vector<32x1xf32>
    %279 = vector.broadcast %278 : vector<32x1xf32> to vector<32x256xf32>
    %280 = arith.addf %277, %279 : vector<32x256xf32>
    %cst_59 = arith.constant 0.000000e+00 : f32
    %281 = vector.broadcast %cst_59 : f32 to vector<32x256xf32>
    %282 = arith.maximumf %280, %281 : vector<32x256xf32>
    %c0_60 = arith.constant 0 : index
    %c0_61 = arith.constant 0 : index
    %283 = vector.load %arg4[%c0_60, %c0_61] : memref<4x32xf32, #tpu.memory_space<vmem>>, vector<4x32xf32>
    %cst_62 = arith.constant 0.000000e+00 : f32
    %284 = vector.broadcast %cst_62 : f32 to vector<4x256xf32>
    %285 = vector.extract_strided_slice %283 {offsets = [0, 0], sizes = [4, 1], strides = [1, 1]} : vector<4x32xf32> to vector<4x1xf32>
    %286 = vector.extract_strided_slice %282 {offsets = [0, 0], sizes = [1, 256], strides = [1, 1]} : vector<32x256xf32> to vector<1x256xf32>
    %287 = vector.broadcast %285 : vector<4x1xf32> to vector<4x256xf32>
    %288 = vector.broadcast %286 : vector<1x256xf32> to vector<4x256xf32>
    %289 = arith.mulf %287, %288 : vector<4x256xf32>
    %290 = arith.addf %284, %289 : vector<4x256xf32>
    %291 = vector.extract_strided_slice %283 {offsets = [0, 1], sizes = [4, 1], strides = [1, 1]} : vector<4x32xf32> to vector<4x1xf32>
    %292 = vector.extract_strided_slice %282 {offsets = [1, 0], sizes = [1, 256], strides = [1, 1]} : vector<32x256xf32> to vector<1x256xf32>
    %293 = vector.broadcast %291 : vector<4x1xf32> to vector<4x256xf32>
    %294 = vector.broadcast %292 : vector<1x256xf32> to vector<4x256xf32>
    %295 = arith.mulf %293, %294 : vector<4x256xf32>
    %296 = arith.addf %290, %295 : vector<4x256xf32>
    %297 = vector.extract_strided_slice %283 {offsets = [0, 2], sizes = [4, 1], strides = [1, 1]} : vector<4x32xf32> to vector<4x1xf32>
    %298 = vector.extract_strided_slice %282 {offsets = [2, 0], sizes = [1, 256], strides = [1, 1]} : vector<32x256xf32> to vector<1x256xf32>
    %299 = vector.broadcast %297 : vector<4x1xf32> to vector<4x256xf32>
    %300 = vector.broadcast %298 : vector<1x256xf32> to vector<4x256xf32>
    %301 = arith.mulf %299, %300 : vector<4x256xf32>
    %302 = arith.addf %296, %301 : vector<4x256xf32>
    %303 = vector.extract_strided_slice %283 {offsets = [0, 3], sizes = [4, 1], strides = [1, 1]} : vector<4x32xf32> to vector<4x1xf32>
    %304 = vector.extract_strided_slice %282 {offsets = [3, 0], sizes = [1, 256], strides = [1, 1]} : vector<32x256xf32> to vector<1x256xf32>
    %305 = vector.broadcast %303 : vector<4x1xf32> to vector<4x256xf32>
    %306 = vector.broadcast %304 : vector<1x256xf32> to vector<4x256xf32>
    %307 = arith.mulf %305, %306 : vector<4x256xf32>
    %308 = arith.addf %302, %307 : vector<4x256xf32>
    %309 = vector.extract_strided_slice %283 {offsets = [0, 4], sizes = [4, 1], strides = [1, 1]} : vector<4x32xf32> to vector<4x1xf32>
    %310 = vector.extract_strided_slice %282 {offsets = [4, 0], sizes = [1, 256], strides = [1, 1]} : vector<32x256xf32> to vector<1x256xf32>
    %311 = vector.broadcast %309 : vector<4x1xf32> to vector<4x256xf32>
    %312 = vector.broadcast %310 : vector<1x256xf32> to vector<4x256xf32>
    %313 = arith.mulf %311, %312 : vector<4x256xf32>
    %314 = arith.addf %308, %313 : vector<4x256xf32>
    %315 = vector.extract_strided_slice %283 {offsets = [0, 5], sizes = [4, 1], strides = [1, 1]} : vector<4x32xf32> to vector<4x1xf32>
    %316 = vector.extract_strided_slice %282 {offsets = [5, 0], sizes = [1, 256], strides = [1, 1]} : vector<32x256xf32> to vector<1x256xf32>
    %317 = vector.broadcast %315 : vector<4x1xf32> to vector<4x256xf32>
    %318 = vector.broadcast %316 : vector<1x256xf32> to vector<4x256xf32>
    %319 = arith.mulf %317, %318 : vector<4x256xf32>
    %320 = arith.addf %314, %319 : vector<4x256xf32>
    %321 = vector.extract_strided_slice %283 {offsets = [0, 6], sizes = [4, 1], strides = [1, 1]} : vector<4x32xf32> to vector<4x1xf32>
    %322 = vector.extract_strided_slice %282 {offsets = [6, 0], sizes = [1, 256], strides = [1, 1]} : vector<32x256xf32> to vector<1x256xf32>
    %323 = vector.broadcast %321 : vector<4x1xf32> to vector<4x256xf32>
    %324 = vector.broadcast %322 : vector<1x256xf32> to vector<4x256xf32>
    %325 = arith.mulf %323, %324 : vector<4x256xf32>
    %326 = arith.addf %320, %325 : vector<4x256xf32>
    %327 = vector.extract_strided_slice %283 {offsets = [0, 7], sizes = [4, 1], strides = [1, 1]} : vector<4x32xf32> to vector<4x1xf32>
    %328 = vector.extract_strided_slice %282 {offsets = [7, 0], sizes = [1, 256], strides = [1, 1]} : vector<32x256xf32> to vector<1x256xf32>
    %329 = vector.broadcast %327 : vector<4x1xf32> to vector<4x256xf32>
    %330 = vector.broadcast %328 : vector<1x256xf32> to vector<4x256xf32>
    %331 = arith.mulf %329, %330 : vector<4x256xf32>
    %332 = arith.addf %326, %331 : vector<4x256xf32>
    %333 = vector.extract_strided_slice %283 {offsets = [0, 8], sizes = [4, 1], strides = [1, 1]} : vector<4x32xf32> to vector<4x1xf32>
    %334 = vector.extract_strided_slice %282 {offsets = [8, 0], sizes = [1, 256], strides = [1, 1]} : vector<32x256xf32> to vector<1x256xf32>
    %335 = vector.broadcast %333 : vector<4x1xf32> to vector<4x256xf32>
    %336 = vector.broadcast %334 : vector<1x256xf32> to vector<4x256xf32>
    %337 = arith.mulf %335, %336 : vector<4x256xf32>
    %338 = arith.addf %332, %337 : vector<4x256xf32>
    %339 = vector.extract_strided_slice %283 {offsets = [0, 9], sizes = [4, 1], strides = [1, 1]} : vector<4x32xf32> to vector<4x1xf32>
    %340 = vector.extract_strided_slice %282 {offsets = [9, 0], sizes = [1, 256], strides = [1, 1]} : vector<32x256xf32> to vector<1x256xf32>
    %341 = vector.broadcast %339 : vector<4x1xf32> to vector<4x256xf32>
    %342 = vector.broadcast %340 : vector<1x256xf32> to vector<4x256xf32>
    %343 = arith.mulf %341, %342 : vector<4x256xf32>
    %344 = arith.addf %338, %343 : vector<4x256xf32>
    %345 = vector.extract_strided_slice %283 {offsets = [0, 10], sizes = [4, 1], strides = [1, 1]} : vector<4x32xf32> to vector<4x1xf32>
    %346 = vector.extract_strided_slice %282 {offsets = [10, 0], sizes = [1, 256], strides = [1, 1]} : vector<32x256xf32> to vector<1x256xf32>
    %347 = vector.broadcast %345 : vector<4x1xf32> to vector<4x256xf32>
    %348 = vector.broadcast %346 : vector<1x256xf32> to vector<4x256xf32>
    %349 = arith.mulf %347, %348 : vector<4x256xf32>
    %350 = arith.addf %344, %349 : vector<4x256xf32>
    %351 = vector.extract_strided_slice %283 {offsets = [0, 11], sizes = [4, 1], strides = [1, 1]} : vector<4x32xf32> to vector<4x1xf32>
    %352 = vector.extract_strided_slice %282 {offsets = [11, 0], sizes = [1, 256], strides = [1, 1]} : vector<32x256xf32> to vector<1x256xf32>
    %353 = vector.broadcast %351 : vector<4x1xf32> to vector<4x256xf32>
    %354 = vector.broadcast %352 : vector<1x256xf32> to vector<4x256xf32>
    %355 = arith.mulf %353, %354 : vector<4x256xf32>
    %356 = arith.addf %350, %355 : vector<4x256xf32>
    %357 = vector.extract_strided_slice %283 {offsets = [0, 12], sizes = [4, 1], strides = [1, 1]} : vector<4x32xf32> to vector<4x1xf32>
    %358 = vector.extract_strided_slice %282 {offsets = [12, 0], sizes = [1, 256], strides = [1, 1]} : vector<32x256xf32> to vector<1x256xf32>
    %359 = vector.broadcast %357 : vector<4x1xf32> to vector<4x256xf32>
    %360 = vector.broadcast %358 : vector<1x256xf32> to vector<4x256xf32>
    %361 = arith.mulf %359, %360 : vector<4x256xf32>
    %362 = arith.addf %356, %361 : vector<4x256xf32>
    %363 = vector.extract_strided_slice %283 {offsets = [0, 13], sizes = [4, 1], strides = [1, 1]} : vector<4x32xf32> to vector<4x1xf32>
    %364 = vector.extract_strided_slice %282 {offsets = [13, 0], sizes = [1, 256], strides = [1, 1]} : vector<32x256xf32> to vector<1x256xf32>
    %365 = vector.broadcast %363 : vector<4x1xf32> to vector<4x256xf32>
    %366 = vector.broadcast %364 : vector<1x256xf32> to vector<4x256xf32>
    %367 = arith.mulf %365, %366 : vector<4x256xf32>
    %368 = arith.addf %362, %367 : vector<4x256xf32>
    %369 = vector.extract_strided_slice %283 {offsets = [0, 14], sizes = [4, 1], strides = [1, 1]} : vector<4x32xf32> to vector<4x1xf32>
    %370 = vector.extract_strided_slice %282 {offsets = [14, 0], sizes = [1, 256], strides = [1, 1]} : vector<32x256xf32> to vector<1x256xf32>
    %371 = vector.broadcast %369 : vector<4x1xf32> to vector<4x256xf32>
    %372 = vector.broadcast %370 : vector<1x256xf32> to vector<4x256xf32>
    %373 = arith.mulf %371, %372 : vector<4x256xf32>
    %374 = arith.addf %368, %373 : vector<4x256xf32>
    %375 = vector.extract_strided_slice %283 {offsets = [0, 15], sizes = [4, 1], strides = [1, 1]} : vector<4x32xf32> to vector<4x1xf32>
    %376 = vector.extract_strided_slice %282 {offsets = [15, 0], sizes = [1, 256], strides = [1, 1]} : vector<32x256xf32> to vector<1x256xf32>
    %377 = vector.broadcast %375 : vector<4x1xf32> to vector<4x256xf32>
    %378 = vector.broadcast %376 : vector<1x256xf32> to vector<4x256xf32>
    %379 = arith.mulf %377, %378 : vector<4x256xf32>
    %380 = arith.addf %374, %379 : vector<4x256xf32>
    %381 = vector.extract_strided_slice %283 {offsets = [0, 16], sizes = [4, 1], strides = [1, 1]} : vector<4x32xf32> to vector<4x1xf32>
    %382 = vector.extract_strided_slice %282 {offsets = [16, 0], sizes = [1, 256], strides = [1, 1]} : vector<32x256xf32> to vector<1x256xf32>
    %383 = vector.broadcast %381 : vector<4x1xf32> to vector<4x256xf32>
    %384 = vector.broadcast %382 : vector<1x256xf32> to vector<4x256xf32>
    %385 = arith.mulf %383, %384 : vector<4x256xf32>
    %386 = arith.addf %380, %385 : vector<4x256xf32>
    %387 = vector.extract_strided_slice %283 {offsets = [0, 17], sizes = [4, 1], strides = [1, 1]} : vector<4x32xf32> to vector<4x1xf32>
    %388 = vector.extract_strided_slice %282 {offsets = [17, 0], sizes = [1, 256], strides = [1, 1]} : vector<32x256xf32> to vector<1x256xf32>
    %389 = vector.broadcast %387 : vector<4x1xf32> to vector<4x256xf32>
    %390 = vector.broadcast %388 : vector<1x256xf32> to vector<4x256xf32>
    %391 = arith.mulf %389, %390 : vector<4x256xf32>
    %392 = arith.addf %386, %391 : vector<4x256xf32>
    %393 = vector.extract_strided_slice %283 {offsets = [0, 18], sizes = [4, 1], strides = [1, 1]} : vector<4x32xf32> to vector<4x1xf32>
    %394 = vector.extract_strided_slice %282 {offsets = [18, 0], sizes = [1, 256], strides = [1, 1]} : vector<32x256xf32> to vector<1x256xf32>
    %395 = vector.broadcast %393 : vector<4x1xf32> to vector<4x256xf32>
    %396 = vector.broadcast %394 : vector<1x256xf32> to vector<4x256xf32>
    %397 = arith.mulf %395, %396 : vector<4x256xf32>
    %398 = arith.addf %392, %397 : vector<4x256xf32>
    %399 = vector.extract_strided_slice %283 {offsets = [0, 19], sizes = [4, 1], strides = [1, 1]} : vector<4x32xf32> to vector<4x1xf32>
    %400 = vector.extract_strided_slice %282 {offsets = [19, 0], sizes = [1, 256], strides = [1, 1]} : vector<32x256xf32> to vector<1x256xf32>
    %401 = vector.broadcast %399 : vector<4x1xf32> to vector<4x256xf32>
    %402 = vector.broadcast %400 : vector<1x256xf32> to vector<4x256xf32>
    %403 = arith.mulf %401, %402 : vector<4x256xf32>
    %404 = arith.addf %398, %403 : vector<4x256xf32>
    %405 = vector.extract_strided_slice %283 {offsets = [0, 20], sizes = [4, 1], strides = [1, 1]} : vector<4x32xf32> to vector<4x1xf32>
    %406 = vector.extract_strided_slice %282 {offsets = [20, 0], sizes = [1, 256], strides = [1, 1]} : vector<32x256xf32> to vector<1x256xf32>
    %407 = vector.broadcast %405 : vector<4x1xf32> to vector<4x256xf32>
    %408 = vector.broadcast %406 : vector<1x256xf32> to vector<4x256xf32>
    %409 = arith.mulf %407, %408 : vector<4x256xf32>
    %410 = arith.addf %404, %409 : vector<4x256xf32>
    %411 = vector.extract_strided_slice %283 {offsets = [0, 21], sizes = [4, 1], strides = [1, 1]} : vector<4x32xf32> to vector<4x1xf32>
    %412 = vector.extract_strided_slice %282 {offsets = [21, 0], sizes = [1, 256], strides = [1, 1]} : vector<32x256xf32> to vector<1x256xf32>
    %413 = vector.broadcast %411 : vector<4x1xf32> to vector<4x256xf32>
    %414 = vector.broadcast %412 : vector<1x256xf32> to vector<4x256xf32>
    %415 = arith.mulf %413, %414 : vector<4x256xf32>
    %416 = arith.addf %410, %415 : vector<4x256xf32>
    %417 = vector.extract_strided_slice %283 {offsets = [0, 22], sizes = [4, 1], strides = [1, 1]} : vector<4x32xf32> to vector<4x1xf32>
    %418 = vector.extract_strided_slice %282 {offsets = [22, 0], sizes = [1, 256], strides = [1, 1]} : vector<32x256xf32> to vector<1x256xf32>
    %419 = vector.broadcast %417 : vector<4x1xf32> to vector<4x256xf32>
    %420 = vector.broadcast %418 : vector<1x256xf32> to vector<4x256xf32>
    %421 = arith.mulf %419, %420 : vector<4x256xf32>
    %422 = arith.addf %416, %421 : vector<4x256xf32>
    %423 = vector.extract_strided_slice %283 {offsets = [0, 23], sizes = [4, 1], strides = [1, 1]} : vector<4x32xf32> to vector<4x1xf32>
    %424 = vector.extract_strided_slice %282 {offsets = [23, 0], sizes = [1, 256], strides = [1, 1]} : vector<32x256xf32> to vector<1x256xf32>
    %425 = vector.broadcast %423 : vector<4x1xf32> to vector<4x256xf32>
    %426 = vector.broadcast %424 : vector<1x256xf32> to vector<4x256xf32>
    %427 = arith.mulf %425, %426 : vector<4x256xf32>
    %428 = arith.addf %422, %427 : vector<4x256xf32>
    %429 = vector.extract_strided_slice %283 {offsets = [0, 24], sizes = [4, 1], strides = [1, 1]} : vector<4x32xf32> to vector<4x1xf32>
    %430 = vector.extract_strided_slice %282 {offsets = [24, 0], sizes = [1, 256], strides = [1, 1]} : vector<32x256xf32> to vector<1x256xf32>
    %431 = vector.broadcast %429 : vector<4x1xf32> to vector<4x256xf32>
    %432 = vector.broadcast %430 : vector<1x256xf32> to vector<4x256xf32>
    %433 = arith.mulf %431, %432 : vector<4x256xf32>
    %434 = arith.addf %428, %433 : vector<4x256xf32>
    %435 = vector.extract_strided_slice %283 {offsets = [0, 25], sizes = [4, 1], strides = [1, 1]} : vector<4x32xf32> to vector<4x1xf32>
    %436 = vector.extract_strided_slice %282 {offsets = [25, 0], sizes = [1, 256], strides = [1, 1]} : vector<32x256xf32> to vector<1x256xf32>
    %437 = vector.broadcast %435 : vector<4x1xf32> to vector<4x256xf32>
    %438 = vector.broadcast %436 : vector<1x256xf32> to vector<4x256xf32>
    %439 = arith.mulf %437, %438 : vector<4x256xf32>
    %440 = arith.addf %434, %439 : vector<4x256xf32>
    %441 = vector.extract_strided_slice %283 {offsets = [0, 26], sizes = [4, 1], strides = [1, 1]} : vector<4x32xf32> to vector<4x1xf32>
    %442 = vector.extract_strided_slice %282 {offsets = [26, 0], sizes = [1, 256], strides = [1, 1]} : vector<32x256xf32> to vector<1x256xf32>
    %443 = vector.broadcast %441 : vector<4x1xf32> to vector<4x256xf32>
    %444 = vector.broadcast %442 : vector<1x256xf32> to vector<4x256xf32>
    %445 = arith.mulf %443, %444 : vector<4x256xf32>
    %446 = arith.addf %440, %445 : vector<4x256xf32>
    %447 = vector.extract_strided_slice %283 {offsets = [0, 27], sizes = [4, 1], strides = [1, 1]} : vector<4x32xf32> to vector<4x1xf32>
    %448 = vector.extract_strided_slice %282 {offsets = [27, 0], sizes = [1, 256], strides = [1, 1]} : vector<32x256xf32> to vector<1x256xf32>
    %449 = vector.broadcast %447 : vector<4x1xf32> to vector<4x256xf32>
    %450 = vector.broadcast %448 : vector<1x256xf32> to vector<4x256xf32>
    %451 = arith.mulf %449, %450 : vector<4x256xf32>
    %452 = arith.addf %446, %451 : vector<4x256xf32>
    %453 = vector.extract_strided_slice %283 {offsets = [0, 28], sizes = [4, 1], strides = [1, 1]} : vector<4x32xf32> to vector<4x1xf32>
    %454 = vector.extract_strided_slice %282 {offsets = [28, 0], sizes = [1, 256], strides = [1, 1]} : vector<32x256xf32> to vector<1x256xf32>
    %455 = vector.broadcast %453 : vector<4x1xf32> to vector<4x256xf32>
    %456 = vector.broadcast %454 : vector<1x256xf32> to vector<4x256xf32>
    %457 = arith.mulf %455, %456 : vector<4x256xf32>
    %458 = arith.addf %452, %457 : vector<4x256xf32>
    %459 = vector.extract_strided_slice %283 {offsets = [0, 29], sizes = [4, 1], strides = [1, 1]} : vector<4x32xf32> to vector<4x1xf32>
    %460 = vector.extract_strided_slice %282 {offsets = [29, 0], sizes = [1, 256], strides = [1, 1]} : vector<32x256xf32> to vector<1x256xf32>
    %461 = vector.broadcast %459 : vector<4x1xf32> to vector<4x256xf32>
    %462 = vector.broadcast %460 : vector<1x256xf32> to vector<4x256xf32>
    %463 = arith.mulf %461, %462 : vector<4x256xf32>
    %464 = arith.addf %458, %463 : vector<4x256xf32>
    %465 = vector.extract_strided_slice %283 {offsets = [0, 30], sizes = [4, 1], strides = [1, 1]} : vector<4x32xf32> to vector<4x1xf32>
    %466 = vector.extract_strided_slice %282 {offsets = [30, 0], sizes = [1, 256], strides = [1, 1]} : vector<32x256xf32> to vector<1x256xf32>
    %467 = vector.broadcast %465 : vector<4x1xf32> to vector<4x256xf32>
    %468 = vector.broadcast %466 : vector<1x256xf32> to vector<4x256xf32>
    %469 = arith.mulf %467, %468 : vector<4x256xf32>
    %470 = arith.addf %464, %469 : vector<4x256xf32>
    %471 = vector.extract_strided_slice %283 {offsets = [0, 31], sizes = [4, 1], strides = [1, 1]} : vector<4x32xf32> to vector<4x1xf32>
    %472 = vector.extract_strided_slice %282 {offsets = [31, 0], sizes = [1, 256], strides = [1, 1]} : vector<32x256xf32> to vector<1x256xf32>
    %473 = vector.broadcast %471 : vector<4x1xf32> to vector<4x256xf32>
    %474 = vector.broadcast %472 : vector<1x256xf32> to vector<4x256xf32>
    %475 = arith.mulf %473, %474 : vector<4x256xf32>
    %476 = arith.addf %470, %475 : vector<4x256xf32>
    %477 = arith.addf %1, %476 : vector<4x256xf32>
    %c0_63 = arith.constant 0 : index
    %c0_64 = arith.constant 0 : index
    %478 = vector.load %arg5[%c0_63, %c0_64] : memref<4x1xf32, #tpu.memory_space<vmem>>, vector<4x1xf32>
    %479 = vector.broadcast %478 : vector<4x1xf32> to vector<4x256xf32>
    %480 = arith.addf %477, %479 : vector<4x256xf32>
    %c0_65 = arith.constant 0 : index
    %c0_66 = arith.constant 0 : index
    %c0_67 = arith.constant 0 : index
    %481 = vector.load %arg7[%c0_65, %c0_66, %c0_67] : memref<1x4x256xf32, #tpu.memory_space<vmem>>, vector<1x4x256xf32>
    %482 = vector.shape_cast %481 : vector<1x4x256xf32> to vector<4x256xf32>
    %483 = vector.shape_cast %480 : vector<4x256xf32> to vector<1x4x256xf32>
    tpu.vector_store %arg7[%c0_65, %c0_66, %c0_67], %483 {strides = array<i32>} : memref<1x4x256xf32, #tpu.memory_space<vmem>>, vector<1x4x256xf32>,
    return
  }
  func.func @transform_0(%arg0: i32) -> (i32, i32, i32) {
    %c0_i32 = arith.constant 0 : i32
    %c0_i32_0 = arith.constant 0 : i32
    %c0_i32_1 = arith.constant 0 : i32
    return %arg0, %c0_i32, %c0_i32_0 : i32, i32, i32
  }
  func.func @transform_1(%arg0: i32) -> (i32, i32, i32) {
    %c0_i32 = arith.constant 0 : i32
    %c0_i32_0 = arith.constant 0 : i32
    %c0_i32_1 = arith.constant 0 : i32
    %c0_i32_2 = arith.constant 0 : i32
    return %c0_i32, %c0_i32_0, %c0_i32_1 : i32, i32, i32
  }
  func.func @transform_2(%arg0: i32) -> (i32, i32) {
    %c0_i32 = arith.constant 0 : i32
    %c0_i32_0 = arith.constant 0 : i32
    %c0_i32_1 = arith.constant 0 : i32
    return %c0_i32, %c0_i32_0 : i32, i32
  }
  func.func @transform_3(%arg0: i32) -> (i32, i32) {
    %c0_i32 = arith.constant 0 : i32
    %c0_i32_0 = arith.constant 0 : i32
    %c0_i32_1 = arith.constant 0 : i32
    return %c0_i32, %c0_i32_0 : i32, i32
  }
  func.func @transform_4(%arg0: i32) -> (i32, i32) {
    %c0_i32 = arith.constant 0 : i32
    %c0_i32_0 = arith.constant 0 : i32
    %c0_i32_1 = arith.constant 0 : i32
    return %c0_i32, %c0_i32_0 : i32, i32
  }
  func.func @transform_5(%arg0: i32) -> (i32, i32) {
    %c0_i32 = arith.constant 0 : i32
    %c0_i32_0 = arith.constant 0 : i32
    %c0_i32_1 = arith.constant 0 : i32
    return %c0_i32, %c0_i32_0 : i32, i32
  }
  func.func @transform_6(%arg0: i32) -> (i32, i32, i32) {
    %c0_i32 = arith.constant 0 : i32
    %c0_i32_0 = arith.constant 0 : i32
    %c0_i32_1 = arith.constant 0 : i32
    return %arg0, %c0_i32, %c0_i32_0 : i32, i32, i32
  }
}

</mosaic_0001>

<llo_original>
// kernel: tpu_custom_call.1
$region0: #{tpu_custom_call.1}
  #allocation0 [shape = 'u32[]', space=smem, size = 0x4, offset = 0x4, fixed_abs, tag = 'smem constant byte address 0x4 - core index']
  #allocation1 [shape = 'u32[144,128]{1,0:T(1,128)}', space=vmem, size = 0x12000, scoped, tag = 'internal scratch']
  #allocation2 [shape = 'f32[4,290]{1,0:T(4,128)}', space=vmem, size = 0x1800, scoped, tag = 'scratch operand']
  %s0 = inlined_call_operand.vmem [shape: f32[2,4,256], index: 0, kind: input, shape index: {}]
  %s1 = inlined_call_operand.vmem [shape: f32[9,32,4], index: 1, kind: input, shape index: {}]
  %s2 = inlined_call_operand.vmem [shape: f32[32,1], index: 2, kind: input, shape index: {}]
  %s3 = inlined_call_operand.vmem [shape: f32[4,32], index: 3, kind: input, shape index: {}]
  %s4 = inlined_call_operand.vmem [shape: f32[4,1], index: 4, kind: input, shape index: {}]
  %s5 = inlined_call_operand.vmem [shape: f32[9,256], index: 5, kind: input, shape index: {}]
  %s6 = inlined_call_operand.hbm [shape: f32[2,4,256], index: 6, kind: output, shape index: {}]
  %s7 = sld [smem:[#allocation0]]
  $region57: #{tpu_custom_call.1} parent=0
    _
  %s9 = ssub.s32 1, %s7
  %s10 = scalar_select 0, %s9, %s7
  $region1: #{tpu_custom_call.1} parent=0
    #allocation3 [shape = 'u8[8192]{0}', space=vmem, size = 0x2000, scoped, tag = 'output window, operand 0']
    #allocation4 [shape = 's32[2]{0}', space=sflag, size = 0x8, scoped, tag = 'scoped memory for tpu_custom_call.1']
    %11 = vsyncpa [#allocation4], 0
    %s12 = scalar_lea.sflag [#allocation4], 1
    %13 = vsyncpa %s12, 0
    loop: start=0, step=1, limit=4
    $region2: #{tpu_custom_call.1} parent=1 // loop_pre_header
      _
    $region3: #{tpu_custom_call.1} parent=1 // loop_header
      %s15 = sphi 0, %s19
      %p16 = scmp.ge.s32.totalorder %s15, 4
      %s25 = sphi 0, %s27
      %s28 = sphi 0, %s25
      %s29 = sphi 0, %s28
      %s45 = sphi 0, %s29
      %s49 = sphi 0, %s49
      %s51 = sphi 0, %s49
      %s52 = sphi 0, %s51
      %s66 = sphi 0, %s52
      %s70 = sphi 0, %s70
      %s72 = sphi 0, %s70
      %s73 = sphi 0, %s72
      %s87 = sphi 0, %s73
      %s91 = sphi 0, %s91
      %s93 = sphi 0, %s91
      %s94 = sphi 0, %s93
      %s108 = sphi 0, %s94
      %s112 = sphi 0, %s112
      %s114 = sphi 0, %s112
      %s115 = sphi 0, %s114
      %s129 = sphi 0, %s115
      %s133 = sphi 0, %s133
      %s135 = sphi 0, %s133
      %s136 = sphi 0, %s135
      %s150 = sphi 0, %s136
      %s156 = sphi 0, %s158
      %s159 = sphi 0, %s156
      %s160 = sphi 0, %s159
      %s176 = sphi 0, %s160
    $region4: #{tpu_custom_call.1} parent=1 // loop_header_branch
      %18 = sbr.rel (%p16) target = $region8
    $region5: #{tpu_custom_call.1} parent=1 // loop_body
      %s20 = ssub.s32 %s15, 1
      %s21 = ssub.s32 %s15, 2
      %s22 = sadd.s32 %s15, 1
      %s23 = ssub.s32 %s15, %s22
      %p24 = scmp.eq.s32.totalorder %s23, 0
      %s26 = sadd.s32 %s25, 1
      %s27 = scalar_select %p24, %s25, %s26
      %p30 = pneg %p24
      %p31 = scmp.eq.s32.totalorder %s15, 1
      %p32 = por %p30, %p31
      %p33 = scmp.ne.s32.totalorder %s25, %s28
      %p34 = scmp.eq.s32.totalorder %s15, 0
      %p35 = por %p33, %p34
      %p36 = scmp.ne.s32.totalorder %s25, %s28
      %p37 = scmp.eq.s32.totalorder %s20, 1
      %p38 = por %p36, %p37
      %p39 = scmp.ne.s32.totalorder %s28, %s29
      %p40 = scmp.eq.s32.totalorder %s20, 0
      %p41 = por %p39, %p40
      %p42 = scmp.ne.s32.totalorder %s28, %s29
      %p43 = scmp.eq.s32.totalorder %s21, 1
      %p44 = por %p42, %p43
      %p46 = scmp.ne.s32.totalorder %s29, %s45
      %p47 = scmp.eq.s32.totalorder %s21, 0
      %p48 = por %p46, %p47
      %s50 = sadd.s32 %s49, 1
      %p53 = scmp.eq.s32.totalorder %s15, 1
      %p54 = scmp.ne.s32.totalorder %s49, %s51
      %p55 = scmp.eq.s32.totalorder %s15, 0
      %p56 = por %p54, %p55
      %p57 = scmp.ne.s32.totalorder %s49, %s51
      %p58 = scmp.eq.s32.totalorder %s20, 1
      %p59 = por %p57, %p58
      %p60 = scmp.ne.s32.totalorder %s51, %s52
      %p61 = scmp.eq.s32.totalorder %s20, 0
      %p62 = por %p60, %p61
      %p63 = scmp.ne.s32.totalorder %s51, %s52
      %p64 = scmp.eq.s32.totalorder %s21, 1
      %p65 = por %p63, %p64
      %p67 = scmp.ne.s32.totalorder %s52, %s66
      %p68 = scmp.eq.s32.totalorder %s21, 0
      %p69 = por %p67, %p68
      %s71 = sadd.s32 %s70, 1
      %p74 = scmp.eq.s32.totalorder %s15, 1
      %p75 = scmp.ne.s32.totalorder %s70, %s72
      %p76 = scmp.eq.s32.totalorder %s15, 0
      %p77 = por %p75, %p76
      %p78 = scmp.ne.s32.totalorder %s70, %s72
      %p79 = scmp.eq.s32.totalorder %s20, 1
      %p80 = por %p78, %p79
      %p81 = scmp.ne.s32.totalorder %s72, %s73
      %p82 = scmp.eq.s32.totalorder %s20, 0
      %p83 = por %p81, %p82
      %p84 = scmp.ne.s32.totalorder %s72, %s73
      %p85 = scmp.eq.s32.totalorder %s21, 1
      %p86 = por %p84, %p85
      %p88 = scmp.ne.s32.totalorder %s73, %s87
      %p89 = scmp.eq.s32.totalorder %s21, 0
      %p90 = por %p88, %p89
      %s92 = sadd.s32 %s91, 1
      %p95 = scmp.eq.s32.totalorder %s15, 1
      %p96 = scmp.ne.s32.totalorder %s91, %s93
      %p97 = scmp.eq.s32.totalorder %s15, 0
      %p98 = por %p96, %p97
      %p99 = scmp.ne.s32.totalorder %s91, %s93
      %p100 = scmp.eq.s32.totalorder %s20, 1
      %p101 = por %p99, %p100
      %p102 = scmp.ne.s32.totalorder %s93, %s94
      %p103 = scmp.eq.s32.totalorder %s20, 0
      %p104 = por %p102, %p103
      %p105 = scmp.ne.s32.totalorder %s93, %s94
      %p106 = scmp.eq.s32.totalorder %s21, 1
      %p107 = por %p105, %p106
      %p109 = scmp.ne.s32.totalorder %s94, %s108
      %p110 = scmp.eq.s32.totalorder %s21, 0
      %p111 = por %p109, %p110
      %s113 = sadd.s32 %s112, 1
      %p116 = scmp.eq.s32.totalorder %s15, 1
      %p117 = scmp.ne.s32.totalorder %s112, %s114
      %p118 = scmp.eq.s32.totalorder %s15, 0
      %p119 = por %p117, %p118
      %p120 = scmp.ne.s32.totalorder %s112, %s114
      %p121 = scmp.eq.s32.totalorder %s20, 1
      %p122 = por %p120, %p121
      %p123 = scmp.ne.s32.totalorder %s114, %s115
      %p124 = scmp.eq.s32.totalorder %s20, 0
      %p125 = por %p123, %p124
      %p126 = scmp.ne.s32.totalorder %s114, %s115
      %p127 = scmp.eq.s32.totalorder %s21, 1
      %p128 = por %p126, %p127
      %p130 = scmp.ne.s32.totalorder %s115, %s129
      %p131 = scmp.eq.s32.totalorder %s21, 0
      %p132 = por %p130, %p131
      %s134 = sadd.s32 %s133, 1
      %p137 = scmp.eq.s32.totalorder %s15, 1
      %p138 = scmp.ne.s32.totalorder %s133, %s135
      %p139 = scmp.eq.s32.totalorder %s15, 0
      %p140 = por %p138, %p139
      %p141 = scmp.ne.s32.totalorder %s133, %s135
      %p142 = scmp.eq.s32.totalorder %s20, 1
      %p143 = por %p141, %p142
      %p144 = scmp.ne.s32.totalorder %s135, %s136
      %p145 = scmp.eq.s32.totalorder %s20, 0
      %p146 = por %p144, %p145
      %p147 = scmp.ne.s32.totalorder %s135, %s136
      %p148 = scmp.eq.s32.totalorder %s21, 1
      %p149 = por %p147, %p148
      %p151 = scmp.ne.s32.totalorder %s136, %s150
      %p152 = scmp.eq.s32.totalorder %s21, 0
      %p153 = por %p151, %p152
      %s154 = ssub.s32 %s15, %s22
      %p155 = scmp.eq.s32.totalorder %s154, 0
      %s157 = sadd.s32 %s156, 1
      %s158 = scalar_select %p155, %s156, %s157
      %p161 = pneg %p155
      %p162 = scmp.eq.s32.totalorder %s15, 1
      %p163 = por %p161, %p162
      %p164 = scmp.ne.s32.totalorder %s156, %s159
      %p165 = scmp.eq.s32.totalorder %s15, 0
      %p166 = por %p164, %p165
      %p167 = scmp.ne.s32.totalorder %s156, %s159
      %p168 = scmp.eq.s32.totalorder %s20, 1
      %p169 = por %p167, %p168
      %p170 = scmp.ne.s32.totalorder %s159, %s160
      %p171 = scmp.eq.s32.totalorder %s20, 0
      %p172 = por %p170, %p171
      %p173 = scmp.ne.s32.totalorder %s159, %s160
      %p174 = scmp.eq.s32.totalorder %s21, 1
      %p175 = por %p173, %p174
      %p177 = scmp.ne.s32.totalorder %s160, %s176
      %p178 = scmp.eq.s32.totalorder %s21, 0
      %p179 = por %p177, %p178
      %p180 = scmp.le.s32.totalorder 1, %s15
      %p181 = scmp.lt.s32.totalorder %s15, 3
      %p182 = pnand %p180, %p181
      %p183 = pneg %p182
      // Predicated region
      $region9: #{tpu_custom_call.1} parent=5 // pred_check
        _
      $region10: #{tpu_custom_call.1} parent=5 // pred_check_branch
        %185 = sbr.rel (%p182) target = $region12
      $region11: #{tpu_custom_call.1} parent=5 // pred_region
        %s186 = ssub.s32 %s15, 1
        // Predicated region
        $region13: #{tpu_custom_call.1} parent=11 // pred_check
          %p187 = pneg %p62
        $region14: #{tpu_custom_call.1} parent=11 // pred_check_branch
          %189 = sbr.rel (%p187) target = $region16
        $region15: #{tpu_custom_call.1} parent=11 // pred_region
          _
        $region16: #{tpu_custom_call.1} parent=11 // pred_fallthru
          _
        // Predicated region
        $region17: #{tpu_custom_call.1} parent=11 // pred_check
          %p190 = pneg %p83
        $region18: #{tpu_custom_call.1} parent=11 // pred_check_branch
          %192 = sbr.rel (%p190) target = $region20
        $region19: #{tpu_custom_call.1} parent=11 // pred_region
          _
        $region20: #{tpu_custom_call.1} parent=11 // pred_fallthru
          _
        // Predicated region
        $region21: #{tpu_custom_call.1} parent=11 // pred_check
          %p193 = pneg %p104
        $region22: #{tpu_custom_call.1} parent=11 // pred_check_branch
          %195 = sbr.rel (%p193) target = $region24
        $region23: #{tpu_custom_call.1} parent=11 // pred_region
          _
        $region24: #{tpu_custom_call.1} parent=11 // pred_fallthru
          _
        // Predicated region
        $region25: #{tpu_custom_call.1} parent=11 // pred_check
          %p196 = pneg %p125
        $region26: #{tpu_custom_call.1} parent=11 // pred_check_branch
          %198 = sbr.rel (%p196) target = $region28
        $region27: #{tpu_custom_call.1} parent=11 // pred_region
          _
        $region28: #{tpu_custom_call.1} parent=11 // pred_fallthru
          _
        // Predicated region
        $region29: #{tpu_custom_call.1} parent=11 // pred_check
          %p199 = pneg %p146
        $region30: #{tpu_custom_call.1} parent=11 // pred_check_branch
          %201 = sbr.rel (%p199) target = $region32
        $region31: #{tpu_custom_call.1} parent=11 // pred_region
          _
        $region32: #{tpu_custom_call.1} parent=11 // pred_fallthru
          _
      $region12: #{tpu_custom_call.1} parent=5 // pred_fallthru
        _
      %p202 = scmp.lt.s32.totalorder %s15, 2
      // Predicated region
      $region33: #{tpu_custom_call.1} parent=5 // pred_check
        %p203 = pneg %p202
      $region34: #{tpu_custom_call.1} parent=5 // pred_check_branch
        %205 = sbr.rel (%p203) target = $region36
      $region35: #{tpu_custom_call.1} parent=5 // pred_region
        // Predicated region
        $region37: #{tpu_custom_call.1} parent=35 // pred_check
          %p206 = pneg %p35
        $region38: #{tpu_custom_call.1} parent=35 // pred_check_branch
          %208 = sbr.rel (%p206) target = $region40
        $region39: #{tpu_custom_call.1} parent=35 // pred_region
          %p209 = scmp.lt.s32.totalorder %s15, 1
          %s210 = scalar_select %p209, %s15, 1
          %s211 = smul.addr %s210, 2
          %s212 = smul.addr %s211, 4
          %s213 = scalar_lea.vmem %s0, %s212
        $region40: #{tpu_custom_call.1} parent=35 // pred_fallthru
          _
      $region36: #{tpu_custom_call.1} parent=5 // pred_fallthru
        _
      %p214 = scmp.le.s32.totalorder 1, %s15
      %p215 = scmp.lt.s32.totalorder %s15, 3
      %p216 = pnand %p214, %p215
      %p217 = pneg %p216
      // Predicated region
      $region41: #{tpu_custom_call.1} parent=5 // pred_check
        _
      $region42: #{tpu_custom_call.1} parent=5 // pred_check_branch
        %219 = sbr.rel (%p216) target = $region44
      $region43: #{tpu_custom_call.1} parent=5 // pred_region
        %s220 = ssub.s32 %s15, 1
        %p221 = scmp.lt.s32.totalorder %s20, 1
        %s222 = scalar_select %p221, %s20, 1
        %s223 = smul.addr %s222, 2
        %s224 = smul.addr %s223, 4
        %s225 = scalar_lea.vmem %s0, %s224
        %p226 = pneg %p41
        %p227 = pneg %p38
        %p228 = pneg %p62
        %p229 = pneg %p59
        %p230 = pneg %p83
        %p231 = pneg %p80
        %p232 = pneg %p104
        %p233 = pneg %p101
        %p234 = pneg %p125
        %p235 = pneg %p122
        %p236 = pneg %p146
        %p237 = pneg %p143
        %p238 = pneg %p172
        %p239 = pneg %p169
        %s240 = sand.u32 %s159, 1
        %s241 = scalar_lea.sflag [#allocation4], %s240
        %s242 = sand.u32 %s159, 1
        %s243 = smul.addr %s242, 8
        %s244 = scalar_lea.vmem [#allocation3], %s243
        %p245 = scmp.lt.s32.totalorder %s20, 1
        %s246 = scalar_select %p245, %s20, 1
        %s247 = smul.addr %s246, 2
        %s248 = smul.addr %s247, 4
        %s249 = scalar_lea.vmem %s0, %s248
        %v250 = vld [vmem:[%s249] sm:$0xff]
        %251 = vst [vmem:[#allocation2] sm:$0xff] 0.0
        %vm252 = vcmask 273408
        %253 = vst.msk [vmem:[#allocation2 + $0x8] sm:$0xf] %vm252, 0.0
        %v254 = vmax.f32 %v250, 0.0
        %256 = vrot.lane.b32.xlu0 %v254, 17
        %v257 = vpop.permute.xlu0 %256
        %v258 = vrot.slane %v257, 4
        %vm259 = vcmask 138240
        %v260 = vsel %vm259, %v258, %v257
        %vm263 = vcmask 1043592
        %vm264 = vcmask 1047556
        %vm265 = vmor %vm264, %vm263
        %266 = vst.msk [vmem:[#allocation2] sm:$0xff] %vm265, %v260
        %vm267 = vcmask 134144
        %268 = vst.msk [vmem:[#allocation2 + $0x8] sm:$0xf] %vm267, %v258
        %v269 = vld [vmem:[#allocation2] sm:$0xff]
        %v270 = vld [vmem:[%s5] ss:$8 sm:$0x3]
        %v272 = vlaneseq
        %v273 = vshrl.u32 %v272, 7
        %v274 = vsub.s32 0, %v273
        %v275 = vrot.slane %v270, %v274
        %v276 = vlaneseq
        %v277 = vshrl.u32 %v276, 7
        %v278 = vsub.s32 1, %v277
        %v279 = vrot.slane %v270, %v278
        %v280 = vcombine.low %v275, %v279
        %v282 = vmul.f32 %v269, %v280
        %v283 = vld [vmem:[%s1] sm:$0xff]
        %v284 = vld [vmem:[%s1 + $0x8] sm:$0xff]
        %v285 = vld [vmem:[%s1 + $0x10] sm:$0xff]
        %v286 = vld [vmem:[%s1 + $0x18] sm:$0xff]
        %288 = vset.pattern.permute.xlu0 0
        %289 = vperm.xlu0 %288, %v283
        %v290 = vpop.permute.xlu0 %289
        %293 = vset.pattern.permute.xlu0 0
        %294 = vperm.xlu0 %293, %v284
        %v295 = vpop.permute.xlu0 %294
        %298 = vset.pattern.permute.xlu0 0
        %299 = vperm.xlu0 %298, %v285
        %v300 = vpop.permute.xlu0 %299
        %303 = vset.pattern.permute.xlu0 0
        %304 = vperm.xlu0 %303, %v286
        %v305 = vpop.permute.xlu0 %304
        %v308 = vlaneseq
        %v309 = vshrl.u32 %v308, 7
        %v310 = vsub.s32 0, %v309
        %v311 = vrot.slane %v282, %v310
        %v312 = vlaneseq
        %v313 = vshrl.u32 %v312, 7
        %v314 = vsub.s32 4, %v313
        %v315 = vrot.slane %v282, %v314
        %v318 = vlaneseq
        %v319 = vshrl.u32 %v318, 7
        %v320 = vsub.s32 0, %v319
        %v321 = vrot.slane %v311, %v320
        %v322 = vlaneseq
        %v323 = vshrl.u32 %v322, 7
        %v324 = vsub.s32 0, %v323
        %v325 = vrot.slane %v315, %v324
        %v326 = vmul.f32 %v290, %v321
        %v327 = vmul.f32 %v290, %v325
        %v328 = vmul.f32 %v295, %v321
        %v329 = vmul.f32 %v295, %v325
        %v330 = vmul.f32 %v300, %v321
        %v331 = vmul.f32 %v300, %v325
        %v332 = vmul.f32 %v305, %v321
        %v333 = vmul.f32 %v305, %v325
        %v334 = vadd.f32 %v326, 0.0
        %v335 = vadd.f32 %v327, 0.0
        %v336 = vadd.f32 %v328, 0.0
        %v337 = vadd.f32 %v329, 0.0
        %v338 = vadd.f32 %v330, 0.0
        %v339 = vadd.f32 %v331, 0.0
        %v340 = vadd.f32 %v332, 0.0
        %v341 = vadd.f32 %v333, 0.0
        %342 = vset.pattern.permute.xlu0 1
        %343 = vperm.xlu0 %342, %v283
        %v344 = vpop.permute.xlu0 %343
        %346 = vset.pattern.permute.xlu0 1
        %347 = vperm.xlu0 %346, %v284
        %v348 = vpop.permute.xlu0 %347
        %350 = vset.pattern.permute.xlu0 1
        %351 = vperm.xlu0 %350, %v285
        %v352 = vpop.permute.xlu0 %351
        %354 = vset.pattern.permute.xlu0 1
        %355 = vperm.xlu0 %354, %v286
        %v356 = vpop.permute.xlu0 %355
        %v358 = vlaneseq
        %v359 = vshrl.u32 %v358, 7
        %v360 = vsub.s32 1, %v359
        %v361 = vrot.slane %v282, %v360
        %v362 = vlaneseq
        %v363 = vshrl.u32 %v362, 7
        %v364 = vsub.s32 5, %v363
        %v365 = vrot.slane %v282, %v364
        %v368 = vlaneseq
        %v369 = vshrl.u32 %v368, 7
        %v370 = vsub.s32 1, %v369
        %v371 = vrot.slane %v361, %v370
        %v372 = vlaneseq
        %v373 = vshrl.u32 %v372, 7
        %v374 = vsub.s32 1, %v373
        %v375 = vrot.slane %v365, %v374
        %v376 = vmul.f32 %v344, %v371
        %v377 = vmul.f32 %v344, %v375
        %v378 = vmul.f32 %v348, %v371
        %v379 = vmul.f32 %v348, %v375
        %v380 = vmul.f32 %v352, %v371
        %v381 = vmul.f32 %v352, %v375
        %v382 = vmul.f32 %v356, %v371
        %v383 = vmul.f32 %v356, %v375
        %v384 = vadd.f32 %v334, %v376
        %v385 = vadd.f32 %v335, %v377
        %v386 = vadd.f32 %v336, %v378
        %v387 = vadd.f32 %v337, %v379
        %v388 = vadd.f32 %v338, %v380
        %v389 = vadd.f32 %v339, %v381
        %v390 = vadd.f32 %v340, %v382
        %v391 = vadd.f32 %v341, %v383
        %392 = vset.pattern.permute.xlu0 2
        %393 = vperm.xlu0 %392, %v283
        %v394 = vpop.permute.xlu0 %393
        %396 = vset.pattern.permute.xlu0 2
        %397 = vperm.xlu0 %396, %v284
        %v398 = vpop.permute.xlu0 %397
        %400 = vset.pattern.permute.xlu0 2
        %401 = vperm.xlu0 %400, %v285
        %v402 = vpop.permute.xlu0 %401
        %404 = vset.pattern.permute.xlu0 2
        %405 = vperm.xlu0 %404, %v286
        %v406 = vpop.permute.xlu0 %405
        %v408 = vlaneseq
        %v409 = vshrl.u32 %v408, 7
        %v410 = vsub.s32 2, %v409
        %v411 = vrot.slane %v282, %v410
        %v412 = vlaneseq
        %v413 = vshrl.u32 %v412, 7
        %v414 = vsub.s32 6, %v413
        %v415 = vrot.slane %v282, %v414
        %v418 = vlaneseq
        %v419 = vshrl.u32 %v418, 7
        %v420 = vsub.s32 2, %v419
        %v421 = vrot.slane %v411, %v420
        %v422 = vlaneseq
        %v423 = vshrl.u32 %v422, 7
        %v424 = vsub.s32 2, %v423
        %v425 = vrot.slane %v415, %v424
        %v426 = vmul.f32 %v394, %v421
        %v427 = vmul.f32 %v394, %v425
        %v428 = vmul.f32 %v398, %v421
        %v429 = vmul.f32 %v398, %v425
        %v430 = vmul.f32 %v402, %v421
        %v431 = vmul.f32 %v402, %v425
        %v432 = vmul.f32 %v406, %v421
        %v433 = vmul.f32 %v406, %v425
        %v434 = vadd.f32 %v384, %v426
        %v435 = vadd.f32 %v385, %v427
        %v436 = vadd.f32 %v386, %v428
        %v437 = vadd.f32 %v387, %v429
        %v438 = vadd.f32 %v388, %v430
        %v439 = vadd.f32 %v389, %v431
        %v440 = vadd.f32 %v390, %v432
        %v441 = vadd.f32 %v391, %v433
        %442 = vset.pattern.permute.xlu0 3
        %443 = vperm.xlu0 %442, %v283
        %v444 = vpop.permute.xlu0 %443
        %446 = vset.pattern.permute.xlu0 3
        %447 = vperm.xlu0 %446, %v284
        %v448 = vpop.permute.xlu0 %447
        %450 = vset.pattern.permute.xlu0 3
        %451 = vperm.xlu0 %450, %v285
        %v452 = vpop.permute.xlu0 %451
        %454 = vset.pattern.permute.xlu0 3
        %455 = vperm.xlu0 %454, %v286
        %v456 = vpop.permute.xlu0 %455
        %v458 = vlaneseq
        %v459 = vshrl.u32 %v458, 7
        %v460 = vsub.s32 3, %v459
        %v461 = vrot.slane %v282, %v460
        %v462 = vlaneseq
        %v463 = vshrl.u32 %v462, 7
        %v464 = vsub.s32 7, %v463
        %v465 = vrot.slane %v282, %v464
        %v468 = vlaneseq
        %v469 = vshrl.u32 %v468, 7
        %v470 = vsub.s32 3, %v469
        %v471 = vrot.slane %v461, %v470
        %v472 = vlaneseq
        %v473 = vshrl.u32 %v472, 7
        %v474 = vsub.s32 3, %v473
        %v475 = vrot.slane %v465, %v474
        %v476 = vmul.f32 %v444, %v471
        %v477 = vmul.f32 %v444, %v475
        %v478 = vmul.f32 %v448, %v471
        %v479 = vmul.f32 %v448, %v475
        %v480 = vmul.f32 %v452, %v471
        %v481 = vmul.f32 %v452, %v475
        %v482 = vmul.f32 %v456, %v471
        %v483 = vmul.f32 %v456, %v475
        %v484 = vadd.f32 %v434, %v476
        %v485 = vadd.f32 %v435, %v477
        %v486 = vadd.f32 %v436, %v478
        %v487 = vadd.f32 %v437, %v479
        %v488 = vadd.f32 %v438, %v480
        %v489 = vadd.f32 %v439, %v481
        %v490 = vadd.f32 %v440, %v482
        %v491 = vadd.f32 %v441, %v483
        %v492 = vld [vmem:[#allocation2] sm:$0xff]
        %v493 = vld [vmem:[#allocation2 + $0x8] sm:$0xf]
        %s494 = scalar_lea.vmem %s5, 1
        %v495 = vld [vmem:[%s494] ss:$8 sm:$0x3]
        %v497 = vlaneseq
        %v498 = vshrl.u32 %v497, 7
        %v499 = vsub.s32 0, %v498
        %v500 = vrot.slane %v495, %v499
        %v501 = vlaneseq
        %v502 = vshrl.u32 %v501, 7
        %v503 = vsub.s32 1, %v502
        %v504 = vrot.slane %v495, %v503
        %v505 = vcombine.low %v500, %v504
        %506 = vrot.lane.b32.xlu0 %v505, 1
        %v507 = vpop.permute.xlu0 %506
        %v508 = vrot.slane %v507, 4
        %vm509 = vcmask 7168
        %v510 = vsel %vm509, %v508, %v507
        %v513 = vmul.f32 %v492, %v510
        %v514 = vmul.f32 %v493, %v508
        %s515 = scalar_lea.vmem %s1, 32
        %v516 = vld [vmem:[%s515] sm:$0xff]
        %v517 = vld [vmem:[%s515 + $0x8] sm:$0xff]
        %v518 = vld [vmem:[%s515 + $0x10] sm:$0xff]
        %v519 = vld [vmem:[%s515 + $0x18] sm:$0xff]
        %521 = vset.pattern.permute.xlu0 0
        %522 = vperm.xlu0 %521, %v516
        %v523 = vpop.permute.xlu0 %522
        %526 = vset.pattern.permute.xlu0 0
        %527 = vperm.xlu0 %526, %v517
        %v528 = vpop.permute.xlu0 %527
        %531 = vset.pattern.permute.xlu0 0
        %532 = vperm.xlu0 %531, %v518
        %v533 = vpop.permute.xlu0 %532
        %536 = vset.pattern.permute.xlu0 0
        %537 = vperm.xlu0 %536, %v519
        %v538 = vpop.permute.xlu0 %537
        %v542 = vlaneseq
        %v543 = vshrl.u32 %v542, 7
        %v544 = vsub.s32 0, %v543
        %v545 = vrot.slane %v513, %v544
        %v546 = vlaneseq
        %v547 = vshrl.u32 %v546, 7
        %v548 = vsub.s32 4, %v547
        %v549 = vrot.slane %v513, %v548
        %v550 = vlaneseq
        %v551 = vshrl.u32 %v550, 7
        %v552 = vsub.s32 0, %v551
        %v553 = vrot.slane %v514, %v552
        %v557 = vlaneseq
        %v558 = vshrl.u32 %v557, 7
        %v559 = vsub.s32 0, %v558
        %v560 = vrot.slane %v545, %v559
        %v561 = vlaneseq
        %v562 = vshrl.u32 %v561, 7
        %v563 = vsub.s32 0, %v562
        %v564 = vrot.slane %v549, %v563
        %v565 = vlaneseq
        %v566 = vshrl.u32 %v565, 7
        %v567 = vsub.s32 0, %v566
        %v568 = vrot.slane %v553, %v567
        %v569 = vmul.f32 %v523, %v560
        %v570 = vmul.f32 %v523, %v564
        %v571 = vmul.f32 %v523, %v568
        %v572 = vmul.f32 %v528, %v560
        %v573 = vmul.f32 %v528, %v564
        %v574 = vmul.f32 %v528, %v568
        %v575 = vmul.f32 %v533, %v560
        %v576 = vmul.f32 %v533, %v564
        %v577 = vmul.f32 %v533, %v568
        %v578 = vmul.f32 %v538, %v560
        %v579 = vmul.f32 %v538, %v564
        %v580 = vmul.f32 %v538, %v568
        %593 = vrot.lane.b32.xlu0 %v569, 127
        %v594 = vpop.permute.xlu0 %593
        %595 = vrot.lane.b32.xlu0 %v570, 127
        %v596 = vpop.permute.xlu0 %595
        %597 = vrot.lane.b32.xlu0 %v571, 127
        %v598 = vpop.permute.xlu0 %597
        %599 = vrot.lane.b32.xlu0 %v572, 127
        %v600 = vpop.permute.xlu0 %599
        %601 = vrot.lane.b32.xlu0 %v573, 127
        %v602 = vpop.permute.xlu0 %601
        %603 = vrot.lane.b32.xlu0 %v574, 127
        %v604 = vpop.permute.xlu0 %603
        %605 = vrot.lane.b32.xlu0 %v575, 127
        %v606 = vpop.permute.xlu0 %605
        %607 = vrot.lane.b32.xlu0 %v576, 127
        %v608 = vpop.permute.xlu0 %607
        %609 = vrot.lane.b32.xlu0 %v577, 127
        %v610 = vpop.permute.xlu0 %609
        %611 = vrot.lane.b32.xlu0 %v578, 127
        %v612 = vpop.permute.xlu0 %611
        %613 = vrot.lane.b32.xlu0 %v579, 127
        %v614 = vpop.permute.xlu0 %613
        %615 = vrot.lane.b32.xlu0 %v580, 127
        %v616 = vpop.permute.xlu0 %615
        %vm617 = vcmask 1039360
        %v618 = vsel %vm617, %v594, %v596
        %v619 = vsel %vm617, %v596, %v598
        %v620 = vsel %vm617, %v600, %v602
        %v621 = vsel %vm617, %v602, %v604
        %v622 = vsel %vm617, %v606, %v608
        %v623 = vsel %vm617, %v608, %v610
        %v624 = vsel %vm617, %v612, %v614
        %v625 = vsel %vm617, %v614, %v616
        %v634 = vadd.f32 %v484, %v618
        %v635 = vadd.f32 %v485, %v619
        %v636 = vadd.f32 %v486, %v620
        %v637 = vadd.f32 %v487, %v621
        %v638 = vadd.f32 %v488, %v622
        %v639 = vadd.f32 %v489, %v623
        %v640 = vadd.f32 %v490, %v624
        %v641 = vadd.f32 %v491, %v625
        %642 = vset.pattern.permute.xlu0 1
        %643 = vperm.xlu0 %642, %v516
        %v644 = vpop.permute.xlu0 %643
        %646 = vset.pattern.permute.xlu0 1
        %647 = vperm.xlu0 %646, %v517
        %v648 = vpop.permute.xlu0 %647
        %650 = vset.pattern.permute.xlu0 1
        %651 = vperm.xlu0 %650, %v518
        %v652 = vpop.permute.xlu0 %651
        %654 = vset.pattern.permute.xlu0 1
        %655 = vperm.xlu0 %654, %v519
        %v656 = vpop.permute.xlu0 %655
        %v658 = vlaneseq
        %v659 = vshrl.u32 %v658, 7
        %v660 = vsub.s32 1, %v659
        %v661 = vrot.slane %v513, %v660
        %v662 = vlaneseq
        %v663 = vshrl.u32 %v662, 7
        %v664 = vsub.s32 5, %v663
        %v665 = vrot.slane %v513, %v664
        %v666 = vlaneseq
        %v667 = vshrl.u32 %v666, 7
        %v668 = vsub.s32 1, %v667
        %v669 = vrot.slane %v514, %v668
        %v673 = vlaneseq
        %v674 = vshrl.u32 %v673, 7
        %v675 = vsub.s32 1, %v674
        %v676 = vrot.slane %v661, %v675
        %v677 = vlaneseq
        %v678 = vshrl.u32 %v677, 7
        %v679 = vsub.s32 1, %v678
        %v680 = vrot.slane %v665, %v679
        %v681 = vlaneseq
        %v682 = vshrl.u32 %v681, 7
        %v683 = vsub.s32 1, %v682
        %v684 = vrot.slane %v669, %v683
        %v685 = vmul.f32 %v644, %v676
        %v686 = vmul.f32 %v644, %v680
        %v687 = vmul.f32 %v644, %v684
        %v688 = vmul.f32 %v648, %v676
        %v689 = vmul.f32 %v648, %v680
        %v690 = vmul.f32 %v648, %v684
        %v691 = vmul.f32 %v652, %v676
        %v692 = vmul.f32 %v652, %v680
        %v693 = vmul.f32 %v652, %v684
        %v694 = vmul.f32 %v656, %v676
        %v695 = vmul.f32 %v656, %v680
        %v696 = vmul.f32 %v656, %v684
        %709 = vrot.lane.b32.xlu0 %v685, 127
        %v710 = vpop.permute.xlu0 %709
        %711 = vrot.lane.b32.xlu0 %v686, 127
        %v712 = vpop.permute.xlu0 %711
        %713 = vrot.lane.b32.xlu0 %v687, 127
        %v714 = vpop.permute.xlu0 %713
        %715 = vrot.lane.b32.xlu0 %v688, 127
        %v716 = vpop.permute.xlu0 %715
        %717 = vrot.lane.b32.xlu0 %v689, 127
        %v718 = vpop.permute.xlu0 %717
        %719 = vrot.lane.b32.xlu0 %v690, 127
        %v720 = vpop.permute.xlu0 %719
        %721 = vrot.lane.b32.xlu0 %v691, 127
        %v722 = vpop.permute.xlu0 %721
        %723 = vrot.lane.b32.xlu0 %v692, 127
        %v724 = vpop.permute.xlu0 %723
        %725 = vrot.lane.b32.xlu0 %v693, 127
        %v726 = vpop.permute.xlu0 %725
        %727 = vrot.lane.b32.xlu0 %v694, 127
        %v728 = vpop.permute.xlu0 %727
        %729 = vrot.lane.b32.xlu0 %v695, 127
        %v730 = vpop.permute.xlu0 %729
        %731 = vrot.lane.b32.xlu0 %v696, 127
        %v732 = vpop.permute.xlu0 %731
        %v733 = vsel %vm617, %v710, %v712
        %v734 = vsel %vm617, %v712, %v714
        %v735 = vsel %vm617, %v716, %v718
        %v736 = vsel %vm617, %v718, %v720
        %v737 = vsel %vm617, %v722, %v724
        %v738 = vsel %vm617, %v724, %v726
        %v739 = vsel %vm617, %v728, %v730
        %v740 = vsel %vm617, %v730, %v732
        %v749 = vadd.f32 %v634, %v733
        %v750 = vadd.f32 %v635, %v734
        %v751 = vadd.f32 %v636, %v735
        %v752 = vadd.f32 %v637, %v736
        %v753 = vadd.f32 %v638, %v737
        %v754 = vadd.f32 %v639, %v738
        %v755 = vadd.f32 %v640, %v739
        %v756 = vadd.f32 %v641, %v740
        %757 = vset.pattern.permute.xlu0 2
        %758 = vperm.xlu0 %757, %v516
        %v759 = vpop.permute.xlu0 %758
        %761 = vset.pattern.permute.xlu0 2
        %762 = vperm.xlu0 %761, %v517
        %v763 = vpop.permute.xlu0 %762
        %765 = vset.pattern.permute.xlu0 2
        %766 = vperm.xlu0 %765, %v518
        %v767 = vpop.permute.xlu0 %766
        %769 = vset.pattern.permute.xlu0 2
        %770 = vperm.xlu0 %769, %v519
        %v771 = vpop.permute.xlu0 %770
        %v773 = vlaneseq
        %v774 = vshrl.u32 %v773, 7
        %v775 = vsub.s32 2, %v774
        %v776 = vrot.slane %v513, %v775
        %v777 = vlaneseq
        %v778 = vshrl.u32 %v777, 7
        %v779 = vsub.s32 6, %v778
        %v780 = vrot.slane %v513, %v779
        %v781 = vlaneseq
        %v782 = vshrl.u32 %v781, 7
        %v783 = vsub.s32 2, %v782
        %v784 = vrot.slane %v514, %v783
        %v788 = vlaneseq
        %v789 = vshrl.u32 %v788, 7
        %v790 = vsub.s32 2, %v789
        %v791 = vrot.slane %v776, %v790
        %v792 = vlaneseq
        %v793 = vshrl.u32 %v792, 7
        %v794 = vsub.s32 2, %v793
        %v795 = vrot.slane %v780, %v794
        %v796 = vlaneseq
        %v797 = vshrl.u32 %v796, 7
        %v798 = vsub.s32 2, %v797
        %v799 = vrot.slane %v784, %v798
        %v800 = vmul.f32 %v759, %v791
        %v801 = vmul.f32 %v759, %v795
        %v802 = vmul.f32 %v759, %v799
        %v803 = vmul.f32 %v763, %v791
        %v804 = vmul.f32 %v763, %v795
        %v805 = vmul.f32 %v763, %v799
        %v806 = vmul.f32 %v767, %v791
        %v807 = vmul.f32 %v767, %v795
        %v808 = vmul.f32 %v767, %v799
        %v809 = vmul.f32 %v771, %v791
        %v810 = vmul.f32 %v771, %v795
        %v811 = vmul.f32 %v771, %v799
        %824 = vrot.lane.b32.xlu0 %v800, 127
        %v825 = vpop.permute.xlu0 %824
        %826 = vrot.lane.b32.xlu0 %v801, 127
        %v827 = vpop.permute.xlu0 %826
        %828 = vrot.lane.b32.xlu0 %v802, 127
        %v829 = vpop.permute.xlu0 %828
        %830 = vrot.lane.b32.xlu0 %v803, 127
        %v831 = vpop.permute.xlu0 %830
        %832 = vrot.lane.b32.xlu0 %v804, 127
        %v833 = vpop.permute.xlu0 %832
        %834 = vrot.lane.b32.xlu0 %v805, 127
        %v835 = vpop.permute.xlu0 %834
        %836 = vrot.lane.b32.xlu0 %v806, 127
        %v837 = vpop.permute.xlu0 %836
        %838 = vrot.lane.b32.xlu0 %v807, 127
        %v839 = vpop.permute.xlu0 %838
        %840 = vrot.lane.b32.xlu0 %v808, 127
        %v841 = vpop.permute.xlu0 %840
        %842 = vrot.lane.b32.xlu0 %v809, 127
        %v843 = vpop.permute.xlu0 %842
        %844 = vrot.lane.b32.xlu0 %v810, 127
        %v845 = vpop.permute.xlu0 %844
        %846 = vrot.lane.b32.xlu0 %v811, 127
        %v847 = vpop.permute.xlu0 %846
        %v848 = vsel %vm617, %v825, %v827
        %v849 = vsel %vm617, %v827, %v829
        %v850 = vsel %vm617, %v831, %v833
        %v851 = vsel %vm617, %v833, %v835
        %v852 = vsel %vm617, %v837, %v839
        %v853 = vsel %vm617, %v839, %v841
        %v854 = vsel %vm617, %v843, %v845
        %v855 = vsel %vm617, %v845, %v847
        %v864 = vadd.f32 %v749, %v848
        %v865 = vadd.f32 %v750, %v849
        %v866 = vadd.f32 %v751, %v850
        %v867 = vadd.f32 %v752, %v851
        %v868 = vadd.f32 %v753, %v852
        %v869 = vadd.f32 %v754, %v853
        %v870 = vadd.f32 %v755, %v854
        %v871 = vadd.f32 %v756, %v855
        %872 = vset.pattern.permute.xlu0 3
        %873 = vperm.xlu0 %872, %v516
        %v874 = vpop.permute.xlu0 %873
        %876 = vset.pattern.permute.xlu0 3
        %877 = vperm.xlu0 %876, %v517
        %v878 = vpop.permute.xlu0 %877
        %880 = vset.pattern.permute.xlu0 3
        %881 = vperm.xlu0 %880, %v518
        %v882 = vpop.permute.xlu0 %881
        %884 = vset.pattern.permute.xlu0 3
        %885 = vperm.xlu0 %884, %v519
        %v886 = vpop.permute.xlu0 %885
        %v888 = vlaneseq
        %v889 = vshrl.u32 %v888, 7
        %v890 = vsub.s32 3, %v889
        %v891 = vrot.slane %v513, %v890
        %v892 = vlaneseq
        %v893 = vshrl.u32 %v892, 7
        %v894 = vsub.s32 7, %v893
        %v895 = vrot.slane %v513, %v894
        %v896 = vlaneseq
        %v897 = vshrl.u32 %v896, 7
        %v898 = vsub.s32 3, %v897
        %v899 = vrot.slane %v514, %v898
        %v903 = vlaneseq
        %v904 = vshrl.u32 %v903, 7
        %v905 = vsub.s32 3, %v904
        %v906 = vrot.slane %v891, %v905
        %v907 = vlaneseq
        %v908 = vshrl.u32 %v907, 7
        %v909 = vsub.s32 3, %v908
        %v910 = vrot.slane %v895, %v909
        %v911 = vlaneseq
        %v912 = vshrl.u32 %v911, 7
        %v913 = vsub.s32 3, %v912
        %v914 = vrot.slane %v899, %v913
        %v915 = vmul.f32 %v874, %v906
        %v916 = vmul.f32 %v874, %v910
        %v917 = vmul.f32 %v874, %v914
        %v918 = vmul.f32 %v878, %v906
        %v919 = vmul.f32 %v878, %v910
        %v920 = vmul.f32 %v878, %v914
        %v921 = vmul.f32 %v882, %v906
        %v922 = vmul.f32 %v882, %v910
        %v923 = vmul.f32 %v882, %v914
        %v924 = vmul.f32 %v886, %v906
        %v925 = vmul.f32 %v886, %v910
        %v926 = vmul.f32 %v886, %v914
        %939 = vrot.lane.b32.xlu0 %v915, 127
        %v940 = vpop.permute.xlu0 %939
        %941 = vrot.lane.b32.xlu0 %v916, 127
        %v942 = vpop.permute.xlu0 %941
        %943 = vrot.lane.b32.xlu0 %v917, 127
        %v944 = vpop.permute.xlu0 %943
        %945 = vrot.lane.b32.xlu0 %v918, 127
        %v946 = vpop.permute.xlu0 %945
        %947 = vrot.lane.b32.xlu0 %v919, 127
        %v948 = vpop.permute.xlu0 %947
        %949 = vrot.lane.b32.xlu0 %v920, 127
        %v950 = vpop.permute.xlu0 %949
        %951 = vrot.lane.b32.xlu0 %v921, 127
        %v952 = vpop.permute.xlu0 %951
        %953 = vrot.lane.b32.xlu0 %v922, 127
        %v954 = vpop.permute.xlu0 %953
        %955 = vrot.lane.b32.xlu0 %v923, 127
        %v956 = vpop.permute.xlu0 %955
        %957 = vrot.lane.b32.xlu0 %v924, 127
        %v958 = vpop.permute.xlu0 %957
        %959 = vrot.lane.b32.xlu0 %v925, 127
        %v960 = vpop.permute.xlu0 %959
        %961 = vrot.lane.b32.xlu0 %v926, 127
        %v962 = vpop.permute.xlu0 %961
        %v963 = vsel %vm617, %v940, %v942
        %v964 = vsel %vm617, %v942, %v944
        %v965 = vsel %vm617, %v946, %v948
        %v966 = vsel %vm617, %v948, %v950
        %v967 = vsel %vm617, %v952, %v954
        %v968 = vsel %vm617, %v954, %v956
        %v969 = vsel %vm617, %v958, %v960
        %v970 = vsel %vm617, %v960, %v962
        %v979 = vadd.f32 %v864, %v963
        %v980 = vadd.f32 %v865, %v964
        %v981 = vadd.f32 %v866, %v965
        %v982 = vadd.f32 %v867, %v966
        %v983 = vadd.f32 %v868, %v967
        %v984 = vadd.f32 %v869, %v968
        %v985 = vadd.f32 %v870, %v969
        %v986 = vadd.f32 %v871, %v970
        %v987 = vld [vmem:[#allocation2] sm:$0xff]
        %v988 = vld [vmem:[#allocation2 + $0x8] sm:$0xf]
        %s989 = scalar_lea.vmem %s5, 2
        %v990 = vld [vmem:[%s989] ss:$8 sm:$0x3]
        %v992 = vlaneseq
        %v993 = vshrl.u32 %v992, 7
        %v994 = vsub.s32 0, %v993
        %v995 = vrot.slane %v990, %v994
        %v996 = vlaneseq
        %v997 = vshrl.u32 %v996, 7
        %v998 = vsub.s32 1, %v997
        %v999 = vrot.slane %v990, %v998
        %v1000 = vcombine.low %v995, %v999
        %1001 = vrot.lane.b32.xlu0 %v1000, 2
        %v1002 = vpop.permute.xlu0 %1001
        %v1003 = vrot.slane %v1002, 4
        %vm1004 = vcmask 15360
        %v1005 = vsel %vm1004, %v1003, %v1002
        %v1008 = vmul.f32 %v987, %v1005
        %v1009 = vmul.f32 %v988, %v1003
        %s1010 = scalar_lea.vmem %s1, 64
        %v1011 = vld [vmem:[%s1010] sm:$0xff]
        %v1012 = vld [vmem:[%s1010 + $0x8] sm:$0xff]
        %v1013 = vld [vmem:[%s1010 + $0x10] sm:$0xff]
        %v1014 = vld [vmem:[%s1010 + $0x18] sm:$0xff]
        %1016 = vset.pattern.permute.xlu0 0
        %1017 = vperm.xlu0 %1016, %v1011
        %v1018 = vpop.permute.xlu0 %1017
        %1021 = vset.pattern.permute.xlu0 0
        %1022 = vperm.xlu0 %1021, %v1012
        %v1023 = vpop.permute.xlu0 %1022
        %1026 = vset.pattern.permute.xlu0 0
        %1027 = vperm.xlu0 %1026, %v1013
        %v1028 = vpop.permute.xlu0 %1027
        %1031 = vset.pattern.permute.xlu0 0
        %1032 = vperm.xlu0 %1031, %v1014
        %v1033 = vpop.permute.xlu0 %1032
        %v1037 = vlaneseq
        %v1038 = vshrl.u32 %v1037, 7
        %v1039 = vsub.s32 0, %v1038
        %v1040 = vrot.slane %v1008, %v1039
        %v1041 = vlaneseq
        %v1042 = vshrl.u32 %v1041, 7
        %v1043 = vsub.s32 4, %v1042
        %v1044 = vrot.slane %v1008, %v1043
        %v1045 = vlaneseq
        %v1046 = vshrl.u32 %v1045, 7
        %v1047 = vsub.s32 0, %v1046
        %v1048 = vrot.slane %v1009, %v1047
        %v1052 = vlaneseq
        %v1053 = vshrl.u32 %v1052, 7
        %v1054 = vsub.s32 0, %v1053
        %v1055 = vrot.slane %v1040, %v1054
        %v1056 = vlaneseq
        %v1057 = vshrl.u32 %v1056, 7
        %v1058 = vsub.s32 0, %v1057
        %v1059 = vrot.slane %v1044, %v1058
        %v1060 = vlaneseq
        %v1061 = vshrl.u32 %v1060, 7
        %v1062 = vsub.s32 0, %v1061
        %v1063 = vrot.slane %v1048, %v1062
        %v1064 = vmul.f32 %v1018, %v1055
        %v1065 = vmul.f32 %v1018, %v1059
        %v1066 = vmul.f32 %v1018, %v1063
        %v1067 = vmul.f32 %v1023, %v1055
        %v1068 = vmul.f32 %v1023, %v1059
        %v1069 = vmul.f32 %v1023, %v1063
        %v1070 = vmul.f32 %v1028, %v1055
        %v1071 = vmul.f32 %v1028, %v1059
        %v1072 = vmul.f32 %v1028, %v1063
        %v1073 = vmul.f32 %v1033, %v1055
        %v1074 = vmul.f32 %v1033, %v1059
        %v1075 = vmul.f32 %v1033, %v1063
        %1088 = vrot.lane.b32.xlu0 %v1064, 126
        %v1089 = vpop.permute.xlu0 %1088
        %1090 = vrot.lane.b32.xlu0 %v1065, 126
        %v1091 = vpop.permute.xlu0 %1090
        %1092 = vrot.lane.b32.xlu0 %v1066, 126
        %v1093 = vpop.permute.xlu0 %1092
        %1094 = vrot.lane.b32.xlu0 %v1067, 126
        %v1095 = vpop.permute.xlu0 %1094
        %1096 = vrot.lane.b32.xlu0 %v1068, 126
        %v1097 = vpop.permute.xlu0 %1096
        %1098 = vrot.lane.b32.xlu0 %v1069, 126
        %v1099 = vpop.permute.xlu0 %1098
        %1100 = vrot.lane.b32.xlu0 %v1070, 126
        %v1101 = vpop.permute.xlu0 %1100
        %1102 = vrot.lane.b32.xlu0 %v1071, 126
        %v1103 = vpop.permute.xlu0 %1102
        %1104 = vrot.lane.b32.xlu0 %v1072, 126
        %v1105 = vpop.permute.xlu0 %1104
        %1106 = vrot.lane.b32.xlu0 %v1073, 126
        %v1107 = vpop.permute.xlu0 %1106
        %1108 = vrot.lane.b32.xlu0 %v1074, 126
        %v1109 = vpop.permute.xlu0 %1108
        %1110 = vrot.lane.b32.xlu0 %v1075, 126
        %v1111 = vpop.permute.xlu0 %1110
        %vm1112 = vcmask 1031168
        %v1113 = vsel %vm1112, %v1089, %v1091
        %v1114 = vsel %vm1112, %v1091, %v1093
        %v1115 = vsel %vm1112, %v1095, %v1097
        %v1116 = vsel %vm1112, %v1097, %v1099
        %v1117 = vsel %vm1112, %v1101, %v1103
        %v1118 = vsel %vm1112, %v1103, %v1105
        %v1119 = vsel %vm1112, %v1107, %v1109
        %v1120 = vsel %vm1112, %v1109, %v1111
        %v1129 = vadd.f32 %v979, %v1113
        %v1130 = vadd.f32 %v980, %v1114
        %v1131 = vadd.f32 %v981, %v1115
        %v1132 = vadd.f32 %v982, %v1116
        %v1133 = vadd.f32 %v983, %v1117
        %v1134 = vadd.f32 %v984, %v1118
        %v1135 = vadd.f32 %v985, %v1119
        %v1136 = vadd.f32 %v986, %v1120
        %1137 = vset.pattern.permute.xlu0 1
        %1138 = vperm.xlu0 %1137, %v1011
        %v1139 = vpop.permute.xlu0 %1138
        %1141 = vset.pattern.permute.xlu0 1
        %1142 = vperm.xlu0 %1141, %v1012
        %v1143 = vpop.permute.xlu0 %1142
        %1145 = vset.pattern.permute.xlu0 1
        %1146 = vperm.xlu0 %1145, %v1013
        %v1147 = vpop.permute.xlu0 %1146
        %1149 = vset.pattern.permute.xlu0 1
        %1150 = vperm.xlu0 %1149, %v1014
        %v1151 = vpop.permute.xlu0 %1150
        %v1153 = vlaneseq
        %v1154 = vshrl.u32 %v1153, 7
        %v1155 = vsub.s32 1, %v1154
        %v1156 = vrot.slane %v1008, %v1155
        %v1157 = vlaneseq
        %v1158 = vshrl.u32 %v1157, 7
        %v1159 = vsub.s32 5, %v1158
        %v1160 = vrot.slane %v1008, %v1159
        %v1161 = vlaneseq
        %v1162 = vshrl.u32 %v1161, 7
        %v1163 = vsub.s32 1, %v1162
        %v1164 = vrot.slane %v1009, %v1163
        %v1168 = vlaneseq
        %v1169 = vshrl.u32 %v1168, 7
        %v1170 = vsub.s32 1, %v1169
        %v1171 = vrot.slane %v1156, %v1170
        %v1172 = vlaneseq
        %v1173 = vshrl.u32 %v1172, 7
        %v1174 = vsub.s32 1, %v1173
        %v1175 = vrot.slane %v1160, %v1174
        %v1176 = vlaneseq
        %v1177 = vshrl.u32 %v1176, 7
        %v1178 = vsub.s32 1, %v1177
        %v1179 = vrot.slane %v1164, %v1178
        %v1180 = vmul.f32 %v1139, %v1171
        %v1181 = vmul.f32 %v1139, %v1175
        %v1182 = vmul.f32 %v1139, %v1179
        %v1183 = vmul.f32 %v1143, %v1171
        %v1184 = vmul.f32 %v1143, %v1175
        %v1185 = vmul.f32 %v1143, %v1179
        %v1186 = vmul.f32 %v1147, %v1171
        %v1187 = vmul.f32 %v1147, %v1175
        %v1188 = vmul.f32 %v1147, %v1179
        %v1189 = vmul.f32 %v1151, %v1171
        %v1190 = vmul.f32 %v1151, %v1175
        %v1191 = vmul.f32 %v1151, %v1179
        %1204 = vrot.lane.b32.xlu0 %v1180, 126
        %v1205 = vpop.permute.xlu0 %1204
        %1206 = vrot.lane.b32.xlu0 %v1181, 126
        %v1207 = vpop.permute.xlu0 %1206
        %1208 = vrot.lane.b32.xlu0 %v1182, 126
        %v1209 = vpop.permute.xlu0 %1208
        %1210 = vrot.lane.b32.xlu0 %v1183, 126
        %v1211 = vpop.permute.xlu0 %1210
        %1212 = vrot.lane.b32.xlu0 %v1184, 126
        %v1213 = vpop.permute.xlu0 %1212
        %1214 = vrot.lane.b32.xlu0 %v1185, 126
        %v1215 = vpop.permute.xlu0 %1214
        %1216 = vrot.lane.b32.xlu0 %v1186, 126
        %v1217 = vpop.permute.xlu0 %1216
        %1218 = vrot.lane.b32.xlu0 %v1187, 126
        %v1219 = vpop.permute.xlu0 %1218
        %1220 = vrot.lane.b32.xlu0 %v1188, 126
        %v1221 = vpop.permute.xlu0 %1220
        %1222 = vrot.lane.b32.xlu0 %v1189, 126
        %v1223 = vpop.permute.xlu0 %1222
        %1224 = vrot.lane.b32.xlu0 %v1190, 126
        %v1225 = vpop.permute.xlu0 %1224
        %1226 = vrot.lane.b32.xlu0 %v1191, 126
        %v1227 = vpop.permute.xlu0 %1226
        %v1228 = vsel %vm1112, %v1205, %v1207
        %v1229 = vsel %vm1112, %v1207, %v1209
        %v1230 = vsel %vm1112, %v1211, %v1213
        %v1231 = vsel %vm1112, %v1213, %v1215
        %v1232 = vsel %vm1112, %v1217, %v1219
        %v1233 = vsel %vm1112, %v1219, %v1221
        %v1234 = vsel %vm1112, %v1223, %v1225
        %v1235 = vsel %vm1112, %v1225, %v1227
        %v1244 = vadd.f32 %v1129, %v1228
        %v1245 = vadd.f32 %v1130, %v1229
        %v1246 = vadd.f32 %v1131, %v1230
        %v1247 = vadd.f32 %v1132, %v1231
        %v1248 = vadd.f32 %v1133, %v1232
        %v1249 = vadd.f32 %v1134, %v1233
        %v1250 = vadd.f32 %v1135, %v1234
        %v1251 = vadd.f32 %v1136, %v1235
        %1252 = vset.pattern.permute.xlu0 2
        %1253 = vperm.xlu0 %1252, %v1011
        %v1254 = vpop.permute.xlu0 %1253
        %1256 = vset.pattern.permute.xlu0 2
        %1257 = vperm.xlu0 %1256, %v1012
        %v1258 = vpop.permute.xlu0 %1257
        %1260 = vset.pattern.permute.xlu0 2
        %1261 = vperm.xlu0 %1260, %v1013
        %v1262 = vpop.permute.xlu0 %1261
        %1264 = vset.pattern.permute.xlu0 2
        %1265 = vperm.xlu0 %1264, %v1014
        %v1266 = vpop.permute.xlu0 %1265
        %v1268 = vlaneseq
        %v1269 = vshrl.u32 %v1268, 7
        %v1270 = vsub.s32 2, %v1269
        %v1271 = vrot.slane %v1008, %v1270
        %v1272 = vlaneseq
        %v1273 = vshrl.u32 %v1272, 7
        %v1274 = vsub.s32 6, %v1273
        %v1275 = vrot.slane %v1008, %v1274
        %v1276 = vlaneseq
        %v1277 = vshrl.u32 %v1276, 7
        %v1278 = vsub.s32 2, %v1277
        %v1279 = vrot.slane %v1009, %v1278
        %v1283 = vlaneseq
        %v1284 = vshrl.u32 %v1283, 7
        %v1285 = vsub.s32 2, %v1284
        %v1286 = vrot.slane %v1271, %v1285
        %v1287 = vlaneseq
        %v1288 = vshrl.u32 %v1287, 7
        %v1289 = vsub.s32 2, %v1288
        %v1290 = vrot.slane %v1275, %v1289
        %v1291 = vlaneseq
        %v1292 = vshrl.u32 %v1291, 7
        %v1293 = vsub.s32 2, %v1292
        %v1294 = vrot.slane %v1279, %v1293
        %v1295 = vmul.f32 %v1254, %v1286
        %v1296 = vmul.f32 %v1254, %v1290
        %v1297 = vmul.f32 %v1254, %v1294
        %v1298 = vmul.f32 %v1258, %v1286
        %v1299 = vmul.f32 %v1258, %v1290
        %v1300 = vmul.f32 %v1258, %v1294
        %v1301 = vmul.f32 %v1262, %v1286
        %v1302 = vmul.f32 %v1262, %v1290
        %v1303 = vmul.f32 %v1262, %v1294
        %v1304 = vmul.f32 %v1266, %v1286
        %v1305 = vmul.f32 %v1266, %v1290
        %v1306 = vmul.f32 %v1266, %v1294
        %1319 = vrot.lane.b32.xlu0 %v1295, 126
        %v1320 = vpop.permute.xlu0 %1319
        %1321 = vrot.lane.b32.xlu0 %v1296, 126
        %v1322 = vpop.permute.xlu0 %1321
        %1323 = vrot.lane.b32.xlu0 %v1297, 126
        %v1324 = vpop.permute.xlu0 %1323
        %1325 = vrot.lane.b32.xlu0 %v1298, 126
        %v1326 = vpop.permute.xlu0 %1325
        %1327 = vrot.lane.b32.xlu0 %v1299, 126
        %v1328 = vpop.permute.xlu0 %1327
        %1329 = vrot.lane.b32.xlu0 %v1300, 126
        %v1330 = vpop.permute.xlu0 %1329
        %1331 = vrot.lane.b32.xlu0 %v1301, 126
        %v1332 = vpop.permute.xlu0 %1331
        %1333 = vrot.lane.b32.xlu0 %v1302, 126
        %v1334 = vpop.permute.xlu0 %1333
        %1335 = vrot.lane.b32.xlu0 %v1303, 126
        %v1336 = vpop.permute.xlu0 %1335
        %1337 = vrot.lane.b32.xlu0 %v1304, 126
        %v1338 = vpop.permute.xlu0 %1337
        %1339 = vrot.lane.b32.xlu0 %v1305, 126
        %v1340 = vpop.permute.xlu0 %1339
        %1341 = vrot.lane.b32.xlu0 %v1306, 126
        %v1342 = vpop.permute.xlu0 %1341
        %v1343 = vsel %vm1112, %v1320, %v1322
        %v1344 = vsel %vm1112, %v1322, %v1324
        %v1345 = vsel %vm1112, %v1326, %v1328
        %v1346 = vsel %vm1112, %v1328, %v1330
        %v1347 = vsel %vm1112, %v1332, %v1334
        %v1348 = vsel %vm1112, %v1334, %v1336
        %v1349 = vsel %vm1112, %v1338, %v1340
        %v1350 = vsel %vm1112, %v1340, %v1342
        %v1359 = vadd.f32 %v1244, %v1343
        %v1360 = vadd.f32 %v1245, %v1344
        %v1361 = vadd.f32 %v1246, %v1345
        %v1362 = vadd.f32 %v1247, %v1346
        %v1363 = vadd.f32 %v1248, %v1347
        %v1364 = vadd.f32 %v1249, %v1348
        %v1365 = vadd.f32 %v1250, %v1349
        %v1366 = vadd.f32 %v1251, %v1350
        %1367 = vset.pattern.permute.xlu0 3
        %1368 = vperm.xlu0 %1367, %v1011
        %v1369 = vpop.permute.xlu0 %1368
        %1371 = vset.pattern.permute.xlu0 3
        %1372 = vperm.xlu0 %1371, %v1012
        %v1373 = vpop.permute.xlu0 %1372
        %1375 = vset.pattern.permute.xlu0 3
        %1376 = vperm.xlu0 %1375, %v1013
        %v1377 = vpop.permute.xlu0 %1376
        %1379 = vset.pattern.permute.xlu0 3
        %1380 = vperm.xlu0 %1379, %v1014
        %v1381 = vpop.permute.xlu0 %1380
        %v1383 = vlaneseq
        %v1384 = vshrl.u32 %v1383, 7
        %v1385 = vsub.s32 3, %v1384
        %v1386 = vrot.slane %v1008, %v1385
        %v1387 = vlaneseq
        %v1388 = vshrl.u32 %v1387, 7
        %v1389 = vsub.s32 7, %v1388
        %v1390 = vrot.slane %v1008, %v1389
        %v1391 = vlaneseq
        %v1392 = vshrl.u32 %v1391, 7
        %v1393 = vsub.s32 3, %v1392
        %v1394 = vrot.slane %v1009, %v1393
        %v1398 = vlaneseq
        %v1399 = vshrl.u32 %v1398, 7
        %v1400 = vsub.s32 3, %v1399
        %v1401 = vrot.slane %v1386, %v1400
        %v1402 = vlaneseq
        %v1403 = vshrl.u32 %v1402, 7
        %v1404 = vsub.s32 3, %v1403
        %v1405 = vrot.slane %v1390, %v1404
        %v1406 = vlaneseq
        %v1407 = vshrl.u32 %v1406, 7
        %v1408 = vsub.s32 3, %v1407
        %v1409 = vrot.slane %v1394, %v1408
        %v1410 = vmul.f32 %v1369, %v1401
        %v1411 = vmul.f32 %v1369, %v1405
        %v1412 = vmul.f32 %v1369, %v1409
        %v1413 = vmul.f32 %v1373, %v1401
        %v1414 = vmul.f32 %v1373, %v1405
        %v1415 = vmul.f32 %v1373, %v1409
        %v1416 = vmul.f32 %v1377, %v1401
        %v1417 = vmul.f32 %v1377, %v1405
        %v1418 = vmul.f32 %v1377, %v1409
        %v1419 = vmul.f32 %v1381, %v1401
        %v1420 = vmul.f32 %v1381, %v1405
        %v1421 = vmul.f32 %v1381, %v1409
        %1434 = vrot.lane.b32.xlu0 %v1410, 126
        %v1435 = vpop.permute.xlu0 %1434
        %1436 = vrot.lane.b32.xlu0 %v1411, 126
        %v1437 = vpop.permute.xlu0 %1436
        %1438 = vrot.lane.b32.xlu0 %v1412, 126
        %v1439 = vpop.permute.xlu0 %1438
        %1440 = vrot.lane.b32.xlu0 %v1413, 126
        %v1441 = vpop.permute.xlu0 %1440
        %1442 = vrot.lane.b32.xlu0 %v1414, 126
        %v1443 = vpop.permute.xlu0 %1442
        %1444 = vrot.lane.b32.xlu0 %v1415, 126
        %v1445 = vpop.permute.xlu0 %1444
        %1446 = vrot.lane.b32.xlu0 %v1416, 126
        %v1447 = vpop.permute.xlu0 %1446
        %1448 = vrot.lane.b32.xlu0 %v1417, 126
        %v1449 = vpop.permute.xlu0 %1448
        %1450 = vrot.lane.b32.xlu0 %v1418, 126
        %v1451 = vpop.permute.xlu0 %1450
        %1452 = vrot.lane.b32.xlu0 %v1419, 126
        %v1453 = vpop.permute.xlu0 %1452
        %1454 = vrot.lane.b32.xlu0 %v1420, 126
        %v1455 = vpop.permute.xlu0 %1454
        %1456 = vrot.lane.b32.xlu0 %v1421, 126
        %v1457 = vpop.permute.xlu0 %1456
        %v1458 = vsel %vm1112, %v1435, %v1437
        %v1459 = vsel %vm1112, %v1437, %v1439
        %v1460 = vsel %vm1112, %v1441, %v1443
        %v1461 = vsel %vm1112, %v1443, %v1445
        %v1462 = vsel %vm1112, %v1447, %v1449
        %v1463 = vsel %vm1112, %v1449, %v1451
        %v1464 = vsel %vm1112, %v1453, %v1455
        %v1465 = vsel %vm1112, %v1455, %v1457
        %v1474 = vadd.f32 %v1359, %v1458
        %v1475 = vadd.f32 %v1360, %v1459
        %v1476 = vadd.f32 %v1361, %v1460
        %v1477 = vadd.f32 %v1362, %v1461
        %v1478 = vadd.f32 %v1363, %v1462
        %v1479 = vadd.f32 %v1364, %v1463
        %v1480 = vadd.f32 %v1365, %v1464
        %v1481 = vadd.f32 %v1366, %v1465
        %v1482 = vld [vmem:[#allocation2] sm:$0xff]
        %v1483 = vld [vmem:[#allocation2 + $0x8] sm:$0xf]
        %s1484 = scalar_lea.vmem %s5, 3
        %v1485 = vld [vmem:[%s1484] ss:$8 sm:$0x3]
        %v1487 = vlaneseq
        %v1488 = vshrl.u32 %v1487, 7
        %v1489 = vsub.s32 0, %v1488
        %v1490 = vrot.slane %v1485, %v1489
        %v1491 = vlaneseq
        %v1492 = vshrl.u32 %v1491, 7
        %v1493 = vsub.s32 1, %v1492
        %v1494 = vrot.slane %v1485, %v1493
        %v1495 = vcombine.low %v1490, %v1494
        %1496 = vrot.lane.b32.xlu0 %v1495, 16
        %v1497 = vpop.permute.xlu0 %1496
        %v1498 = vrot.slane %v1497, 4
        %vm1499 = vcmask 130048
        %v1500 = vsel %vm1499, %v1498, %v1497
        %v1503 = vmul.f32 %v1482, %v1500
        %v1504 = vmul.f32 %v1483, %v1498
        %s1505 = scalar_lea.vmem %s1, 96
        %v1506 = vld [vmem:[%s1505] sm:$0xff]
        %v1507 = vld [vmem:[%s1505 + $0x8] sm:$0xff]
        %v1508 = vld [vmem:[%s1505 + $0x10] sm:$0xff]
        %v1509 = vld [vmem:[%s1505 + $0x18] sm:$0xff]
        %1511 = vset.pattern.permute.xlu0 0
        %1512 = vperm.xlu0 %1511, %v1506
        %v1513 = vpop.permute.xlu0 %1512
        %1516 = vset.pattern.permute.xlu0 0
        %1517 = vperm.xlu0 %1516, %v1507
        %v1518 = vpop.permute.xlu0 %1517
        %1521 = vset.pattern.permute.xlu0 0
        %1522 = vperm.xlu0 %1521, %v1508
        %v1523 = vpop.permute.xlu0 %1522
        %1526 = vset.pattern.permute.xlu0 0
        %1527 = vperm.xlu0 %1526, %v1509
        %v1528 = vpop.permute.xlu0 %1527
        %v1532 = vlaneseq
        %v1533 = vshrl.u32 %v1532, 7
        %v1534 = vsub.s32 0, %v1533
        %v1535 = vrot.slane %v1503, %v1534
        %v1536 = vlaneseq
        %v1537 = vshrl.u32 %v1536, 7
        %v1538 = vsub.s32 4, %v1537
        %v1539 = vrot.slane %v1503, %v1538
        %v1540 = vlaneseq
        %v1541 = vshrl.u32 %v1540, 7
        %v1542 = vsub.s32 0, %v1541
        %v1543 = vrot.slane %v1504, %v1542
        %v1547 = vlaneseq
        %v1548 = vshrl.u32 %v1547, 7
        %v1549 = vsub.s32 0, %v1548
        %v1550 = vrot.slane %v1535, %v1549
        %v1551 = vlaneseq
        %v1552 = vshrl.u32 %v1551, 7
        %v1553 = vsub.s32 0, %v1552
        %v1554 = vrot.slane %v1539, %v1553
        %v1555 = vlaneseq
        %v1556 = vshrl.u32 %v1555, 7
        %v1557 = vsub.s32 0, %v1556
        %v1558 = vrot.slane %v1543, %v1557
        %v1559 = vmul.f32 %v1513, %v1550
        %v1560 = vmul.f32 %v1513, %v1554
        %v1561 = vmul.f32 %v1513, %v1558
        %v1562 = vmul.f32 %v1518, %v1550
        %v1563 = vmul.f32 %v1518, %v1554
        %v1564 = vmul.f32 %v1518, %v1558
        %v1565 = vmul.f32 %v1523, %v1550
        %v1566 = vmul.f32 %v1523, %v1554
        %v1567 = vmul.f32 %v1523, %v1558
        %v1568 = vmul.f32 %v1528, %v1550
        %v1569 = vmul.f32 %v1528, %v1554
        %v1570 = vmul.f32 %v1528, %v1558
        %1583 = vrot.lane.b32.xlu0 %v1559, 112
        %v1584 = vpop.permute.xlu0 %1583
        %1585 = vrot.lane.b32.xlu0 %v1560, 112
        %v1586 = vpop.permute.xlu0 %1585
        %1587 = vrot.lane.b32.xlu0 %v1561, 112
        %v1588 = vpop.permute.xlu0 %1587
        %1589 = vrot.lane.b32.xlu0 %v1562, 112
        %v1590 = vpop.permute.xlu0 %1589
        %1591 = vrot.lane.b32.xlu0 %v1563, 112
        %v1592 = vpop.permute.xlu0 %1591
        %1593 = vrot.lane.b32.xlu0 %v1564, 112
        %v1594 = vpop.permute.xlu0 %1593
        %1595 = vrot.lane.b32.xlu0 %v1565, 112
        %v1596 = vpop.permute.xlu0 %1595
        %1597 = vrot.lane.b32.xlu0 %v1566, 112
        %v1598 = vpop.permute.xlu0 %1597
        %1599 = vrot.lane.b32.xlu0 %v1567, 112
        %v1600 = vpop.permute.xlu0 %1599
        %1601 = vrot.lane.b32.xlu0 %v1568, 112
        %v1602 = vpop.permute.xlu0 %1601
        %1603 = vrot.lane.b32.xlu0 %v1569, 112
        %v1604 = vpop.permute.xlu0 %1603
        %1605 = vrot.lane.b32.xlu0 %v1570, 112
        %v1606 = vpop.permute.xlu0 %1605
        %vm1607 = vcmask 916480
        %v1608 = vsel %vm1607, %v1584, %v1586
        %v1609 = vsel %vm1607, %v1586, %v1588
        %v1610 = vsel %vm1607, %v1590, %v1592
        %v1611 = vsel %vm1607, %v1592, %v1594
        %v1612 = vsel %vm1607, %v1596, %v1598
        %v1613 = vsel %vm1607, %v1598, %v1600
        %v1614 = vsel %vm1607, %v1602, %v1604
        %v1615 = vsel %vm1607, %v1604, %v1606
        %v1624 = vadd.f32 %v1474, %v1608
        %v1625 = vadd.f32 %v1475, %v1609
        %v1626 = vadd.f32 %v1476, %v1610
        %v1627 = vadd.f32 %v1477, %v1611
        %v1628 = vadd.f32 %v1478, %v1612
        %v1629 = vadd.f32 %v1479, %v1613
        %v1630 = vadd.f32 %v1480, %v1614
        %v1631 = vadd.f32 %v1481, %v1615
        %1632 = vset.pattern.permute.xlu0 1
        %1633 = vperm.xlu0 %1632, %v1506
        %v1634 = vpop.permute.xlu0 %1633
        %1636 = vset.pattern.permute.xlu0 1
        %1637 = vperm.xlu0 %1636, %v1507
        %v1638 = vpop.permute.xlu0 %1637
        %1640 = vset.pattern.permute.xlu0 1
        %1641 = vperm.xlu0 %1640, %v1508
        %v1642 = vpop.permute.xlu0 %1641
        %1644 = vset.pattern.permute.xlu0 1
        %1645 = vperm.xlu0 %1644, %v1509
        %v1646 = vpop.permute.xlu0 %1645
        %v1648 = vlaneseq
        %v1649 = vshrl.u32 %v1648, 7
        %v1650 = vsub.s32 1, %v1649
        %v1651 = vrot.slane %v1503, %v1650
        %v1652 = vlaneseq
        %v1653 = vshrl.u32 %v1652, 7
        %v1654 = vsub.s32 5, %v1653
        %v1655 = vrot.slane %v1503, %v1654
        %v1656 = vlaneseq
        %v1657 = vshrl.u32 %v1656, 7
        %v1658 = vsub.s32 1, %v1657
        %v1659 = vrot.slane %v1504, %v1658
        %v1663 = vlaneseq
        %v1664 = vshrl.u32 %v1663, 7
        %v1665 = vsub.s32 1, %v1664
        %v1666 = vrot.slane %v1651, %v1665
        %v1667 = vlaneseq
        %v1668 = vshrl.u32 %v1667, 7
        %v1669 = vsub.s32 1, %v1668
        %v1670 = vrot.slane %v1655, %v1669
        %v1671 = vlaneseq
        %v1672 = vshrl.u32 %v1671, 7
        %v1673 = vsub.s32 1, %v1672
        %v1674 = vrot.slane %v1659, %v1673
        %v1675 = vmul.f32 %v1634, %v1666
        %v1676 = vmul.f32 %v1634, %v1670
        %v1677 = vmul.f32 %v1634, %v1674
        %v1678 = vmul.f32 %v1638, %v1666
        %v1679 = vmul.f32 %v1638, %v1670
        %v1680 = vmul.f32 %v1638, %v1674
        %v1681 = vmul.f32 %v1642, %v1666
        %v1682 = vmul.f32 %v1642, %v1670
        %v1683 = vmul.f32 %v1642, %v1674
        %v1684 = vmul.f32 %v1646, %v1666
        %v1685 = vmul.f32 %v1646, %v1670
        %v1686 = vmul.f32 %v1646, %v1674
        %1699 = vrot.lane.b32.xlu0 %v1675, 112
        %v1700 = vpop.permute.xlu0 %1699
        %1701 = vrot.lane.b32.xlu0 %v1676, 112
        %v1702 = vpop.permute.xlu0 %1701
        %1703 = vrot.lane.b32.xlu0 %v1677, 112
        %v1704 = vpop.permute.xlu0 %1703
        %1705 = vrot.lane.b32.xlu0 %v1678, 112
        %v1706 = vpop.permute.xlu0 %1705
        %1707 = vrot.lane.b32.xlu0 %v1679, 112
        %v1708 = vpop.permute.xlu0 %1707
        %1709 = vrot.lane.b32.xlu0 %v1680, 112
        %v1710 = vpop.permute.xlu0 %1709
        %1711 = vrot.lane.b32.xlu0 %v1681, 112
        %v1712 = vpop.permute.xlu0 %1711
        %1713 = vrot.lane.b32.xlu0 %v1682, 112
        %v1714 = vpop.permute.xlu0 %1713
        %1715 = vrot.lane.b32.xlu0 %v1683, 112
        %v1716 = vpop.permute.xlu0 %1715
        %1717 = vrot.lane.b32.xlu0 %v1684, 112
        %v1718 = vpop.permute.xlu0 %1717
        %1719 = vrot.lane.b32.xlu0 %v1685, 112
        %v1720 = vpop.permute.xlu0 %1719
        %1721 = vrot.lane.b32.xlu0 %v1686, 112
        %v1722 = vpop.permute.xlu0 %1721
        %v1723 = vsel %vm1607, %v1700, %v1702
        %v1724 = vsel %vm1607, %v1702, %v1704
        %v1725 = vsel %vm1607, %v1706, %v1708
        %v1726 = vsel %vm1607, %v1708, %v1710
        %v1727 = vsel %vm1607, %v1712, %v1714
        %v1728 = vsel %vm1607, %v1714, %v1716
        %v1729 = vsel %vm1607, %v1718, %v1720
        %v1730 = vsel %vm1607, %v1720, %v1722
        %v1739 = vadd.f32 %v1624, %v1723
        %v1740 = vadd.f32 %v1625, %v1724
        %v1741 = vadd.f32 %v1626, %v1725
        %v1742 = vadd.f32 %v1627, %v1726
        %v1743 = vadd.f32 %v1628, %v1727
        %v1744 = vadd.f32 %v1629, %v1728
        %v1745 = vadd.f32 %v1630, %v1729
        %v1746 = vadd.f32 %v1631, %v1730
        %1747 = vset.pattern.permute.xlu0 2
        %1748 = vperm.xlu0 %1747, %v1506
        %v1749 = vpop.permute.xlu0 %1748
        %1751 = vset.pattern.permute.xlu0 2
        %1752 = vperm.xlu0 %1751, %v1507
        %v1753 = vpop.permute.xlu0 %1752
        %1755 = vset.pattern.permute.xlu0 2
        %1756 = vperm.xlu0 %1755, %v1508
        %v1757 = vpop.permute.xlu0 %1756
        %1759 = vset.pattern.permute.xlu0 2
        %1760 = vperm.xlu0 %1759, %v1509
        %v1761 = vpop.permute.xlu0 %1760
        %v1763 = vlaneseq
        %v1764 = vshrl.u32 %v1763, 7
        %v1765 = vsub.s32 2, %v1764
        %v1766 = vrot.slane %v1503, %v1765
        %v1767 = vlaneseq
        %v1768 = vshrl.u32 %v1767, 7
        %v1769 = vsub.s32 6, %v1768
        %v1770 = vrot.slane %v1503, %v1769
        %v1771 = vlaneseq
        %v1772 = vshrl.u32 %v1771, 7
        %v1773 = vsub.s32 2, %v1772
        %v1774 = vrot.slane %v1504, %v1773
        %v1778 = vlaneseq
        %v1779 = vshrl.u32 %v1778, 7
        %v1780 = vsub.s32 2, %v1779
        %v1781 = vrot.slane %v1766, %v1780
        %v1782 = vlaneseq
        %v1783 = vshrl.u32 %v1782, 7
        %v1784 = vsub.s32 2, %v1783
        %v1785 = vrot.slane %v1770, %v1784
        %v1786 = vlaneseq
        %v1787 = vshrl.u32 %v1786, 7
        %v1788 = vsub.s32 2, %v1787
        %v1789 = vrot.slane %v1774, %v1788
        %v1790 = vmul.f32 %v1749, %v1781
        %v1791 = vmul.f32 %v1749, %v1785
        %v1792 = vmul.f32 %v1749, %v1789
        %v1793 = vmul.f32 %v1753, %v1781
        %v1794 = vmul.f32 %v1753, %v1785
        %v1795 = vmul.f32 %v1753, %v1789
        %v1796 = vmul.f32 %v1757, %v1781
        %v1797 = vmul.f32 %v1757, %v1785
        %v1798 = vmul.f32 %v1757, %v1789
        %v1799 = vmul.f32 %v1761, %v1781
        %v1800 = vmul.f32 %v1761, %v1785
        %v1801 = vmul.f32 %v1761, %v1789
        %1814 = vrot.lane.b32.xlu0 %v1790, 112
        %v1815 = vpop.permute.xlu0 %1814
        %1816 = vrot.lane.b32.xlu0 %v1791, 112
        %v1817 = vpop.permute.xlu0 %1816
        %1818 = vrot.lane.b32.xlu0 %v1792, 112
        %v1819 = vpop.permute.xlu0 %1818
        %1820 = vrot.lane.b32.xlu0 %v1793, 112
        %v1821 = vpop.permute.xlu0 %1820
        %1822 = vrot.lane.b32.xlu0 %v1794, 112
        %v1823 = vpop.permute.xlu0 %1822
        %1824 = vrot.lane.b32.xlu0 %v1795, 112
        %v1825 = vpop.permute.xlu0 %1824
        %1826 = vrot.lane.b32.xlu0 %v1796, 112
        %v1827 = vpop.permute.xlu0 %1826
        %1828 = vrot.lane.b32.xlu0 %v1797, 112
        %v1829 = vpop.permute.xlu0 %1828
        %1830 = vrot.lane.b32.xlu0 %v1798, 112
        %v1831 = vpop.permute.xlu0 %1830
        %1832 = vrot.lane.b32.xlu0 %v1799, 112
        %v1833 = vpop.permute.xlu0 %1832
        %1834 = vrot.lane.b32.xlu0 %v1800, 112
        %v1835 = vpop.permute.xlu0 %1834
        %1836 = vrot.lane.b32.xlu0 %v1801, 112
        %v1837 = vpop.permute.xlu0 %1836
        %v1838 = vsel %vm1607, %v1815, %v1817
        %v1839 = vsel %vm1607, %v1817, %v1819
        %v1840 = vsel %vm1607, %v1821, %v1823
        %v1841 = vsel %vm1607, %v1823, %v1825
        %v1842 = vsel %vm1607, %v1827, %v1829
        %v1843 = vsel %vm1607, %v1829, %v1831
        %v1844 = vsel %vm1607, %v1833, %v1835
        %v1845 = vsel %vm1607, %v1835, %v1837
        %v1854 = vadd.f32 %v1739, %v1838
        %v1855 = vadd.f32 %v1740, %v1839
        %v1856 = vadd.f32 %v1741, %v1840
        %v1857 = vadd.f32 %v1742, %v1841
        %v1858 = vadd.f32 %v1743, %v1842
        %v1859 = vadd.f32 %v1744, %v1843
        %v1860 = vadd.f32 %v1745, %v1844
        %v1861 = vadd.f32 %v1746, %v1845
        %1862 = vset.pattern.permute.xlu0 3
        %1863 = vperm.xlu0 %1862, %v1506
        %v1864 = vpop.permute.xlu0 %1863
        %1866 = vset.pattern.permute.xlu0 3
        %1867 = vperm.xlu0 %1866, %v1507
        %v1868 = vpop.permute.xlu0 %1867
        %1870 = vset.pattern.permute.xlu0 3
        %1871 = vperm.xlu0 %1870, %v1508
        %v1872 = vpop.permute.xlu0 %1871
        %1874 = vset.pattern.permute.xlu0 3
        %1875 = vperm.xlu0 %1874, %v1509
        %v1876 = vpop.permute.xlu0 %1875
        %v1878 = vlaneseq
        %v1879 = vshrl.u32 %v1878, 7
        %v1880 = vsub.s32 3, %v1879
        %v1881 = vrot.slane %v1503, %v1880
        %v1882 = vlaneseq
        %v1883 = vshrl.u32 %v1882, 7
        %v1884 = vsub.s32 7, %v1883
        %v1885 = vrot.slane %v1503, %v1884
        %v1886 = vlaneseq
        %v1887 = vshrl.u32 %v1886, 7
        %v1888 = vsub.s32 3, %v1887
        %v1889 = vrot.slane %v1504, %v1888
        %v1893 = vlaneseq
        %v1894 = vshrl.u32 %v1893, 7
        %v1895 = vsub.s32 3, %v1894
        %v1896 = vrot.slane %v1881, %v1895
        %v1897 = vlaneseq
        %v1898 = vshrl.u32 %v1897, 7
        %v1899 = vsub.s32 3, %v1898
        %v1900 = vrot.slane %v1885, %v1899
        %v1901 = vlaneseq
        %v1902 = vshrl.u32 %v1901, 7
        %v1903 = vsub.s32 3, %v1902
        %v1904 = vrot.slane %v1889, %v1903
        %v1905 = vmul.f32 %v1864, %v1896
        %v1906 = vmul.f32 %v1864, %v1900
        %v1907 = vmul.f32 %v1864, %v1904
        %v1908 = vmul.f32 %v1868, %v1896
        %v1909 = vmul.f32 %v1868, %v1900
        %v1910 = vmul.f32 %v1868, %v1904
        %v1911 = vmul.f32 %v1872, %v1896
        %v1912 = vmul.f32 %v1872, %v1900
        %v1913 = vmul.f32 %v1872, %v1904
        %v1914 = vmul.f32 %v1876, %v1896
        %v1915 = vmul.f32 %v1876, %v1900
        %v1916 = vmul.f32 %v1876, %v1904
        %1929 = vrot.lane.b32.xlu0 %v1905, 112
        %v1930 = vpop.permute.xlu0 %1929
        %1931 = vrot.lane.b32.xlu0 %v1906, 112
        %v1932 = vpop.permute.xlu0 %1931
        %1933 = vrot.lane.b32.xlu0 %v1907, 112
        %v1934 = vpop.permute.xlu0 %1933
        %1935 = vrot.lane.b32.xlu0 %v1908, 112
        %v1936 = vpop.permute.xlu0 %1935
        %1937 = vrot.lane.b32.xlu0 %v1909, 112
        %v1938 = vpop.permute.xlu0 %1937
        %1939 = vrot.lane.b32.xlu0 %v1910, 112
        %v1940 = vpop.permute.xlu0 %1939
        %1941 = vrot.lane.b32.xlu0 %v1911, 112
        %v1942 = vpop.permute.xlu0 %1941
        %1943 = vrot.lane.b32.xlu0 %v1912, 112
        %v1944 = vpop.permute.xlu0 %1943
        %1945 = vrot.lane.b32.xlu0 %v1913, 112
        %v1946 = vpop.permute.xlu0 %1945
        %1947 = vrot.lane.b32.xlu0 %v1914, 112
        %v1948 = vpop.permute.xlu0 %1947
        %1949 = vrot.lane.b32.xlu0 %v1915, 112
        %v1950 = vpop.permute.xlu0 %1949
        %1951 = vrot.lane.b32.xlu0 %v1916, 112
        %v1952 = vpop.permute.xlu0 %1951
        %v1953 = vsel %vm1607, %v1930, %v1932
        %v1954 = vsel %vm1607, %v1932, %v1934
        %v1955 = vsel %vm1607, %v1936, %v1938
        %v1956 = vsel %vm1607, %v1938, %v1940
        %v1957 = vsel %vm1607, %v1942, %v1944
        %v1958 = vsel %vm1607, %v1944, %v1946
        %v1959 = vsel %vm1607, %v1948, %v1950
        %v1960 = vsel %vm1607, %v1950, %v1952
        %v1969 = vadd.f32 %v1854, %v1953
        %v1970 = vadd.f32 %v1855, %v1954
        %v1971 = vadd.f32 %v1856, %v1955
        %v1972 = vadd.f32 %v1857, %v1956
        %v1973 = vadd.f32 %v1858, %v1957
        %v1974 = vadd.f32 %v1859, %v1958
        %v1975 = vadd.f32 %v1860, %v1959
        %v1976 = vadd.f32 %v1861, %v1960
        %v1977 = vld [vmem:[#allocation2] sm:$0xff]
        %v1978 = vld [vmem:[#allocation2 + $0x8] sm:$0xf]
        %s1979 = scalar_lea.vmem %s5, 4
        %v1980 = vld [vmem:[%s1979] ss:$8 sm:$0x3]
        %v1982 = vlaneseq
        %v1983 = vshrl.u32 %v1982, 7
        %v1984 = vsub.s32 0, %v1983
        %v1985 = vrot.slane %v1980, %v1984
        %v1986 = vlaneseq
        %v1987 = vshrl.u32 %v1986, 7
        %v1988 = vsub.s32 1, %v1987
        %v1989 = vrot.slane %v1980, %v1988
        %v1990 = vcombine.low %v1985, %v1989
        %1991 = vrot.lane.b32.xlu0 %v1990, 17
        %v1992 = vpop.permute.xlu0 %1991
        %v1993 = vrot.slane %v1992, 4
        %v1994 = vsel %vm259, %v1993, %v1992
        %v1997 = vmul.f32 %v1977, %v1994
        %v1998 = vmul.f32 %v1978, %v1993
        %s1999 = scalar_lea.vmem %s1, 128
        %v2000 = vld [vmem:[%s1999] sm:$0xff]
        %v2001 = vld [vmem:[%s1999 + $0x8] sm:$0xff]
        %v2002 = vld [vmem:[%s1999 + $0x10] sm:$0xff]
        %v2003 = vld [vmem:[%s1999 + $0x18] sm:$0xff]
        %2005 = vset.pattern.permute.xlu0 0
        %2006 = vperm.xlu0 %2005, %v2000
        %v2007 = vpop.permute.xlu0 %2006
        %2010 = vset.pattern.permute.xlu0 0
        %2011 = vperm.xlu0 %2010, %v2001
        %v2012 = vpop.permute.xlu0 %2011
        %2015 = vset.pattern.permute.xlu0 0
        %2016 = vperm.xlu0 %2015, %v2002
        %v2017 = vpop.permute.xlu0 %2016
        %2020 = vset.pattern.permute.xlu0 0
        %2021 = vperm.xlu0 %2020, %v2003
        %v2022 = vpop.permute.xlu0 %2021
        %v2026 = vlaneseq
        %v2027 = vshrl.u32 %v2026, 7
        %v2028 = vsub.s32 0, %v2027
        %v2029 = vrot.slane %v1997, %v2028
        %v2030 = vlaneseq
        %v2031 = vshrl.u32 %v2030, 7
        %v2032 = vsub.s32 4, %v2031
        %v2033 = vrot.slane %v1997, %v2032
        %v2034 = vlaneseq
        %v2035 = vshrl.u32 %v2034, 7
        %v2036 = vsub.s32 0, %v2035
        %v2037 = vrot.slane %v1998, %v2036
        %v2041 = vlaneseq
        %v2042 = vshrl.u32 %v2041, 7
        %v2043 = vsub.s32 0, %v2042
        %v2044 = vrot.slane %v2029, %v2043
        %v2045 = vlaneseq
        %v2046 = vshrl.u32 %v2045, 7
        %v2047 = vsub.s32 0, %v2046
        %v2048 = vrot.slane %v2033, %v2047
        %v2049 = vlaneseq
        %v2050 = vshrl.u32 %v2049, 7
        %v2051 = vsub.s32 0, %v2050
        %v2052 = vrot.slane %v2037, %v2051
        %v2053 = vmul.f32 %v2007, %v2044
        %v2054 = vmul.f32 %v2007, %v2048
        %v2055 = vmul.f32 %v2007, %v2052
        %v2056 = vmul.f32 %v2012, %v2044
        %v2057 = vmul.f32 %v2012, %v2048
        %v2058 = vmul.f32 %v2012, %v2052
        %v2059 = vmul.f32 %v2017, %v2044
        %v2060 = vmul.f32 %v2017, %v2048
        %v2061 = vmul.f32 %v2017, %v2052
        %v2062 = vmul.f32 %v2022, %v2044
        %v2063 = vmul.f32 %v2022, %v2048
        %v2064 = vmul.f32 %v2022, %v2052
        %2077 = vrot.lane.b32.xlu0 %v2053, 111
        %v2078 = vpop.permute.xlu0 %2077
        %2079 = vrot.lane.b32.xlu0 %v2054, 111
        %v2080 = vpop.permute.xlu0 %2079
        %2081 = vrot.lane.b32.xlu0 %v2055, 111
        %v2082 = vpop.permute.xlu0 %2081
        %2083 = vrot.lane.b32.xlu0 %v2056, 111
        %v2084 = vpop.permute.xlu0 %2083
        %2085 = vrot.lane.b32.xlu0 %v2057, 111
        %v2086 = vpop.permute.xlu0 %2085
        %2087 = vrot.lane.b32.xlu0 %v2058, 111
        %v2088 = vpop.permute.xlu0 %2087
        %2089 = vrot.lane.b32.xlu0 %v2059, 111
        %v2090 = vpop.permute.xlu0 %2089
        %2091 = vrot.lane.b32.xlu0 %v2060, 111
        %v2092 = vpop.permute.xlu0 %2091
        %2093 = vrot.lane.b32.xlu0 %v2061, 111
        %v2094 = vpop.permute.xlu0 %2093
        %2095 = vrot.lane.b32.xlu0 %v2062, 111
        %v2096 = vpop.permute.xlu0 %2095
        %2097 = vrot.lane.b32.xlu0 %v2063, 111
        %v2098 = vpop.permute.xlu0 %2097
        %2099 = vrot.lane.b32.xlu0 %v2064, 111
        %v2100 = vpop.permute.xlu0 %2099
        %vm2101 = vcmask 908288
        %v2102 = vsel %vm2101, %v2078, %v2080
        %v2103 = vsel %vm2101, %v2080, %v2082
        %v2104 = vsel %vm2101, %v2084, %v2086
        %v2105 = vsel %vm2101, %v2086, %v2088
        %v2106 = vsel %vm2101, %v2090, %v2092
        %v2107 = vsel %vm2101, %v2092, %v2094
        %v2108 = vsel %vm2101, %v2096, %v2098
        %v2109 = vsel %vm2101, %v2098, %v2100
        %v2118 = vadd.f32 %v1969, %v2102
        %v2119 = vadd.f32 %v1970, %v2103
        %v2120 = vadd.f32 %v1971, %v2104
        %v2121 = vadd.f32 %v1972, %v2105
        %v2122 = vadd.f32 %v1973, %v2106
        %v2123 = vadd.f32 %v1974, %v2107
        %v2124 = vadd.f32 %v1975, %v2108
        %v2125 = vadd.f32 %v1976, %v2109
        %2126 = vset.pattern.permute.xlu0 1
        %2127 = vperm.xlu0 %2126, %v2000
        %v2128 = vpop.permute.xlu0 %2127
        %2130 = vset.pattern.permute.xlu0 1
        %2131 = vperm.xlu0 %2130, %v2001
        %v2132 = vpop.permute.xlu0 %2131
        %2134 = vset.pattern.permute.xlu0 1
        %2135 = vperm.xlu0 %2134, %v2002
        %v2136 = vpop.permute.xlu0 %2135
        %2138 = vset.pattern.permute.xlu0 1
        %2139 = vperm.xlu0 %2138, %v2003
        %v2140 = vpop.permute.xlu0 %2139
        %v2142 = vlaneseq
        %v2143 = vshrl.u32 %v2142, 7
        %v2144 = vsub.s32 1, %v2143
        %v2145 = vrot.slane %v1997, %v2144
        %v2146 = vlaneseq
        %v2147 = vshrl.u32 %v2146, 7
        %v2148 = vsub.s32 5, %v2147
        %v2149 = vrot.slane %v1997, %v2148
        %v2150 = vlaneseq
        %v2151 = vshrl.u32 %v2150, 7
        %v2152 = vsub.s32 1, %v2151
        %v2153 = vrot.slane %v1998, %v2152
        %v2157 = vlaneseq
        %v2158 = vshrl.u32 %v2157, 7
        %v2159 = vsub.s32 1, %v2158
        %v2160 = vrot.slane %v2145, %v2159
        %v2161 = vlaneseq
        %v2162 = vshrl.u32 %v2161, 7
        %v2163 = vsub.s32 1, %v2162
        %v2164 = vrot.slane %v2149, %v2163
        %v2165 = vlaneseq
        %v2166 = vshrl.u32 %v2165, 7
        %v2167 = vsub.s32 1, %v2166
        %v2168 = vrot.slane %v2153, %v2167
        %v2169 = vmul.f32 %v2128, %v2160
        %v2170 = vmul.f32 %v2128, %v2164
        %v2171 = vmul.f32 %v2128, %v2168
        %v2172 = vmul.f32 %v2132, %v2160
        %v2173 = vmul.f32 %v2132, %v2164
        %v2174 = vmul.f32 %v2132, %v2168
        %v2175 = vmul.f32 %v2136, %v2160
        %v2176 = vmul.f32 %v2136, %v2164
        %v2177 = vmul.f32 %v2136, %v2168
        %v2178 = vmul.f32 %v2140, %v2160
        %v2179 = vmul.f32 %v2140, %v2164
        %v2180 = vmul.f32 %v2140, %v2168
        %2193 = vrot.lane.b32.xlu0 %v2169, 111
        %v2194 = vpop.permute.xlu0 %2193
        %2195 = vrot.lane.b32.xlu0 %v2170, 111
        %v2196 = vpop.permute.xlu0 %2195
        %2197 = vrot.lane.b32.xlu0 %v2171, 111
        %v2198 = vpop.permute.xlu0 %2197
        %2199 = vrot.lane.b32.xlu0 %v2172, 111
        %v2200 = vpop.permute.xlu0 %2199
        %2201 = vrot.lane.b32.xlu0 %v2173, 111
        %v2202 = vpop.permute.xlu0 %2201
        %2203 = vrot.lane.b32.xlu0 %v2174, 111
        %v2204 = vpop.permute.xlu0 %2203
        %2205 = vrot.lane.b32.xlu0 %v2175, 111
        %v2206 = vpop.permute.xlu0 %2205
        %2207 = vrot.lane.b32.xlu0 %v2176, 111
        %v2208 = vpop.permute.xlu0 %2207
        %2209 = vrot.lane.b32.xlu0 %v2177, 111
        %v2210 = vpop.permute.xlu0 %2209
        %2211 = vrot.lane.b32.xlu0 %v2178, 111
        %v2212 = vpop.permute.xlu0 %2211
        %2213 = vrot.lane.b32.xlu0 %v2179, 111
        %v2214 = vpop.permute.xlu0 %2213
        %2215 = vrot.lane.b32.xlu0 %v2180, 111
        %v2216 = vpop.permute.xlu0 %2215
        %v2217 = vsel %vm2101, %v2194, %v2196
        %v2218 = vsel %vm2101, %v2196, %v2198
        %v2219 = vsel %vm2101, %v2200, %v2202
        %v2220 = vsel %vm2101, %v2202, %v2204
        %v2221 = vsel %vm2101, %v2206, %v2208
        %v2222 = vsel %vm2101, %v2208, %v2210
        %v2223 = vsel %vm2101, %v2212, %v2214
        %v2224 = vsel %vm2101, %v2214, %v2216
        %v2233 = vadd.f32 %v2118, %v2217
        %v2234 = vadd.f32 %v2119, %v2218
        %v2235 = vadd.f32 %v2120, %v2219
        %v2236 = vadd.f32 %v2121, %v2220
        %v2237 = vadd.f32 %v2122, %v2221
        %v2238 = vadd.f32 %v2123, %v2222
        %v2239 = vadd.f32 %v2124, %v2223
        %v2240 = vadd.f32 %v2125, %v2224
        %2241 = vset.pattern.permute.xlu0 2
        %2242 = vperm.xlu0 %2241, %v2000
        %v2243 = vpop.permute.xlu0 %2242
        %2245 = vset.pattern.permute.xlu0 2
        %2246 = vperm.xlu0 %2245, %v2001
        %v2247 = vpop.permute.xlu0 %2246
        %2249 = vset.pattern.permute.xlu0 2
        %2250 = vperm.xlu0 %2249, %v2002
        %v2251 = vpop.permute.xlu0 %2250
        %2253 = vset.pattern.permute.xlu0 2
        %2254 = vperm.xlu0 %2253, %v2003
        %v2255 = vpop.permute.xlu0 %2254
        %v2257 = vlaneseq
        %v2258 = vshrl.u32 %v2257, 7
        %v2259 = vsub.s32 2, %v2258
        %v2260 = vrot.slane %v1997, %v2259
        %v2261 = vlaneseq
        %v2262 = vshrl.u32 %v2261, 7
        %v2263 = vsub.s32 6, %v2262
        %v2264 = vrot.slane %v1997, %v2263
        %v2265 = vlaneseq
        %v2266 = vshrl.u32 %v2265, 7
        %v2267 = vsub.s32 2, %v2266
        %v2268 = vrot.slane %v1998, %v2267
        %v2272 = vlaneseq
        %v2273 = vshrl.u32 %v2272, 7
        %v2274 = vsub.s32 2, %v2273
        %v2275 = vrot.slane %v2260, %v2274
        %v2276 = vlaneseq
        %v2277 = vshrl.u32 %v2276, 7
        %v2278 = vsub.s32 2, %v2277
        %v2279 = vrot.slane %v2264, %v2278
        %v2280 = vlaneseq
        %v2281 = vshrl.u32 %v2280, 7
        %v2282 = vsub.s32 2, %v2281
        %v2283 = vrot.slane %v2268, %v2282
        %v2284 = vmul.f32 %v2243, %v2275
        %v2285 = vmul.f32 %v2243, %v2279
        %v2286 = vmul.f32 %v2243, %v2283
        %v2287 = vmul.f32 %v2247, %v2275
        %v2288 = vmul.f32 %v2247, %v2279
        %v2289 = vmul.f32 %v2247, %v2283
        %v2290 = vmul.f32 %v2251, %v2275
        %v2291 = vmul.f32 %v2251, %v2279
        %v2292 = vmul.f32 %v2251, %v2283
        %v2293 = vmul.f32 %v2255, %v2275
        %v2294 = vmul.f32 %v2255, %v2279
        %v2295 = vmul.f32 %v2255, %v2283
        %2308 = vrot.lane.b32.xlu0 %v2284, 111
        %v2309 = vpop.permute.xlu0 %2308
        %2310 = vrot.lane.b32.xlu0 %v2285, 111
        %v2311 = vpop.permute.xlu0 %2310
        %2312 = vrot.lane.b32.xlu0 %v2286, 111
        %v2313 = vpop.permute.xlu0 %2312
        %2314 = vrot.lane.b32.xlu0 %v2287, 111
        %v2315 = vpop.permute.xlu0 %2314
        %2316 = vrot.lane.b32.xlu0 %v2288, 111
        %v2317 = vpop.permute.xlu0 %2316
        %2318 = vrot.lane.b32.xlu0 %v2289, 111
        %v2319 = vpop.permute.xlu0 %2318
        %2320 = vrot.lane.b32.xlu0 %v2290, 111
        %v2321 = vpop.permute.xlu0 %2320
        %2322 = vrot.lane.b32.xlu0 %v2291, 111
        %v2323 = vpop.permute.xlu0 %2322
        %2324 = vrot.lane.b32.xlu0 %v2292, 111
        %v2325 = vpop.permute.xlu0 %2324
        %2326 = vrot.lane.b32.xlu0 %v2293, 111
        %v2327 = vpop.permute.xlu0 %2326
        %2328 = vrot.lane.b32.xlu0 %v2294, 111
        %v2329 = vpop.permute.xlu0 %2328
        %2330 = vrot.lane.b32.xlu0 %v2295, 111
        %v2331 = vpop.permute.xlu0 %2330
        %v2332 = vsel %vm2101, %v2309, %v2311
        %v2333 = vsel %vm2101, %v2311, %v2313
        %v2334 = vsel %vm2101, %v2315, %v2317
        %v2335 = vsel %vm2101, %v2317, %v2319
        %v2336 = vsel %vm2101, %v2321, %v2323
        %v2337 = vsel %vm2101, %v2323, %v2325
        %v2338 = vsel %vm2101, %v2327, %v2329
        %v2339 = vsel %vm2101, %v2329, %v2331
        %v2348 = vadd.f32 %v2233, %v2332
        %v2349 = vadd.f32 %v2234, %v2333
        %v2350 = vadd.f32 %v2235, %v2334
        %v2351 = vadd.f32 %v2236, %v2335
        %v2352 = vadd.f32 %v2237, %v2336
        %v2353 = vadd.f32 %v2238, %v2337
        %v2354 = vadd.f32 %v2239, %v2338
        %v2355 = vadd.f32 %v2240, %v2339
        %2356 = vset.pattern.permute.xlu0 3
        %2357 = vperm.xlu0 %2356, %v2000
        %v2358 = vpop.permute.xlu0 %2357
        %2360 = vset.pattern.permute.xlu0 3
        %2361 = vperm.xlu0 %2360, %v2001
        %v2362 = vpop.permute.xlu0 %2361
        %2364 = vset.pattern.permute.xlu0 3
        %2365 = vperm.xlu0 %2364, %v2002
        %v2366 = vpop.permute.xlu0 %2365
        %2368 = vset.pattern.permute.xlu0 3
        %2369 = vperm.xlu0 %2368, %v2003
        %v2370 = vpop.permute.xlu0 %2369
        %v2372 = vlaneseq
        %v2373 = vshrl.u32 %v2372, 7
        %v2374 = vsub.s32 3, %v2373
        %v2375 = vrot.slane %v1997, %v2374
        %v2376 = vlaneseq
        %v2377 = vshrl.u32 %v2376, 7
        %v2378 = vsub.s32 7, %v2377
        %v2379 = vrot.slane %v1997, %v2378
        %v2380 = vlaneseq
        %v2381 = vshrl.u32 %v2380, 7
        %v2382 = vsub.s32 3, %v2381
        %v2383 = vrot.slane %v1998, %v2382
        %v2387 = vlaneseq
        %v2388 = vshrl.u32 %v2387, 7
        %v2389 = vsub.s32 3, %v2388
        %v2390 = vrot.slane %v2375, %v2389
        %v2391 = vlaneseq
        %v2392 = vshrl.u32 %v2391, 7
        %v2393 = vsub.s32 3, %v2392
        %v2394 = vrot.slane %v2379, %v2393
        %v2395 = vlaneseq
        %v2396 = vshrl.u32 %v2395, 7
        %v2397 = vsub.s32 3, %v2396
        %v2398 = vrot.slane %v2383, %v2397
        %v2399 = vmul.f32 %v2358, %v2390
        %v2400 = vmul.f32 %v2358, %v2394
        %v2401 = vmul.f32 %v2358, %v2398
        %v2402 = vmul.f32 %v2362, %v2390
        %v2403 = vmul.f32 %v2362, %v2394
        %v2404 = vmul.f32 %v2362, %v2398
        %v2405 = vmul.f32 %v2366, %v2390
        %v2406 = vmul.f32 %v2366, %v2394
        %v2407 = vmul.f32 %v2366, %v2398
        %v2408 = vmul.f32 %v2370, %v2390
        %v2409 = vmul.f32 %v2370, %v2394
        %v2410 = vmul.f32 %v2370, %v2398
        %2423 = vrot.lane.b32.xlu0 %v2399, 111
        %v2424 = vpop.permute.xlu0 %2423
        %2425 = vrot.lane.b32.xlu0 %v2400, 111
        %v2426 = vpop.permute.xlu0 %2425
        %2427 = vrot.lane.b32.xlu0 %v2401, 111
        %v2428 = vpop.permute.xlu0 %2427
        %2429 = vrot.lane.b32.xlu0 %v2402, 111
        %v2430 = vpop.permute.xlu0 %2429
        %2431 = vrot.lane.b32.xlu0 %v2403, 111
        %v2432 = vpop.permute.xlu0 %2431
        %2433 = vrot.lane.b32.xlu0 %v2404, 111
        %v2434 = vpop.permute.xlu0 %2433
        %2435 = vrot.lane.b32.xlu0 %v2405, 111
        %v2436 = vpop.permute.xlu0 %2435
        %2437 = vrot.lane.b32.xlu0 %v2406, 111
        %v2438 = vpop.permute.xlu0 %2437
        %2439 = vrot.lane.b32.xlu0 %v2407, 111
        %v2440 = vpop.permute.xlu0 %2439
        %2441 = vrot.lane.b32.xlu0 %v2408, 111
        %v2442 = vpop.permute.xlu0 %2441
        %2443 = vrot.lane.b32.xlu0 %v2409, 111
        %v2444 = vpop.permute.xlu0 %2443
        %2445 = vrot.lane.b32.xlu0 %v2410, 111
        %v2446 = vpop.permute.xlu0 %2445
        %v2447 = vsel %vm2101, %v2424, %v2426
        %v2448 = vsel %vm2101, %v2426, %v2428
        %v2449 = vsel %vm2101, %v2430, %v2432
        %v2450 = vsel %vm2101, %v2432, %v2434
        %v2451 = vsel %vm2101, %v2436, %v2438
        %v2452 = vsel %vm2101, %v2438, %v2440
        %v2453 = vsel %vm2101, %v2442, %v2444
        %v2454 = vsel %vm2101, %v2444, %v2446
        %v2463 = vadd.f32 %v2348, %v2447
        %v2464 = vadd.f32 %v2349, %v2448
        %v2465 = vadd.f32 %v2350, %v2449
        %v2466 = vadd.f32 %v2351, %v2450
        %v2467 = vadd.f32 %v2352, %v2451
        %v2468 = vadd.f32 %v2353, %v2452
        %v2469 = vadd.f32 %v2354, %v2453
        %v2470 = vadd.f32 %v2355, %v2454
        %v2471 = vld [vmem:[#allocation2] sm:$0xff]
        %v2472 = vld [vmem:[#allocation2 + $0x8] sm:$0xf]
        %s2473 = scalar_lea.vmem %s5, 5
        %v2474 = vld [vmem:[%s2473] ss:$8 sm:$0x3]
        %v2476 = vlaneseq
        %v2477 = vshrl.u32 %v2476, 7
        %v2478 = vsub.s32 0, %v2477
        %v2479 = vrot.slane %v2474, %v2478
        %v2480 = vlaneseq
        %v2481 = vshrl.u32 %v2480, 7
        %v2482 = vsub.s32 1, %v2481
        %v2483 = vrot.slane %v2474, %v2482
        %v2484 = vcombine.low %v2479, %v2483
        %2485 = vrot.lane.b32.xlu0 %v2484, 18
        %v2486 = vpop.permute.xlu0 %2485
        %v2487 = vrot.slane %v2486, 4
        %vm2488 = vcmask 146432
        %v2489 = vsel %vm2488, %v2487, %v2486
        %v2492 = vmul.f32 %v2471, %v2489
        %v2493 = vmul.f32 %v2472, %v2487
        %s2494 = scalar_lea.vmem %s1, 160
        %v2495 = vld [vmem:[%s2494] sm:$0xff]
        %v2496 = vld [vmem:[%s2494 + $0x8] sm:$0xff]
        %v2497 = vld [vmem:[%s2494 + $0x10] sm:$0xff]
        %v2498 = vld [vmem:[%s2494 + $0x18] sm:$0xff]
        %2500 = vset.pattern.permute.xlu0 0
        %2501 = vperm.xlu0 %2500, %v2495
        %v2502 = vpop.permute.xlu0 %2501
        %2505 = vset.pattern.permute.xlu0 0
        %2506 = vperm.xlu0 %2505, %v2496
        %v2507 = vpop.permute.xlu0 %2506
        %2510 = vset.pattern.permute.xlu0 0
        %2511 = vperm.xlu0 %2510, %v2497
        %v2512 = vpop.permute.xlu0 %2511
        %2515 = vset.pattern.permute.xlu0 0
        %2516 = vperm.xlu0 %2515, %v2498
        %v2517 = vpop.permute.xlu0 %2516
        %v2521 = vlaneseq
        %v2522 = vshrl.u32 %v2521, 7
        %v2523 = vsub.s32 0, %v2522
        %v2524 = vrot.slane %v2492, %v2523
        %v2525 = vlaneseq
        %v2526 = vshrl.u32 %v2525, 7
        %v2527 = vsub.s32 4, %v2526
        %v2528 = vrot.slane %v2492, %v2527
        %v2529 = vlaneseq
        %v2530 = vshrl.u32 %v2529, 7
        %v2531 = vsub.s32 0, %v2530
        %v2532 = vrot.slane %v2493, %v2531
        %v2536 = vlaneseq
        %v2537 = vshrl.u32 %v2536, 7
        %v2538 = vsub.s32 0, %v2537
        %v2539 = vrot.slane %v2524, %v2538
        %v2540 = vlaneseq
        %v2541 = vshrl.u32 %v2540, 7
        %v2542 = vsub.s32 0, %v2541
        %v2543 = vrot.slane %v2528, %v2542
        %v2544 = vlaneseq
        %v2545 = vshrl.u32 %v2544, 7
        %v2546 = vsub.s32 0, %v2545
        %v2547 = vrot.slane %v2532, %v2546
        %v2548 = vmul.f32 %v2502, %v2539
        %v2549 = vmul.f32 %v2502, %v2543
        %v2550 = vmul.f32 %v2502, %v2547
        %v2551 = vmul.f32 %v2507, %v2539
        %v2552 = vmul.f32 %v2507, %v2543
        %v2553 = vmul.f32 %v2507, %v2547
        %v2554 = vmul.f32 %v2512, %v2539
        %v2555 = vmul.f32 %v2512, %v2543
        %v2556 = vmul.f32 %v2512, %v2547
        %v2557 = vmul.f32 %v2517, %v2539
        %v2558 = vmul.f32 %v2517, %v2543
        %v2559 = vmul.f32 %v2517, %v2547
        %2572 = vrot.lane.b32.xlu0 %v2548, 110
        %v2573 = vpop.permute.xlu0 %2572
        %2574 = vrot.lane.b32.xlu0 %v2549, 110
        %v2575 = vpop.permute.xlu0 %2574
        %2576 = vrot.lane.b32.xlu0 %v2550, 110
        %v2577 = vpop.permute.xlu0 %2576
        %2578 = vrot.lane.b32.xlu0 %v2551, 110
        %v2579 = vpop.permute.xlu0 %2578
        %2580 = vrot.lane.b32.xlu0 %v2552, 110
        %v2581 = vpop.permute.xlu0 %2580
        %2582 = vrot.lane.b32.xlu0 %v2553, 110
        %v2583 = vpop.permute.xlu0 %2582
        %2584 = vrot.lane.b32.xlu0 %v2554, 110
        %v2585 = vpop.permute.xlu0 %2584
        %2586 = vrot.lane.b32.xlu0 %v2555, 110
        %v2587 = vpop.permute.xlu0 %2586
        %2588 = vrot.lane.b32.xlu0 %v2556, 110
        %v2589 = vpop.permute.xlu0 %2588
        %2590 = vrot.lane.b32.xlu0 %v2557, 110
        %v2591 = vpop.permute.xlu0 %2590
        %2592 = vrot.lane.b32.xlu0 %v2558, 110
        %v2593 = vpop.permute.xlu0 %2592
        %2594 = vrot.lane.b32.xlu0 %v2559, 110
        %v2595 = vpop.permute.xlu0 %2594
        %vm2596 = vcmask 900096
        %v2597 = vsel %vm2596, %v2573, %v2575
        %v2598 = vsel %vm2596, %v2575, %v2577
        %v2599 = vsel %vm2596, %v2579, %v2581
        %v2600 = vsel %vm2596, %v2581, %v2583
        %v2601 = vsel %vm2596, %v2585, %v2587
        %v2602 = vsel %vm2596, %v2587, %v2589
        %v2603 = vsel %vm2596, %v2591, %v2593
        %v2604 = vsel %vm2596, %v2593, %v2595
        %v2613 = vadd.f32 %v2463, %v2597
        %v2614 = vadd.f32 %v2464, %v2598
        %v2615 = vadd.f32 %v2465, %v2599
        %v2616 = vadd.f32 %v2466, %v2600
        %v2617 = vadd.f32 %v2467, %v2601
        %v2618 = vadd.f32 %v2468, %v2602
        %v2619 = vadd.f32 %v2469, %v2603
        %v2620 = vadd.f32 %v2470, %v2604
        %2621 = vset.pattern.permute.xlu0 1
        %2622 = vperm.xlu0 %2621, %v2495
        %v2623 = vpop.permute.xlu0 %2622
        %2625 = vset.pattern.permute.xlu0 1
        %2626 = vperm.xlu0 %2625, %v2496
        %v2627 = vpop.permute.xlu0 %2626
        %2629 = vset.pattern.permute.xlu0 1
        %2630 = vperm.xlu0 %2629, %v2497
        %v2631 = vpop.permute.xlu0 %2630
        %2633 = vset.pattern.permute.xlu0 1
        %2634 = vperm.xlu0 %2633, %v2498
        %v2635 = vpop.permute.xlu0 %2634
        %v2637 = vlaneseq
        %v2638 = vshrl.u32 %v2637, 7
        %v2639 = vsub.s32 1, %v2638
        %v2640 = vrot.slane %v2492, %v2639
        %v2641 = vlaneseq
        %v2642 = vshrl.u32 %v2641, 7
        %v2643 = vsub.s32 5, %v2642
        %v2644 = vrot.slane %v2492, %v2643
        %v2645 = vlaneseq
        %v2646 = vshrl.u32 %v2645, 7
        %v2647 = vsub.s32 1, %v2646
        %v2648 = vrot.slane %v2493, %v2647
        %v2652 = vlaneseq
        %v2653 = vshrl.u32 %v2652, 7
        %v2654 = vsub.s32 1, %v2653
        %v2655 = vrot.slane %v2640, %v2654
        %v2656 = vlaneseq
        %v2657 = vshrl.u32 %v2656, 7
        %v2658 = vsub.s32 1, %v2657
        %v2659 = vrot.slane %v2644, %v2658
        %v2660 = vlaneseq
        %v2661 = vshrl.u32 %v2660, 7
        %v2662 = vsub.s32 1, %v2661
        %v2663 = vrot.slane %v2648, %v2662
        %v2664 = vmul.f32 %v2623, %v2655
        %v2665 = vmul.f32 %v2623, %v2659
        %v2666 = vmul.f32 %v2623, %v2663
        %v2667 = vmul.f32 %v2627, %v2655
        %v2668 = vmul.f32 %v2627, %v2659
        %v2669 = vmul.f32 %v2627, %v2663
        %v2670 = vmul.f32 %v2631, %v2655
        %v2671 = vmul.f32 %v2631, %v2659
        %v2672 = vmul.f32 %v2631, %v2663
        %v2673 = vmul.f32 %v2635, %v2655
        %v2674 = vmul.f32 %v2635, %v2659
        %v2675 = vmul.f32 %v2635, %v2663
        %2688 = vrot.lane.b32.xlu0 %v2664, 110
        %v2689 = vpop.permute.xlu0 %2688
        %2690 = vrot.lane.b32.xlu0 %v2665, 110
        %v2691 = vpop.permute.xlu0 %2690
        %2692 = vrot.lane.b32.xlu0 %v2666, 110
        %v2693 = vpop.permute.xlu0 %2692
        %2694 = vrot.lane.b32.xlu0 %v2667, 110
        %v2695 = vpop.permute.xlu0 %2694
        %2696 = vrot.lane.b32.xlu0 %v2668, 110
        %v2697 = vpop.permute.xlu0 %2696
        %2698 = vrot.lane.b32.xlu0 %v2669, 110
        %v2699 = vpop.permute.xlu0 %2698
        %2700 = vrot.lane.b32.xlu0 %v2670, 110
        %v2701 = vpop.permute.xlu0 %2700
        %2702 = vrot.lane.b32.xlu0 %v2671, 110
        %v2703 = vpop.permute.xlu0 %2702
        %2704 = vrot.lane.b32.xlu0 %v2672, 110
        %v2705 = vpop.permute.xlu0 %2704
        %2706 = vrot.lane.b32.xlu0 %v2673, 110
        %v2707 = vpop.permute.xlu0 %2706
        %2708 = vrot.lane.b32.xlu0 %v2674, 110
        %v2709 = vpop.permute.xlu0 %2708
        %2710 = vrot.lane.b32.xlu0 %v2675, 110
        %v2711 = vpop.permute.xlu0 %2710
        %v2712 = vsel %vm2596, %v2689, %v2691
        %v2713 = vsel %vm2596, %v2691, %v2693
        %v2714 = vsel %vm2596, %v2695, %v2697
        %v2715 = vsel %vm2596, %v2697, %v2699
        %v2716 = vsel %vm2596, %v2701, %v2703
        %v2717 = vsel %vm2596, %v2703, %v2705
        %v2718 = vsel %vm2596, %v2707, %v2709
        %v2719 = vsel %vm2596, %v2709, %v2711
        %v2728 = vadd.f32 %v2613, %v2712
        %v2729 = vadd.f32 %v2614, %v2713
        %v2730 = vadd.f32 %v2615, %v2714
        %v2731 = vadd.f32 %v2616, %v2715
        %v2732 = vadd.f32 %v2617, %v2716
        %v2733 = vadd.f32 %v2618, %v2717
        %v2734 = vadd.f32 %v2619, %v2718
        %v2735 = vadd.f32 %v2620, %v2719
        %2736 = vset.pattern.permute.xlu0 2
        %2737 = vperm.xlu0 %2736, %v2495
        %v2738 = vpop.permute.xlu0 %2737
        %2740 = vset.pattern.permute.xlu0 2
        %2741 = vperm.xlu0 %2740, %v2496
        %v2742 = vpop.permute.xlu0 %2741
        %2744 = vset.pattern.permute.xlu0 2
        %2745 = vperm.xlu0 %2744, %v2497
        %v2746 = vpop.permute.xlu0 %2745
        %2748 = vset.pattern.permute.xlu0 2
        %2749 = vperm.xlu0 %2748, %v2498
        %v2750 = vpop.permute.xlu0 %2749
        %v2752 = vlaneseq
        %v2753 = vshrl.u32 %v2752, 7
        %v2754 = vsub.s32 2, %v2753
        %v2755 = vrot.slane %v2492, %v2754
        %v2756 = vlaneseq
        %v2757 = vshrl.u32 %v2756, 7
        %v2758 = vsub.s32 6, %v2757
        %v2759 = vrot.slane %v2492, %v2758
        %v2760 = vlaneseq
        %v2761 = vshrl.u32 %v2760, 7
        %v2762 = vsub.s32 2, %v2761
        %v2763 = vrot.slane %v2493, %v2762
        %v2767 = vlaneseq
        %v2768 = vshrl.u32 %v2767, 7
        %v2769 = vsub.s32 2, %v2768
        %v2770 = vrot.slane %v2755, %v2769
        %v2771 = vlaneseq
        %v2772 = vshrl.u32 %v2771, 7
        %v2773 = vsub.s32 2, %v2772
        %v2774 = vrot.slane %v2759, %v2773
        %v2775 = vlaneseq
        %v2776 = vshrl.u32 %v2775, 7
        %v2777 = vsub.s32 2, %v2776
        %v2778 = vrot.slane %v2763, %v2777
        %v2779 = vmul.f32 %v2738, %v2770
        %v2780 = vmul.f32 %v2738, %v2774
        %v2781 = vmul.f32 %v2738, %v2778
        %v2782 = vmul.f32 %v2742, %v2770
        %v2783 = vmul.f32 %v2742, %v2774
        %v2784 = vmul.f32 %v2742, %v2778
        %v2785 = vmul.f32 %v2746, %v2770
        %v2786 = vmul.f32 %v2746, %v2774
        %v2787 = vmul.f32 %v2746, %v2778
        %v2788 = vmul.f32 %v2750, %v2770
        %v2789 = vmul.f32 %v2750, %v2774
        %v2790 = vmul.f32 %v2750, %v2778
        %2803 = vrot.lane.b32.xlu0 %v2779, 110
        %v2804 = vpop.permute.xlu0 %2803
        %2805 = vrot.lane.b32.xlu0 %v2780, 110
        %v2806 = vpop.permute.xlu0 %2805
        %2807 = vrot.lane.b32.xlu0 %v2781, 110
        %v2808 = vpop.permute.xlu0 %2807
        %2809 = vrot.lane.b32.xlu0 %v2782, 110
        %v2810 = vpop.permute.xlu0 %2809
        %2811 = vrot.lane.b32.xlu0 %v2783, 110
        %v2812 = vpop.permute.xlu0 %2811
        %2813 = vrot.lane.b32.xlu0 %v2784, 110
        %v2814 = vpop.permute.xlu0 %2813
        %2815 = vrot.lane.b32.xlu0 %v2785, 110
        %v2816 = vpop.permute.xlu0 %2815
        %2817 = vrot.lane.b32.xlu0 %v2786, 110
        %v2818 = vpop.permute.xlu0 %2817
        %2819 = vrot.lane.b32.xlu0 %v2787, 110
        %v2820 = vpop.permute.xlu0 %2819
        %2821 = vrot.lane.b32.xlu0 %v2788, 110
        %v2822 = vpop.permute.xlu0 %2821
        %2823 = vrot.lane.b32.xlu0 %v2789, 110
        %v2824 = vpop.permute.xlu0 %2823
        %2825 = vrot.lane.b32.xlu0 %v2790, 110
        %v2826 = vpop.permute.xlu0 %2825
        %v2827 = vsel %vm2596, %v2804, %v2806
        %v2828 = vsel %vm2596, %v2806, %v2808
        %v2829 = vsel %vm2596, %v2810, %v2812
        %v2830 = vsel %vm2596, %v2812, %v2814
        %v2831 = vsel %vm2596, %v2816, %v2818
        %v2832 = vsel %vm2596, %v2818, %v2820
        %v2833 = vsel %vm2596, %v2822, %v2824
        %v2834 = vsel %vm2596, %v2824, %v2826
        %v2843 = vadd.f32 %v2728, %v2827
        %v2844 = vadd.f32 %v2729, %v2828
        %v2845 = vadd.f32 %v2730, %v2829
        %v2846 = vadd.f32 %v2731, %v2830
        %v2847 = vadd.f32 %v2732, %v2831
        %v2848 = vadd.f32 %v2733, %v2832
        %v2849 = vadd.f32 %v2734, %v2833
        %v2850 = vadd.f32 %v2735, %v2834
        %2851 = vset.pattern.permute.xlu0 3
        %2852 = vperm.xlu0 %2851, %v2495
        %v2853 = vpop.permute.xlu0 %2852
        %2855 = vset.pattern.permute.xlu0 3
        %2856 = vperm.xlu0 %2855, %v2496
        %v2857 = vpop.permute.xlu0 %2856
        %2859 = vset.pattern.permute.xlu0 3
        %2860 = vperm.xlu0 %2859, %v2497
        %v2861 = vpop.permute.xlu0 %2860
        %2863 = vset.pattern.permute.xlu0 3
        %2864 = vperm.xlu0 %2863, %v2498
        %v2865 = vpop.permute.xlu0 %2864
        %v2867 = vlaneseq
        %v2868 = vshrl.u32 %v2867, 7
        %v2869 = vsub.s32 3, %v2868
        %v2870 = vrot.slane %v2492, %v2869
        %v2871 = vlaneseq
        %v2872 = vshrl.u32 %v2871, 7
        %v2873 = vsub.s32 7, %v2872
        %v2874 = vrot.slane %v2492, %v2873
        %v2875 = vlaneseq
        %v2876 = vshrl.u32 %v2875, 7
        %v2877 = vsub.s32 3, %v2876
        %v2878 = vrot.slane %v2493, %v2877
        %v2882 = vlaneseq
        %v2883 = vshrl.u32 %v2882, 7
        %v2884 = vsub.s32 3, %v2883
        %v2885 = vrot.slane %v2870, %v2884
        %v2886 = vlaneseq
        %v2887 = vshrl.u32 %v2886, 7
        %v2888 = vsub.s32 3, %v2887
        %v2889 = vrot.slane %v2874, %v2888
        %v2890 = vlaneseq
        %v2891 = vshrl.u32 %v2890, 7
        %v2892 = vsub.s32 3, %v2891
        %v2893 = vrot.slane %v2878, %v2892
        %v2894 = vmul.f32 %v2853, %v2885
        %v2895 = vmul.f32 %v2853, %v2889
        %v2896 = vmul.f32 %v2853, %v2893
        %v2897 = vmul.f32 %v2857, %v2885
        %v2898 = vmul.f32 %v2857, %v2889
        %v2899 = vmul.f32 %v2857, %v2893
        %v2900 = vmul.f32 %v2861, %v2885
        %v2901 = vmul.f32 %v2861, %v2889
        %v2902 = vmul.f32 %v2861, %v2893
        %v2903 = vmul.f32 %v2865, %v2885
        %v2904 = vmul.f32 %v2865, %v2889
        %v2905 = vmul.f32 %v2865, %v2893
        %2918 = vrot.lane.b32.xlu0 %v2894, 110
        %v2919 = vpop.permute.xlu0 %2918
        %2920 = vrot.lane.b32.xlu0 %v2895, 110
        %v2921 = vpop.permute.xlu0 %2920
        %2922 = vrot.lane.b32.xlu0 %v2896, 110
        %v2923 = vpop.permute.xlu0 %2922
        %2924 = vrot.lane.b32.xlu0 %v2897, 110
        %v2925 = vpop.permute.xlu0 %2924
        %2926 = vrot.lane.b32.xlu0 %v2898, 110
        %v2927 = vpop.permute.xlu0 %2926
        %2928 = vrot.lane.b32.xlu0 %v2899, 110
        %v2929 = vpop.permute.xlu0 %2928
        %2930 = vrot.lane.b32.xlu0 %v2900, 110
        %v2931 = vpop.permute.xlu0 %2930
        %2932 = vrot.lane.b32.xlu0 %v2901, 110
        %v2933 = vpop.permute.xlu0 %2932
        %2934 = vrot.lane.b32.xlu0 %v2902, 110
        %v2935 = vpop.permute.xlu0 %2934
        %2936 = vrot.lane.b32.xlu0 %v2903, 110
        %v2937 = vpop.permute.xlu0 %2936
        %2938 = vrot.lane.b32.xlu0 %v2904, 110
        %v2939 = vpop.permute.xlu0 %2938
        %2940 = vrot.lane.b32.xlu0 %v2905, 110
        %v2941 = vpop.permute.xlu0 %2940
        %v2942 = vsel %vm2596, %v2919, %v2921
        %v2943 = vsel %vm2596, %v2921, %v2923
        %v2944 = vsel %vm2596, %v2925, %v2927
        %v2945 = vsel %vm2596, %v2927, %v2929
        %v2946 = vsel %vm2596, %v2931, %v2933
        %v2947 = vsel %vm2596, %v2933, %v2935
        %v2948 = vsel %vm2596, %v2937, %v2939
        %v2949 = vsel %vm2596, %v2939, %v2941
        %v2958 = vadd.f32 %v2843, %v2942
        %v2959 = vadd.f32 %v2844, %v2943
        %v2960 = vadd.f32 %v2845, %v2944
        %v2961 = vadd.f32 %v2846, %v2945
        %v2962 = vadd.f32 %v2847, %v2946
        %v2963 = vadd.f32 %v2848, %v2947
        %v2964 = vadd.f32 %v2849, %v2948
        %v2965 = vadd.f32 %v2850, %v2949
        %v2966 = vld [vmem:[#allocation2] sm:$0xff]
        %v2967 = vld [vmem:[#allocation2 + $0x8] sm:$0xf]
        %s2968 = scalar_lea.vmem %s5, 6
        %v2969 = vld [vmem:[%s2968] ss:$8 sm:$0x3]
        %v2971 = vlaneseq
        %v2972 = vshrl.u32 %v2971, 7
        %v2973 = vsub.s32 0, %v2972
        %v2974 = vrot.slane %v2969, %v2973
        %v2975 = vlaneseq
        %v2976 = vshrl.u32 %v2975, 7
        %v2977 = vsub.s32 1, %v2976
        %v2978 = vrot.slane %v2969, %v2977
        %v2979 = vcombine.low %v2974, %v2978
        %2980 = vrot.lane.b32.xlu0 %v2979, 32
        %v2981 = vpop.permute.xlu0 %2980
        %v2982 = vrot.slane %v2981, 4
        %vm2983 = vcmask 261120
        %v2984 = vsel %vm2983, %v2982, %v2981
        %v2987 = vmul.f32 %v2966, %v2984
        %v2988 = vmul.f32 %v2967, %v2982
        %s2989 = scalar_lea.vmem %s1, 192
        %v2990 = vld [vmem:[%s2989] sm:$0xff]
        %v2991 = vld [vmem:[%s2989 + $0x8] sm:$0xff]
        %v2992 = vld [vmem:[%s2989 + $0x10] sm:$0xff]
        %v2993 = vld [vmem:[%s2989 + $0x18] sm:$0xff]
        %2995 = vset.pattern.permute.xlu0 0
        %2996 = vperm.xlu0 %2995, %v2990
        %v2997 = vpop.permute.xlu0 %2996
        %3000 = vset.pattern.permute.xlu0 0
        %3001 = vperm.xlu0 %3000, %v2991
        %v3002 = vpop.permute.xlu0 %3001
        %3005 = vset.pattern.permute.xlu0 0
        %3006 = vperm.xlu0 %3005, %v2992
        %v3007 = vpop.permute.xlu0 %3006
        %3010 = vset.pattern.permute.xlu0 0
        %3011 = vperm.xlu0 %3010, %v2993
        %v3012 = vpop.permute.xlu0 %3011
        %v3016 = vlaneseq
        %v3017 = vshrl.u32 %v3016, 7
        %v3018 = vsub.s32 0, %v3017
        %v3019 = vrot.slane %v2987, %v3018
        %v3020 = vlaneseq
        %v3021 = vshrl.u32 %v3020, 7
        %v3022 = vsub.s32 4, %v3021
        %v3023 = vrot.slane %v2987, %v3022
        %v3024 = vlaneseq
        %v3025 = vshrl.u32 %v3024, 7
        %v3026 = vsub.s32 0, %v3025
        %v3027 = vrot.slane %v2988, %v3026
        %v3031 = vlaneseq
        %v3032 = vshrl.u32 %v3031, 7
        %v3033 = vsub.s32 0, %v3032
        %v3034 = vrot.slane %v3019, %v3033
        %v3035 = vlaneseq
        %v3036 = vshrl.u32 %v3035, 7
        %v3037 = vsub.s32 0, %v3036
        %v3038 = vrot.slane %v3023, %v3037
        %v3039 = vlaneseq
        %v3040 = vshrl.u32 %v3039, 7
        %v3041 = vsub.s32 0, %v3040
        %v3042 = vrot.slane %v3027, %v3041
        %v3043 = vmul.f32 %v2997, %v3034
        %v3044 = vmul.f32 %v2997, %v3038
        %v3045 = vmul.f32 %v2997, %v3042
        %v3046 = vmul.f32 %v3002, %v3034
        %v3047 = vmul.f32 %v3002, %v3038
        %v3048 = vmul.f32 %v3002, %v3042
        %v3049 = vmul.f32 %v3007, %v3034
        %v3050 = vmul.f32 %v3007, %v3038
        %v3051 = vmul.f32 %v3007, %v3042
        %v3052 = vmul.f32 %v3012, %v3034
        %v3053 = vmul.f32 %v3012, %v3038
        %v3054 = vmul.f32 %v3012, %v3042
        %3067 = vrot.lane.b32.xlu0 %v3043, 96
        %v3068 = vpop.permute.xlu0 %3067
        %3069 = vrot.lane.b32.xlu0 %v3044, 96
        %v3070 = vpop.permute.xlu0 %3069
        %3071 = vrot.lane.b32.xlu0 %v3045, 96
        %v3072 = vpop.permute.xlu0 %3071
        %3073 = vrot.lane.b32.xlu0 %v3046, 96
        %v3074 = vpop.permute.xlu0 %3073
        %3075 = vrot.lane.b32.xlu0 %v3047, 96
        %v3076 = vpop.permute.xlu0 %3075
        %3077 = vrot.lane.b32.xlu0 %v3048, 96
        %v3078 = vpop.permute.xlu0 %3077
        %3079 = vrot.lane.b32.xlu0 %v3049, 96
        %v3080 = vpop.permute.xlu0 %3079
        %3081 = vrot.lane.b32.xlu0 %v3050, 96
        %v3082 = vpop.permute.xlu0 %3081
        %3083 = vrot.lane.b32.xlu0 %v3051, 96
        %v3084 = vpop.permute.xlu0 %3083
        %3085 = vrot.lane.b32.xlu0 %v3052, 96
        %v3086 = vpop.permute.xlu0 %3085
        %3087 = vrot.lane.b32.xlu0 %v3053, 96
        %v3088 = vpop.permute.xlu0 %3087
        %3089 = vrot.lane.b32.xlu0 %v3054, 96
        %v3090 = vpop.permute.xlu0 %3089
        %vm3091 = vcmask 785408
        %v3092 = vsel %vm3091, %v3068, %v3070
        %v3093 = vsel %vm3091, %v3070, %v3072
        %v3094 = vsel %vm3091, %v3074, %v3076
        %v3095 = vsel %vm3091, %v3076, %v3078
        %v3096 = vsel %vm3091, %v3080, %v3082
        %v3097 = vsel %vm3091, %v3082, %v3084
        %v3098 = vsel %vm3091, %v3086, %v3088
        %v3099 = vsel %vm3091, %v3088, %v3090
        %v3108 = vadd.f32 %v2958, %v3092
        %v3109 = vadd.f32 %v2959, %v3093
        %v3110 = vadd.f32 %v2960, %v3094
        %v3111 = vadd.f32 %v2961, %v3095
        %v3112 = vadd.f32 %v2962, %v3096
        %v3113 = vadd.f32 %v2963, %v3097
        %v3114 = vadd.f32 %v2964, %v3098
        %v3115 = vadd.f32 %v2965, %v3099
        %3116 = vset.pattern.permute.xlu0 1
        %3117 = vperm.xlu0 %3116, %v2990
        %v3118 = vpop.permute.xlu0 %3117
        %3120 = vset.pattern.permute.xlu0 1
        %3121 = vperm.xlu0 %3120, %v2991
        %v3122 = vpop.permute.xlu0 %3121
        %3124 = vset.pattern.permute.xlu0 1
        %3125 = vperm.xlu0 %3124, %v2992
        %v3126 = vpop.permute.xlu0 %3125
        %3128 = vset.pattern.permute.xlu0 1
        %3129 = vperm.xlu0 %3128, %v2993
        %v3130 = vpop.permute.xlu0 %3129
        %v3132 = vlaneseq
        %v3133 = vshrl.u32 %v3132, 7
        %v3134 = vsub.s32 1, %v3133
        %v3135 = vrot.slane %v2987, %v3134
        %v3136 = vlaneseq
        %v3137 = vshrl.u32 %v3136, 7
        %v3138 = vsub.s32 5, %v3137
        %v3139 = vrot.slane %v2987, %v3138
        %v3140 = vlaneseq
        %v3141 = vshrl.u32 %v3140, 7
        %v3142 = vsub.s32 1, %v3141
        %v3143 = vrot.slane %v2988, %v3142
        %v3147 = vlaneseq
        %v3148 = vshrl.u32 %v3147, 7
        %v3149 = vsub.s32 1, %v3148
        %v3150 = vrot.slane %v3135, %v3149
        %v3151 = vlaneseq
        %v3152 = vshrl.u32 %v3151, 7
        %v3153 = vsub.s32 1, %v3152
        %v3154 = vrot.slane %v3139, %v3153
        %v3155 = vlaneseq
        %v3156 = vshrl.u32 %v3155, 7
        %v3157 = vsub.s32 1, %v3156
        %v3158 = vrot.slane %v3143, %v3157
        %v3159 = vmul.f32 %v3118, %v3150
        %v3160 = vmul.f32 %v3118, %v3154
        %v3161 = vmul.f32 %v3118, %v3158
        %v3162 = vmul.f32 %v3122, %v3150
        %v3163 = vmul.f32 %v3122, %v3154
        %v3164 = vmul.f32 %v3122, %v3158
        %v3165 = vmul.f32 %v3126, %v3150
        %v3166 = vmul.f32 %v3126, %v3154
        %v3167 = vmul.f32 %v3126, %v3158
        %v3168 = vmul.f32 %v3130, %v3150
        %v3169 = vmul.f32 %v3130, %v3154
        %v3170 = vmul.f32 %v3130, %v3158
        %3183 = vrot.lane.b32.xlu0 %v3159, 96
        %v3184 = vpop.permute.xlu0 %3183
        %3185 = vrot.lane.b32.xlu0 %v3160, 96
        %v3186 = vpop.permute.xlu0 %3185
        %3187 = vrot.lane.b32.xlu0 %v3161, 96
        %v3188 = vpop.permute.xlu0 %3187
        %3189 = vrot.lane.b32.xlu0 %v3162, 96
        %v3190 = vpop.permute.xlu0 %3189
        %3191 = vrot.lane.b32.xlu0 %v3163, 96
        %v3192 = vpop.permute.xlu0 %3191
        %3193 = vrot.lane.b32.xlu0 %v3164, 96
        %v3194 = vpop.permute.xlu0 %3193
        %3195 = vrot.lane.b32.xlu0 %v3165, 96
        %v3196 = vpop.permute.xlu0 %3195
        %3197 = vrot.lane.b32.xlu0 %v3166, 96
        %v3198 = vpop.permute.xlu0 %3197
        %3199 = vrot.lane.b32.xlu0 %v3167, 96
        %v3200 = vpop.permute.xlu0 %3199
        %3201 = vrot.lane.b32.xlu0 %v3168, 96
        %v3202 = vpop.permute.xlu0 %3201
        %3203 = vrot.lane.b32.xlu0 %v3169, 96
        %v3204 = vpop.permute.xlu0 %3203
        %3205 = vrot.lane.b32.xlu0 %v3170, 96
        %v3206 = vpop.permute.xlu0 %3205
        %v3207 = vsel %vm3091, %v3184, %v3186
        %v3208 = vsel %vm3091, %v3186, %v3188
        %v3209 = vsel %vm3091, %v3190, %v3192
        %v3210 = vsel %vm3091, %v3192, %v3194
        %v3211 = vsel %vm3091, %v3196, %v3198
        %v3212 = vsel %vm3091, %v3198, %v3200
        %v3213 = vsel %vm3091, %v3202, %v3204
        %v3214 = vsel %vm3091, %v3204, %v3206
        %v3223 = vadd.f32 %v3108, %v3207
        %v3224 = vadd.f32 %v3109, %v3208
        %v3225 = vadd.f32 %v3110, %v3209
        %v3226 = vadd.f32 %v3111, %v3210
        %v3227 = vadd.f32 %v3112, %v3211
        %v3228 = vadd.f32 %v3113, %v3212
        %v3229 = vadd.f32 %v3114, %v3213
        %v3230 = vadd.f32 %v3115, %v3214
        %3231 = vset.pattern.permute.xlu0 2
        %3232 = vperm.xlu0 %3231, %v2990
        %v3233 = vpop.permute.xlu0 %3232
        %3235 = vset.pattern.permute.xlu0 2
        %3236 = vperm.xlu0 %3235, %v2991
        %v3237 = vpop.permute.xlu0 %3236
        %3239 = vset.pattern.permute.xlu0 2
        %3240 = vperm.xlu0 %3239, %v2992
        %v3241 = vpop.permute.xlu0 %3240
        %3243 = vset.pattern.permute.xlu0 2
        %3244 = vperm.xlu0 %3243, %v2993
        %v3245 = vpop.permute.xlu0 %3244
        %v3247 = vlaneseq
        %v3248 = vshrl.u32 %v3247, 7
        %v3249 = vsub.s32 2, %v3248
        %v3250 = vrot.slane %v2987, %v3249
        %v3251 = vlaneseq
        %v3252 = vshrl.u32 %v3251, 7
        %v3253 = vsub.s32 6, %v3252
        %v3254 = vrot.slane %v2987, %v3253
        %v3255 = vlaneseq
        %v3256 = vshrl.u32 %v3255, 7
        %v3257 = vsub.s32 2, %v3256
        %v3258 = vrot.slane %v2988, %v3257
        %v3262 = vlaneseq
        %v3263 = vshrl.u32 %v3262, 7
        %v3264 = vsub.s32 2, %v3263
        %v3265 = vrot.slane %v3250, %v3264
        %v3266 = vlaneseq
        %v3267 = vshrl.u32 %v3266, 7
        %v3268 = vsub.s32 2, %v3267
        %v3269 = vrot.slane %v3254, %v3268
        %v3270 = vlaneseq
        %v3271 = vshrl.u32 %v3270, 7
        %v3272 = vsub.s32 2, %v3271
        %v3273 = vrot.slane %v3258, %v3272
        %v3274 = vmul.f32 %v3233, %v3265
        %v3275 = vmul.f32 %v3233, %v3269
        %v3276 = vmul.f32 %v3233, %v3273
        %v3277 = vmul.f32 %v3237, %v3265
        %v3278 = vmul.f32 %v3237, %v3269
        %v3279 = vmul.f32 %v3237, %v3273
        %v3280 = vmul.f32 %v3241, %v3265
        %v3281 = vmul.f32 %v3241, %v3269
        %v3282 = vmul.f32 %v3241, %v3273
        %v3283 = vmul.f32 %v3245, %v3265
        %v3284 = vmul.f32 %v3245, %v3269
        %v3285 = vmul.f32 %v3245, %v3273
        %3298 = vrot.lane.b32.xlu0 %v3274, 96
        %v3299 = vpop.permute.xlu0 %3298
        %3300 = vrot.lane.b32.xlu0 %v3275, 96
        %v3301 = vpop.permute.xlu0 %3300
        %3302 = vrot.lane.b32.xlu0 %v3276, 96
        %v3303 = vpop.permute.xlu0 %3302
        %3304 = vrot.lane.b32.xlu0 %v3277, 96
        %v3305 = vpop.permute.xlu0 %3304
        %3306 = vrot.lane.b32.xlu0 %v3278, 96
        %v3307 = vpop.permute.xlu0 %3306
        %3308 = vrot.lane.b32.xlu0 %v3279, 96
        %v3309 = vpop.permute.xlu0 %3308
        %3310 = vrot.lane.b32.xlu0 %v3280, 96
        %v3311 = vpop.permute.xlu0 %3310
        %3312 = vrot.lane.b32.xlu0 %v3281, 96
        %v3313 = vpop.permute.xlu0 %3312
        %3314 = vrot.lane.b32.xlu0 %v3282, 96
        %v3315 = vpop.permute.xlu0 %3314
        %3316 = vrot.lane.b32.xlu0 %v3283, 96
        %v3317 = vpop.permute.xlu0 %3316
        %3318 = vrot.lane.b32.xlu0 %v3284, 96
        %v3319 = vpop.permute.xlu0 %3318
        %3320 = vrot.lane.b32.xlu0 %v3285, 96
        %v3321 = vpop.permute.xlu0 %3320
        %v3322 = vsel %vm3091, %v3299, %v3301
        %v3323 = vsel %vm3091, %v3301, %v3303
        %v3324 = vsel %vm3091, %v3305, %v3307
        %v3325 = vsel %vm3091, %v3307, %v3309
        %v3326 = vsel %vm3091, %v3311, %v3313
        %v3327 = vsel %vm3091, %v3313, %v3315
        %v3328 = vsel %vm3091, %v3317, %v3319
        %v3329 = vsel %vm3091, %v3319, %v3321
        %v3338 = vadd.f32 %v3223, %v3322
        %v3339 = vadd.f32 %v3224, %v3323
        %v3340 = vadd.f32 %v3225, %v3324
        %v3341 = vadd.f32 %v3226, %v3325
        %v3342 = vadd.f32 %v3227, %v3326
        %v3343 = vadd.f32 %v3228, %v3327
        %v3344 = vadd.f32 %v3229, %v3328
        %v3345 = vadd.f32 %v3230, %v3329
        %3346 = vset.pattern.permute.xlu0 3
        %3347 = vperm.xlu0 %3346, %v2990
        %v3348 = vpop.permute.xlu0 %3347
        %3350 = vset.pattern.permute.xlu0 3
        %3351 = vperm.xlu0 %3350, %v2991
        %v3352 = vpop.permute.xlu0 %3351
        %3354 = vset.pattern.permute.xlu0 3
        %3355 = vperm.xlu0 %3354, %v2992
        %v3356 = vpop.permute.xlu0 %3355
        %3358 = vset.pattern.permute.xlu0 3
        %3359 = vperm.xlu0 %3358, %v2993
        %v3360 = vpop.permute.xlu0 %3359
        %v3362 = vlaneseq
        %v3363 = vshrl.u32 %v3362, 7
        %v3364 = vsub.s32 3, %v3363
        %v3365 = vrot.slane %v2987, %v3364
        %v3366 = vlaneseq
        %v3367 = vshrl.u32 %v3366, 7
        %v3368 = vsub.s32 7, %v3367
        %v3369 = vrot.slane %v2987, %v3368
        %v3370 = vlaneseq
        %v3371 = vshrl.u32 %v3370, 7
        %v3372 = vsub.s32 3, %v3371
        %v3373 = vrot.slane %v2988, %v3372
        %v3377 = vlaneseq
        %v3378 = vshrl.u32 %v3377, 7
        %v3379 = vsub.s32 3, %v3378
        %v3380 = vrot.slane %v3365, %v3379
        %v3381 = vlaneseq
        %v3382 = vshrl.u32 %v3381, 7
        %v3383 = vsub.s32 3, %v3382
        %v3384 = vrot.slane %v3369, %v3383
        %v3385 = vlaneseq
        %v3386 = vshrl.u32 %v3385, 7
        %v3387 = vsub.s32 3, %v3386
        %v3388 = vrot.slane %v3373, %v3387
        %v3389 = vmul.f32 %v3348, %v3380
        %v3390 = vmul.f32 %v3348, %v3384
        %v3391 = vmul.f32 %v3348, %v3388
        %v3392 = vmul.f32 %v3352, %v3380
        %v3393 = vmul.f32 %v3352, %v3384
        %v3394 = vmul.f32 %v3352, %v3388
        %v3395 = vmul.f32 %v3356, %v3380
        %v3396 = vmul.f32 %v3356, %v3384
        %v3397 = vmul.f32 %v3356, %v3388
        %v3398 = vmul.f32 %v3360, %v3380
        %v3399 = vmul.f32 %v3360, %v3384
        %v3400 = vmul.f32 %v3360, %v3388
        %3413 = vrot.lane.b32.xlu0 %v3389, 96
        %v3414 = vpop.permute.xlu0 %3413
        %3415 = vrot.lane.b32.xlu0 %v3390, 96
        %v3416 = vpop.permute.xlu0 %3415
        %3417 = vrot.lane.b32.xlu0 %v3391, 96
        %v3418 = vpop.permute.xlu0 %3417
        %3419 = vrot.lane.b32.xlu0 %v3392, 96
        %v3420 = vpop.permute.xlu0 %3419
        %3421 = vrot.lane.b32.xlu0 %v3393, 96
        %v3422 = vpop.permute.xlu0 %3421
        %3423 = vrot.lane.b32.xlu0 %v3394, 96
        %v3424 = vpop.permute.xlu0 %3423
        %3425 = vrot.lane.b32.xlu0 %v3395, 96
        %v3426 = vpop.permute.xlu0 %3425
        %3427 = vrot.lane.b32.xlu0 %v3396, 96
        %v3428 = vpop.permute.xlu0 %3427
        %3429 = vrot.lane.b32.xlu0 %v3397, 96
        %v3430 = vpop.permute.xlu0 %3429
        %3431 = vrot.lane.b32.xlu0 %v3398, 96
        %v3432 = vpop.permute.xlu0 %3431
        %3433 = vrot.lane.b32.xlu0 %v3399, 96
        %v3434 = vpop.permute.xlu0 %3433
        %3435 = vrot.lane.b32.xlu0 %v3400, 96
        %v3436 = vpop.permute.xlu0 %3435
        %v3437 = vsel %vm3091, %v3414, %v3416
        %v3438 = vsel %vm3091, %v3416, %v3418
        %v3439 = vsel %vm3091, %v3420, %v3422
        %v3440 = vsel %vm3091, %v3422, %v3424
        %v3441 = vsel %vm3091, %v3426, %v3428
        %v3442 = vsel %vm3091, %v3428, %v3430
        %v3443 = vsel %vm3091, %v3432, %v3434
        %v3444 = vsel %vm3091, %v3434, %v3436
        %v3453 = vadd.f32 %v3338, %v3437
        %v3454 = vadd.f32 %v3339, %v3438
        %v3455 = vadd.f32 %v3340, %v3439
        %v3456 = vadd.f32 %v3341, %v3440
        %v3457 = vadd.f32 %v3342, %v3441
        %v3458 = vadd.f32 %v3343, %v3442
        %v3459 = vadd.f32 %v3344, %v3443
        %v3460 = vadd.f32 %v3345, %v3444
        %v3461 = vld [vmem:[#allocation2] sm:$0xff]
        %v3462 = vld [vmem:[#allocation2 + $0x8] sm:$0xf]
        %s3463 = scalar_lea.vmem %s5, 7
        %v3464 = vld [vmem:[%s3463] ss:$8 sm:$0x3]
        %v3466 = vlaneseq
        %v3467 = vshrl.u32 %v3466, 7
        %v3468 = vsub.s32 0, %v3467
        %v3469 = vrot.slane %v3464, %v3468
        %v3470 = vlaneseq
        %v3471 = vshrl.u32 %v3470, 7
        %v3472 = vsub.s32 1, %v3471
        %v3473 = vrot.slane %v3464, %v3472
        %v3474 = vcombine.low %v3469, %v3473
        %3475 = vrot.lane.b32.xlu0 %v3474, 33
        %v3476 = vpop.permute.xlu0 %3475
        %v3477 = vrot.slane %v3476, 4
        %vm3478 = vcmask 269312
        %v3479 = vsel %vm3478, %v3477, %v3476
        %v3482 = vmul.f32 %v3461, %v3479
        %v3483 = vmul.f32 %v3462, %v3477
        %s3484 = scalar_lea.vmem %s1, 224
        %v3485 = vld [vmem:[%s3484] sm:$0xff]
        %v3486 = vld [vmem:[%s3484 + $0x8] sm:$0xff]
        %v3487 = vld [vmem:[%s3484 + $0x10] sm:$0xff]
        %v3488 = vld [vmem:[%s3484 + $0x18] sm:$0xff]
        %3490 = vset.pattern.permute.xlu0 0
        %3491 = vperm.xlu0 %3490, %v3485
        %v3492 = vpop.permute.xlu0 %3491
        %3495 = vset.pattern.permute.xlu0 0
        %3496 = vperm.xlu0 %3495, %v3486
        %v3497 = vpop.permute.xlu0 %3496
        %3500 = vset.pattern.permute.xlu0 0
        %3501 = vperm.xlu0 %3500, %v3487
        %v3502 = vpop.permute.xlu0 %3501
        %3505 = vset.pattern.permute.xlu0 0
        %3506 = vperm.xlu0 %3505, %v3488
        %v3507 = vpop.permute.xlu0 %3506
        %v3511 = vlaneseq
        %v3512 = vshrl.u32 %v3511, 7
        %v3513 = vsub.s32 0, %v3512
        %v3514 = vrot.slane %v3482, %v3513
        %v3515 = vlaneseq
        %v3516 = vshrl.u32 %v3515, 7
        %v3517 = vsub.s32 4, %v3516
        %v3518 = vrot.slane %v3482, %v3517
        %v3519 = vlaneseq
        %v3520 = vshrl.u32 %v3519, 7
        %v3521 = vsub.s32 0, %v3520
        %v3522 = vrot.slane %v3483, %v3521
        %v3526 = vlaneseq
        %v3527 = vshrl.u32 %v3526, 7
        %v3528 = vsub.s32 0, %v3527
        %v3529 = vrot.slane %v3514, %v3528
        %v3530 = vlaneseq
        %v3531 = vshrl.u32 %v3530, 7
        %v3532 = vsub.s32 0, %v3531
        %v3533 = vrot.slane %v3518, %v3532
        %v3534 = vlaneseq
        %v3535 = vshrl.u32 %v3534, 7
        %v3536 = vsub.s32 0, %v3535
        %v3537 = vrot.slane %v3522, %v3536
        %v3538 = vmul.f32 %v3492, %v3529
        %v3539 = vmul.f32 %v3492, %v3533
        %v3540 = vmul.f32 %v3492, %v3537
        %v3541 = vmul.f32 %v3497, %v3529
        %v3542 = vmul.f32 %v3497, %v3533
        %v3543 = vmul.f32 %v3497, %v3537
        %v3544 = vmul.f32 %v3502, %v3529
        %v3545 = vmul.f32 %v3502, %v3533
        %v3546 = vmul.f32 %v3502, %v3537
        %v3547 = vmul.f32 %v3507, %v3529
        %v3548 = vmul.f32 %v3507, %v3533
        %v3549 = vmul.f32 %v3507, %v3537
        %3562 = vrot.lane.b32.xlu0 %v3538, 95
        %v3563 = vpop.permute.xlu0 %3562
        %3564 = vrot.lane.b32.xlu0 %v3539, 95
        %v3565 = vpop.permute.xlu0 %3564
        %3566 = vrot.lane.b32.xlu0 %v3540, 95
        %v3567 = vpop.permute.xlu0 %3566
        %3568 = vrot.lane.b32.xlu0 %v3541, 95
        %v3569 = vpop.permute.xlu0 %3568
        %3570 = vrot.lane.b32.xlu0 %v3542, 95
        %v3571 = vpop.permute.xlu0 %3570
        %3572 = vrot.lane.b32.xlu0 %v3543, 95
        %v3573 = vpop.permute.xlu0 %3572
        %3574 = vrot.lane.b32.xlu0 %v3544, 95
        %v3575 = vpop.permute.xlu0 %3574
        %3576 = vrot.lane.b32.xlu0 %v3545, 95
        %v3577 = vpop.permute.xlu0 %3576
        %3578 = vrot.lane.b32.xlu0 %v3546, 95
        %v3579 = vpop.permute.xlu0 %3578
        %3580 = vrot.lane.b32.xlu0 %v3547, 95
        %v3581 = vpop.permute.xlu0 %3580
        %3582 = vrot.lane.b32.xlu0 %v3548, 95
        %v3583 = vpop.permute.xlu0 %3582
        %3584 = vrot.lane.b32.xlu0 %v3549, 95
        %v3585 = vpop.permute.xlu0 %3584
        %vm3586 = vcmask 777216
        %v3587 = vsel %vm3586, %v3563, %v3565
        %v3588 = vsel %vm3586, %v3565, %v3567
        %v3589 = vsel %vm3586, %v3569, %v3571
        %v3590 = vsel %vm3586, %v3571, %v3573
        %v3591 = vsel %vm3586, %v3575, %v3577
        %v3592 = vsel %vm3586, %v3577, %v3579
        %v3593 = vsel %vm3586, %v3581, %v3583
        %v3594 = vsel %vm3586, %v3583, %v3585
        %v3603 = vadd.f32 %v3453, %v3587
        %v3604 = vadd.f32 %v3454, %v3588
        %v3605 = vadd.f32 %v3455, %v3589
        %v3606 = vadd.f32 %v3456, %v3590
        %v3607 = vadd.f32 %v3457, %v3591
        %v3608 = vadd.f32 %v3458, %v3592
        %v3609 = vadd.f32 %v3459, %v3593
        %v3610 = vadd.f32 %v3460, %v3594
        %3611 = vset.pattern.permute.xlu0 1
        %3612 = vperm.xlu0 %3611, %v3485
        %v3613 = vpop.permute.xlu0 %3612
        %3615 = vset.pattern.permute.xlu0 1
        %3616 = vperm.xlu0 %3615, %v3486
        %v3617 = vpop.permute.xlu0 %3616
        %3619 = vset.pattern.permute.xlu0 1
        %3620 = vperm.xlu0 %3619, %v3487
        %v3621 = vpop.permute.xlu0 %3620
        %3623 = vset.pattern.permute.xlu0 1
        %3624 = vperm.xlu0 %3623, %v3488
        %v3625 = vpop.permute.xlu0 %3624
        %v3627 = vlaneseq
        %v3628 = vshrl.u32 %v3627, 7
        %v3629 = vsub.s32 1, %v3628
        %v3630 = vrot.slane %v3482, %v3629
        %v3631 = vlaneseq
        %v3632 = vshrl.u32 %v3631, 7
        %v3633 = vsub.s32 5, %v3632
        %v3634 = vrot.slane %v3482, %v3633
        %v3635 = vlaneseq
        %v3636 = vshrl.u32 %v3635, 7
        %v3637 = vsub.s32 1, %v3636
        %v3638 = vrot.slane %v3483, %v3637
        %v3642 = vlaneseq
        %v3643 = vshrl.u32 %v3642, 7
        %v3644 = vsub.s32 1, %v3643
        %v3645 = vrot.slane %v3630, %v3644
        %v3646 = vlaneseq
        %v3647 = vshrl.u32 %v3646, 7
        %v3648 = vsub.s32 1, %v3647
        %v3649 = vrot.slane %v3634, %v3648
        %v3650 = vlaneseq
        %v3651 = vshrl.u32 %v3650, 7
        %v3652 = vsub.s32 1, %v3651
        %v3653 = vrot.slane %v3638, %v3652
        %v3654 = vmul.f32 %v3613, %v3645
        %v3655 = vmul.f32 %v3613, %v3649
        %v3656 = vmul.f32 %v3613, %v3653
        %v3657 = vmul.f32 %v3617, %v3645
        %v3658 = vmul.f32 %v3617, %v3649
        %v3659 = vmul.f32 %v3617, %v3653
        %v3660 = vmul.f32 %v3621, %v3645
        %v3661 = vmul.f32 %v3621, %v3649
        %v3662 = vmul.f32 %v3621, %v3653
        %v3663 = vmul.f32 %v3625, %v3645
        %v3664 = vmul.f32 %v3625, %v3649
        %v3665 = vmul.f32 %v3625, %v3653
        %3678 = vrot.lane.b32.xlu0 %v3654, 95
        %v3679 = vpop.permute.xlu0 %3678
        %3680 = vrot.lane.b32.xlu0 %v3655, 95
        %v3681 = vpop.permute.xlu0 %3680
        %3682 = vrot.lane.b32.xlu0 %v3656, 95
        %v3683 = vpop.permute.xlu0 %3682
        %3684 = vrot.lane.b32.xlu0 %v3657, 95
        %v3685 = vpop.permute.xlu0 %3684
        %3686 = vrot.lane.b32.xlu0 %v3658, 95
        %v3687 = vpop.permute.xlu0 %3686
        %3688 = vrot.lane.b32.xlu0 %v3659, 95
        %v3689 = vpop.permute.xlu0 %3688
        %3690 = vrot.lane.b32.xlu0 %v3660, 95
        %v3691 = vpop.permute.xlu0 %3690
        %3692 = vrot.lane.b32.xlu0 %v3661, 95
        %v3693 = vpop.permute.xlu0 %3692
        %3694 = vrot.lane.b32.xlu0 %v3662, 95
        %v3695 = vpop.permute.xlu0 %3694
        %3696 = vrot.lane.b32.xlu0 %v3663, 95
        %v3697 = vpop.permute.xlu0 %3696
        %3698 = vrot.lane.b32.xlu0 %v3664, 95
        %v3699 = vpop.permute.xlu0 %3698
        %3700 = vrot.lane.b32.xlu0 %v3665, 95
        %v3701 = vpop.permute.xlu0 %3700
        %v3702 = vsel %vm3586, %v3679, %v3681
        %v3703 = vsel %vm3586, %v3681, %v3683
        %v3704 = vsel %vm3586, %v3685, %v3687
        %v3705 = vsel %vm3586, %v3687, %v3689
        %v3706 = vsel %vm3586, %v3691, %v3693
        %v3707 = vsel %vm3586, %v3693, %v3695
        %v3708 = vsel %vm3586, %v3697, %v3699
        %v3709 = vsel %vm3586, %v3699, %v3701
        %v3718 = vadd.f32 %v3603, %v3702
        %v3719 = vadd.f32 %v3604, %v3703
        %v3720 = vadd.f32 %v3605, %v3704
        %v3721 = vadd.f32 %v3606, %v3705
        %v3722 = vadd.f32 %v3607, %v3706
        %v3723 = vadd.f32 %v3608, %v3707
        %v3724 = vadd.f32 %v3609, %v3708
        %v3725 = vadd.f32 %v3610, %v3709
        %3726 = vset.pattern.permute.xlu0 2
        %3727 = vperm.xlu0 %3726, %v3485
        %v3728 = vpop.permute.xlu0 %3727
        %3730 = vset.pattern.permute.xlu0 2
        %3731 = vperm.xlu0 %3730, %v3486
        %v3732 = vpop.permute.xlu0 %3731
        %3734 = vset.pattern.permute.xlu0 2
        %3735 = vperm.xlu0 %3734, %v3487
        %v3736 = vpop.permute.xlu0 %3735
        %3738 = vset.pattern.permute.xlu0 2
        %3739 = vperm.xlu0 %3738, %v3488
        %v3740 = vpop.permute.xlu0 %3739
        %v3742 = vlaneseq
        %v3743 = vshrl.u32 %v3742, 7
        %v3744 = vsub.s32 2, %v3743
        %v3745 = vrot.slane %v3482, %v3744
        %v3746 = vlaneseq
        %v3747 = vshrl.u32 %v3746, 7
        %v3748 = vsub.s32 6, %v3747
        %v3749 = vrot.slane %v3482, %v3748
        %v3750 = vlaneseq
        %v3751 = vshrl.u32 %v3750, 7
        %v3752 = vsub.s32 2, %v3751
        %v3753 = vrot.slane %v3483, %v3752
        %v3757 = vlaneseq
        %v3758 = vshrl.u32 %v3757, 7
        %v3759 = vsub.s32 2, %v3758
        %v3760 = vrot.slane %v3745, %v3759
        %v3761 = vlaneseq
        %v3762 = vshrl.u32 %v3761, 7
        %v3763 = vsub.s32 2, %v3762
        %v3764 = vrot.slane %v3749, %v3763
        %v3765 = vlaneseq
        %v3766 = vshrl.u32 %v3765, 7
        %v3767 = vsub.s32 2, %v3766
        %v3768 = vrot.slane %v3753, %v3767
        %v3769 = vmul.f32 %v3728, %v3760
        %v3770 = vmul.f32 %v3728, %v3764
        %v3771 = vmul.f32 %v3728, %v3768
        %v3772 = vmul.f32 %v3732, %v3760
        %v3773 = vmul.f32 %v3732, %v3764
        %v3774 = vmul.f32 %v3732, %v3768
        %v3775 = vmul.f32 %v3736, %v3760
        %v3776 = vmul.f32 %v3736, %v3764
        %v3777 = vmul.f32 %v3736, %v3768
        %v3778 = vmul.f32 %v3740, %v3760
        %v3779 = vmul.f32 %v3740, %v3764
        %v3780 = vmul.f32 %v3740, %v3768
        %3793 = vrot.lane.b32.xlu0 %v3769, 95
        %v3794 = vpop.permute.xlu0 %3793
        %3795 = vrot.lane.b32.xlu0 %v3770, 95
        %v3796 = vpop.permute.xlu0 %3795
        %3797 = vrot.lane.b32.xlu0 %v3771, 95
        %v3798 = vpop.permute.xlu0 %3797
        %3799 = vrot.lane.b32.xlu0 %v3772, 95
        %v3800 = vpop.permute.xlu0 %3799
        %3801 = vrot.lane.b32.xlu0 %v3773, 95
        %v3802 = vpop.permute.xlu0 %3801
        %3803 = vrot.lane.b32.xlu0 %v3774, 95
        %v3804 = vpop.permute.xlu0 %3803
        %3805 = vrot.lane.b32.xlu0 %v3775, 95
        %v3806 = vpop.permute.xlu0 %3805
        %3807 = vrot.lane.b32.xlu0 %v3776, 95
        %v3808 = vpop.permute.xlu0 %3807
        %3809 = vrot.lane.b32.xlu0 %v3777, 95
        %v3810 = vpop.permute.xlu0 %3809
        %3811 = vrot.lane.b32.xlu0 %v3778, 95
        %v3812 = vpop.permute.xlu0 %3811
        %3813 = vrot.lane.b32.xlu0 %v3779, 95
        %v3814 = vpop.permute.xlu0 %3813
        %3815 = vrot.lane.b32.xlu0 %v3780, 95
        %v3816 = vpop.permute.xlu0 %3815
        %v3817 = vsel %vm3586, %v3794, %v3796
        %v3818 = vsel %vm3586, %v3796, %v3798
        %v3819 = vsel %vm3586, %v3800, %v3802
        %v3820 = vsel %vm3586, %v3802, %v3804
        %v3821 = vsel %vm3586, %v3806, %v3808
        %v3822 = vsel %vm3586, %v3808, %v3810
        %v3823 = vsel %vm3586, %v3812, %v3814
        %v3824 = vsel %vm3586, %v3814, %v3816
        %v3833 = vadd.f32 %v3718, %v3817
        %v3834 = vadd.f32 %v3719, %v3818
        %v3835 = vadd.f32 %v3720, %v3819
        %v3836 = vadd.f32 %v3721, %v3820
        %v3837 = vadd.f32 %v3722, %v3821
        %v3838 = vadd.f32 %v3723, %v3822
        %v3839 = vadd.f32 %v3724, %v3823
        %v3840 = vadd.f32 %v3725, %v3824
        %3841 = vset.pattern.permute.xlu0 3
        %3842 = vperm.xlu0 %3841, %v3485
        %v3843 = vpop.permute.xlu0 %3842
        %3845 = vset.pattern.permute.xlu0 3
        %3846 = vperm.xlu0 %3845, %v3486
        %v3847 = vpop.permute.xlu0 %3846
        %3849 = vset.pattern.permute.xlu0 3
        %3850 = vperm.xlu0 %3849, %v3487
        %v3851 = vpop.permute.xlu0 %3850
        %3853 = vset.pattern.permute.xlu0 3
        %3854 = vperm.xlu0 %3853, %v3488
        %v3855 = vpop.permute.xlu0 %3854
        %v3857 = vlaneseq
        %v3858 = vshrl.u32 %v3857, 7
        %v3859 = vsub.s32 3, %v3858
        %v3860 = vrot.slane %v3482, %v3859
        %v3861 = vlaneseq
        %v3862 = vshrl.u32 %v3861, 7
        %v3863 = vsub.s32 7, %v3862
        %v3864 = vrot.slane %v3482, %v3863
        %v3865 = vlaneseq
        %v3866 = vshrl.u32 %v3865, 7
        %v3867 = vsub.s32 3, %v3866
        %v3868 = vrot.slane %v3483, %v3867
        %v3872 = vlaneseq
        %v3873 = vshrl.u32 %v3872, 7
        %v3874 = vsub.s32 3, %v3873
        %v3875 = vrot.slane %v3860, %v3874
        %v3876 = vlaneseq
        %v3877 = vshrl.u32 %v3876, 7
        %v3878 = vsub.s32 3, %v3877
        %v3879 = vrot.slane %v3864, %v3878
        %v3880 = vlaneseq
        %v3881 = vshrl.u32 %v3880, 7
        %v3882 = vsub.s32 3, %v3881
        %v3883 = vrot.slane %v3868, %v3882
        %v3884 = vmul.f32 %v3843, %v3875
        %v3885 = vmul.f32 %v3843, %v3879
        %v3886 = vmul.f32 %v3843, %v3883
        %v3887 = vmul.f32 %v3847, %v3875
        %v3888 = vmul.f32 %v3847, %v3879
        %v3889 = vmul.f32 %v3847, %v3883
        %v3890 = vmul.f32 %v3851, %v3875
        %v3891 = vmul.f32 %v3851, %v3879
        %v3892 = vmul.f32 %v3851, %v3883
        %v3893 = vmul.f32 %v3855, %v3875
        %v3894 = vmul.f32 %v3855, %v3879
        %v3895 = vmul.f32 %v3855, %v3883
        %3908 = vrot.lane.b32.xlu0 %v3884, 95
        %v3909 = vpop.permute.xlu0 %3908
        %3910 = vrot.lane.b32.xlu0 %v3885, 95
        %v3911 = vpop.permute.xlu0 %3910
        %3912 = vrot.lane.b32.xlu0 %v3886, 95
        %v3913 = vpop.permute.xlu0 %3912
        %3914 = vrot.lane.b32.xlu0 %v3887, 95
        %v3915 = vpop.permute.xlu0 %3914
        %3916 = vrot.lane.b32.xlu0 %v3888, 95
        %v3917 = vpop.permute.xlu0 %3916
        %3918 = vrot.lane.b32.xlu0 %v3889, 95
        %v3919 = vpop.permute.xlu0 %3918
        %3920 = vrot.lane.b32.xlu0 %v3890, 95
        %v3921 = vpop.permute.xlu0 %3920
        %3922 = vrot.lane.b32.xlu0 %v3891, 95
        %v3923 = vpop.permute.xlu0 %3922
        %3924 = vrot.lane.b32.xlu0 %v3892, 95
        %v3925 = vpop.permute.xlu0 %3924
        %3926 = vrot.lane.b32.xlu0 %v3893, 95
        %v3927 = vpop.permute.xlu0 %3926
        %3928 = vrot.lane.b32.xlu0 %v3894, 95
        %v3929 = vpop.permute.xlu0 %3928
        %3930 = vrot.lane.b32.xlu0 %v3895, 95
        %v3931 = vpop.permute.xlu0 %3930
        %v3932 = vsel %vm3586, %v3909, %v3911
        %v3933 = vsel %vm3586, %v3911, %v3913
        %v3934 = vsel %vm3586, %v3915, %v3917
        %v3935 = vsel %vm3586, %v3917, %v3919
        %v3936 = vsel %vm3586, %v3921, %v3923
        %v3937 = vsel %vm3586, %v3923, %v3925
        %v3938 = vsel %vm3586, %v3927, %v3929
        %v3939 = vsel %vm3586, %v3929, %v3931
        %v3948 = vadd.f32 %v3833, %v3932
        %v3949 = vadd.f32 %v3834, %v3933
        %v3950 = vadd.f32 %v3835, %v3934
        %v3951 = vadd.f32 %v3836, %v3935
        %v3952 = vadd.f32 %v3837, %v3936
        %v3953 = vadd.f32 %v3838, %v3937
        %v3954 = vadd.f32 %v3839, %v3938
        %v3955 = vadd.f32 %v3840, %v3939
        %v3956 = vld [vmem:[#allocation2] sm:$0xff]
        %v3957 = vld [vmem:[#allocation2 + $0x8] sm:$0xf]
        %s3958 = scalar_lea.vmem %s5, 16
        %v3959 = vld [vmem:[%s3958] ss:$8 sm:$0x3]
        %v3961 = vlaneseq
        %v3962 = vshrl.u32 %v3961, 7
        %v3963 = vsub.s32 0, %v3962
        %v3964 = vrot.slane %v3959, %v3963
        %v3965 = vlaneseq
        %v3966 = vshrl.u32 %v3965, 7
        %v3967 = vsub.s32 1, %v3966
        %v3968 = vrot.slane %v3959, %v3967
        %v3969 = vcombine.low %v3964, %v3968
        %3970 = vrot.lane.b32.xlu0 %v3969, 34
        %v3971 = vpop.permute.xlu0 %3970
        %v3972 = vrot.slane %v3971, 4
        %vm3973 = vcmask 277504
        %v3974 = vsel %vm3973, %v3972, %v3971
        %v3977 = vmul.f32 %v3956, %v3974
        %v3978 = vmul.f32 %v3957, %v3972
        %s3979 = scalar_lea.vmem %s1, 256
        %v3980 = vld [vmem:[%s3979] sm:$0xff]
        %v3981 = vld [vmem:[%s3979 + $0x8] sm:$0xff]
        %v3982 = vld [vmem:[%s3979 + $0x10] sm:$0xff]
        %v3983 = vld [vmem:[%s3979 + $0x18] sm:$0xff]
        %3985 = vset.pattern.permute.xlu0 0
        %3986 = vperm.xlu0 %3985, %v3980
        %v3987 = vpop.permute.xlu0 %3986
        %3990 = vset.pattern.permute.xlu0 0
        %3991 = vperm.xlu0 %3990, %v3981
        %v3992 = vpop.permute.xlu0 %3991
        %3995 = vset.pattern.permute.xlu0 0
        %3996 = vperm.xlu0 %3995, %v3982
        %v3997 = vpop.permute.xlu0 %3996
        %4000 = vset.pattern.permute.xlu0 0
        %4001 = vperm.xlu0 %4000, %v3983
        %v4002 = vpop.permute.xlu0 %4001
        %v4006 = vlaneseq
        %v4007 = vshrl.u32 %v4006, 7
        %v4008 = vsub.s32 0, %v4007
        %v4009 = vrot.slane %v3977, %v4008
        %v4010 = vlaneseq
        %v4011 = vshrl.u32 %v4010, 7
        %v4012 = vsub.s32 4, %v4011
        %v4013 = vrot.slane %v3977, %v4012
        %v4014 = vlaneseq
        %v4015 = vshrl.u32 %v4014, 7
        %v4016 = vsub.s32 0, %v4015
        %v4017 = vrot.slane %v3978, %v4016
        %v4021 = vlaneseq
        %v4022 = vshrl.u32 %v4021, 7
        %v4023 = vsub.s32 0, %v4022
        %v4024 = vrot.slane %v4009, %v4023
        %v4025 = vlaneseq
        %v4026 = vshrl.u32 %v4025, 7
        %v4027 = vsub.s32 0, %v4026
        %v4028 = vrot.slane %v4013, %v4027
        %v4029 = vlaneseq
        %v4030 = vshrl.u32 %v4029, 7
        %v4031 = vsub.s32 0, %v4030
        %v4032 = vrot.slane %v4017, %v4031
        %v4033 = vmul.f32 %v3987, %v4024
        %v4034 = vmul.f32 %v3987, %v4028
        %v4035 = vmul.f32 %v3987, %v4032
        %v4036 = vmul.f32 %v3992, %v4024
        %v4037 = vmul.f32 %v3992, %v4028
        %v4038 = vmul.f32 %v3992, %v4032
        %v4039 = vmul.f32 %v3997, %v4024
        %v4040 = vmul.f32 %v3997, %v4028
        %v4041 = vmul.f32 %v3997, %v4032
        %v4042 = vmul.f32 %v4002, %v4024
        %v4043 = vmul.f32 %v4002, %v4028
        %v4044 = vmul.f32 %v4002, %v4032
        %4057 = vrot.lane.b32.xlu0 %v4033, 94
        %v4058 = vpop.permute.xlu0 %4057
        %4059 = vrot.lane.b32.xlu0 %v4034, 94
        %v4060 = vpop.permute.xlu0 %4059
        %4061 = vrot.lane.b32.xlu0 %v4035, 94
        %v4062 = vpop.permute.xlu0 %4061
        %4063 = vrot.lane.b32.xlu0 %v4036, 94
        %v4064 = vpop.permute.xlu0 %4063
        %4065 = vrot.lane.b32.xlu0 %v4037, 94
        %v4066 = vpop.permute.xlu0 %4065
        %4067 = vrot.lane.b32.xlu0 %v4038, 94
        %v4068 = vpop.permute.xlu0 %4067
        %4069 = vrot.lane.b32.xlu0 %v4039, 94
        %v4070 = vpop.permute.xlu0 %4069
        %4071 = vrot.lane.b32.xlu0 %v4040, 94
        %v4072 = vpop.permute.xlu0 %4071
        %4073 = vrot.lane.b32.xlu0 %v4041, 94
        %v4074 = vpop.permute.xlu0 %4073
        %4075 = vrot.lane.b32.xlu0 %v4042, 94
        %v4076 = vpop.permute.xlu0 %4075
        %4077 = vrot.lane.b32.xlu0 %v4043, 94
        %v4078 = vpop.permute.xlu0 %4077
        %4079 = vrot.lane.b32.xlu0 %v4044, 94
        %v4080 = vpop.permute.xlu0 %4079
        %vm4081 = vcmask 769024
        %v4082 = vsel %vm4081, %v4058, %v4060
        %v4083 = vsel %vm4081, %v4060, %v4062
        %v4084 = vsel %vm4081, %v4064, %v4066
        %v4085 = vsel %vm4081, %v4066, %v4068
        %v4086 = vsel %vm4081, %v4070, %v4072
        %v4087 = vsel %vm4081, %v4072, %v4074
        %v4088 = vsel %vm4081, %v4076, %v4078
        %v4089 = vsel %vm4081, %v4078, %v4080
        %v4098 = vadd.f32 %v3948, %v4082
        %v4099 = vadd.f32 %v3949, %v4083
        %v4100 = vadd.f32 %v3950, %v4084
        %v4101 = vadd.f32 %v3951, %v4085
        %v4102 = vadd.f32 %v3952, %v4086
        %v4103 = vadd.f32 %v3953, %v4087
        %v4104 = vadd.f32 %v3954, %v4088
        %v4105 = vadd.f32 %v3955, %v4089
        %4106 = vset.pattern.permute.xlu0 1
        %4107 = vperm.xlu0 %4106, %v3980
        %v4108 = vpop.permute.xlu0 %4107
        %4110 = vset.pattern.permute.xlu0 1
        %4111 = vperm.xlu0 %4110, %v3981
        %v4112 = vpop.permute.xlu0 %4111
        %4114 = vset.pattern.permute.xlu0 1
        %4115 = vperm.xlu0 %4114, %v3982
        %v4116 = vpop.permute.xlu0 %4115
        %4118 = vset.pattern.permute.xlu0 1
        %4119 = vperm.xlu0 %4118, %v3983
        %v4120 = vpop.permute.xlu0 %4119
        %v4122 = vlaneseq
        %v4123 = vshrl.u32 %v4122, 7
        %v4124 = vsub.s32 1, %v4123
        %v4125 = vrot.slane %v3977, %v4124
        %v4126 = vlaneseq
        %v4127 = vshrl.u32 %v4126, 7
        %v4128 = vsub.s32 5, %v4127
        %v4129 = vrot.slane %v3977, %v4128
        %v4130 = vlaneseq
        %v4131 = vshrl.u32 %v4130, 7
        %v4132 = vsub.s32 1, %v4131
        %v4133 = vrot.slane %v3978, %v4132
        %v4137 = vlaneseq
        %v4138 = vshrl.u32 %v4137, 7
        %v4139 = vsub.s32 1, %v4138
        %v4140 = vrot.slane %v4125, %v4139
        %v4141 = vlaneseq
        %v4142 = vshrl.u32 %v4141, 7
        %v4143 = vsub.s32 1, %v4142
        %v4144 = vrot.slane %v4129, %v4143
        %v4145 = vlaneseq
        %v4146 = vshrl.u32 %v4145, 7
        %v4147 = vsub.s32 1, %v4146
        %v4148 = vrot.slane %v4133, %v4147
        %v4149 = vmul.f32 %v4108, %v4140
        %v4150 = vmul.f32 %v4108, %v4144
        %v4151 = vmul.f32 %v4108, %v4148
        %v4152 = vmul.f32 %v4112, %v4140
        %v4153 = vmul.f32 %v4112, %v4144
        %v4154 = vmul.f32 %v4112, %v4148
        %v4155 = vmul.f32 %v4116, %v4140
        %v4156 = vmul.f32 %v4116, %v4144
        %v4157 = vmul.f32 %v4116, %v4148
        %v4158 = vmul.f32 %v4120, %v4140
        %v4159 = vmul.f32 %v4120, %v4144
        %v4160 = vmul.f32 %v4120, %v4148
        %4173 = vrot.lane.b32.xlu0 %v4149, 94
        %v4174 = vpop.permute.xlu0 %4173
        %4175 = vrot.lane.b32.xlu0 %v4150, 94
        %v4176 = vpop.permute.xlu0 %4175
        %4177 = vrot.lane.b32.xlu0 %v4151, 94
        %v4178 = vpop.permute.xlu0 %4177
        %4179 = vrot.lane.b32.xlu0 %v4152, 94
        %v4180 = vpop.permute.xlu0 %4179
        %4181 = vrot.lane.b32.xlu0 %v4153, 94
        %v4182 = vpop.permute.xlu0 %4181
        %4183 = vrot.lane.b32.xlu0 %v4154, 94
        %v4184 = vpop.permute.xlu0 %4183
        %4185 = vrot.lane.b32.xlu0 %v4155, 94
        %v4186 = vpop.permute.xlu0 %4185
        %4187 = vrot.lane.b32.xlu0 %v4156, 94
        %v4188 = vpop.permute.xlu0 %4187
        %4189 = vrot.lane.b32.xlu0 %v4157, 94
        %v4190 = vpop.permute.xlu0 %4189
        %4191 = vrot.lane.b32.xlu0 %v4158, 94
        %v4192 = vpop.permute.xlu0 %4191
        %4193 = vrot.lane.b32.xlu0 %v4159, 94
        %v4194 = vpop.permute.xlu0 %4193
        %4195 = vrot.lane.b32.xlu0 %v4160, 94
        %v4196 = vpop.permute.xlu0 %4195
        %v4197 = vsel %vm4081, %v4174, %v4176
        %v4198 = vsel %vm4081, %v4176, %v4178
        %v4199 = vsel %vm4081, %v4180, %v4182
        %v4200 = vsel %vm4081, %v4182, %v4184
        %v4201 = vsel %vm4081, %v4186, %v4188
        %v4202 = vsel %vm4081, %v4188, %v4190
        %v4203 = vsel %vm4081, %v4192, %v4194
        %v4204 = vsel %vm4081, %v4194, %v4196
        %v4213 = vadd.f32 %v4098, %v4197
        %v4214 = vadd.f32 %v4099, %v4198
        %v4215 = vadd.f32 %v4100, %v4199
        %v4216 = vadd.f32 %v4101, %v4200
        %v4217 = vadd.f32 %v4102, %v4201
        %v4218 = vadd.f32 %v4103, %v4202
        %v4219 = vadd.f32 %v4104, %v4203
        %v4220 = vadd.f32 %v4105, %v4204
        %4221 = vset.pattern.permute.xlu0 2
        %4222 = vperm.xlu0 %4221, %v3980
        %v4223 = vpop.permute.xlu0 %4222
        %4225 = vset.pattern.permute.xlu0 2
        %4226 = vperm.xlu0 %4225, %v3981
        %v4227 = vpop.permute.xlu0 %4226
        %4229 = vset.pattern.permute.xlu0 2
        %4230 = vperm.xlu0 %4229, %v3982
        %v4231 = vpop.permute.xlu0 %4230
        %4233 = vset.pattern.permute.xlu0 2
        %4234 = vperm.xlu0 %4233, %v3983
        %v4235 = vpop.permute.xlu0 %4234
        %v4237 = vlaneseq
        %v4238 = vshrl.u32 %v4237, 7
        %v4239 = vsub.s32 2, %v4238
        %v4240 = vrot.slane %v3977, %v4239
        %v4241 = vlaneseq
        %v4242 = vshrl.u32 %v4241, 7
        %v4243 = vsub.s32 6, %v4242
        %v4244 = vrot.slane %v3977, %v4243
        %v4245 = vlaneseq
        %v4246 = vshrl.u32 %v4245, 7
        %v4247 = vsub.s32 2, %v4246
        %v4248 = vrot.slane %v3978, %v4247
        %v4252 = vlaneseq
        %v4253 = vshrl.u32 %v4252, 7
        %v4254 = vsub.s32 2, %v4253
        %v4255 = vrot.slane %v4240, %v4254
        %v4256 = vlaneseq
        %v4257 = vshrl.u32 %v4256, 7
        %v4258 = vsub.s32 2, %v4257
        %v4259 = vrot.slane %v4244, %v4258
        %v4260 = vlaneseq
        %v4261 = vshrl.u32 %v4260, 7
        %v4262 = vsub.s32 2, %v4261
        %v4263 = vrot.slane %v4248, %v4262
        %v4264 = vmul.f32 %v4223, %v4255
        %v4265 = vmul.f32 %v4223, %v4259
        %v4266 = vmul.f32 %v4223, %v4263
        %v4267 = vmul.f32 %v4227, %v4255
        %v4268 = vmul.f32 %v4227, %v4259
        %v4269 = vmul.f32 %v4227, %v4263
        %v4270 = vmul.f32 %v4231, %v4255
        %v4271 = vmul.f32 %v4231, %v4259
        %v4272 = vmul.f32 %v4231, %v4263
        %v4273 = vmul.f32 %v4235, %v4255
        %v4274 = vmul.f32 %v4235, %v4259
        %v4275 = vmul.f32 %v4235, %v4263
        %4288 = vrot.lane.b32.xlu0 %v4264, 94
        %v4289 = vpop.permute.xlu0 %4288
        %4290 = vrot.lane.b32.xlu0 %v4265, 94
        %v4291 = vpop.permute.xlu0 %4290
        %4292 = vrot.lane.b32.xlu0 %v4266, 94
        %v4293 = vpop.permute.xlu0 %4292
        %4294 = vrot.lane.b32.xlu0 %v4267, 94
        %v4295 = vpop.permute.xlu0 %4294
        %4296 = vrot.lane.b32.xlu0 %v4268, 94
        %v4297 = vpop.permute.xlu0 %4296
        %4298 = vrot.lane.b32.xlu0 %v4269, 94
        %v4299 = vpop.permute.xlu0 %4298
        %4300 = vrot.lane.b32.xlu0 %v4270, 94
        %v4301 = vpop.permute.xlu0 %4300
        %4302 = vrot.lane.b32.xlu0 %v4271, 94
        %v4303 = vpop.permute.xlu0 %4302
        %4304 = vrot.lane.b32.xlu0 %v4272, 94
        %v4305 = vpop.permute.xlu0 %4304
        %4306 = vrot.lane.b32.xlu0 %v4273, 94
        %v4307 = vpop.permute.xlu0 %4306
        %4308 = vrot.lane.b32.xlu0 %v4274, 94
        %v4309 = vpop.permute.xlu0 %4308
        %4310 = vrot.lane.b32.xlu0 %v4275, 94
        %v4311 = vpop.permute.xlu0 %4310
        %v4312 = vsel %vm4081, %v4289, %v4291
        %v4313 = vsel %vm4081, %v4291, %v4293
        %v4314 = vsel %vm4081, %v4295, %v4297
        %v4315 = vsel %vm4081, %v4297, %v4299
        %v4316 = vsel %vm4081, %v4301, %v4303
        %v4317 = vsel %vm4081, %v4303, %v4305
        %v4318 = vsel %vm4081, %v4307, %v4309
        %v4319 = vsel %vm4081, %v4309, %v4311
        %v4328 = vadd.f32 %v4213, %v4312
        %v4329 = vadd.f32 %v4214, %v4313
        %v4330 = vadd.f32 %v4215, %v4314
        %v4331 = vadd.f32 %v4216, %v4315
        %v4332 = vadd.f32 %v4217, %v4316
        %v4333 = vadd.f32 %v4218, %v4317
        %v4334 = vadd.f32 %v4219, %v4318
        %v4335 = vadd.f32 %v4220, %v4319
        %4336 = vset.pattern.permute.xlu0 3
        %4337 = vperm.xlu0 %4336, %v3980
        %v4338 = vpop.permute.xlu0 %4337
        %4340 = vset.pattern.permute.xlu0 3
        %4341 = vperm.xlu0 %4340, %v3981
        %v4342 = vpop.permute.xlu0 %4341
        %4344 = vset.pattern.permute.xlu0 3
        %4345 = vperm.xlu0 %4344, %v3982
        %v4346 = vpop.permute.xlu0 %4345
        %4348 = vset.pattern.permute.xlu0 3
        %4349 = vperm.xlu0 %4348, %v3983
        %v4350 = vpop.permute.xlu0 %4349
        %v4352 = vlaneseq
        %v4353 = vshrl.u32 %v4352, 7
        %v4354 = vsub.s32 3, %v4353
        %v4355 = vrot.slane %v3977, %v4354
        %v4356 = vlaneseq
        %v4357 = vshrl.u32 %v4356, 7
        %v4358 = vsub.s32 7, %v4357
        %v4359 = vrot.slane %v3977, %v4358
        %v4360 = vlaneseq
        %v4361 = vshrl.u32 %v4360, 7
        %v4362 = vsub.s32 3, %v4361
        %v4363 = vrot.slane %v3978, %v4362
        %v4367 = vlaneseq
        %v4368 = vshrl.u32 %v4367, 7
        %v4369 = vsub.s32 3, %v4368
        %v4370 = vrot.slane %v4355, %v4369
        %v4371 = vlaneseq
        %v4372 = vshrl.u32 %v4371, 7
        %v4373 = vsub.s32 3, %v4372
        %v4374 = vrot.slane %v4359, %v4373
        %v4375 = vlaneseq
        %v4376 = vshrl.u32 %v4375, 7
        %v4377 = vsub.s32 3, %v4376
        %v4378 = vrot.slane %v4363, %v4377
        %v4379 = vmul.f32 %v4338, %v4370
        %v4380 = vmul.f32 %v4338, %v4374
        %v4381 = vmul.f32 %v4338, %v4378
        %v4382 = vmul.f32 %v4342, %v4370
        %v4383 = vmul.f32 %v4342, %v4374
        %v4384 = vmul.f32 %v4342, %v4378
        %v4385 = vmul.f32 %v4346, %v4370
        %v4386 = vmul.f32 %v4346, %v4374
        %v4387 = vmul.f32 %v4346, %v4378
        %v4388 = vmul.f32 %v4350, %v4370
        %v4389 = vmul.f32 %v4350, %v4374
        %v4390 = vmul.f32 %v4350, %v4378
        %4403 = vrot.lane.b32.xlu0 %v4379, 94
        %v4404 = vpop.permute.xlu0 %4403
        %4405 = vrot.lane.b32.xlu0 %v4380, 94
        %v4406 = vpop.permute.xlu0 %4405
        %4407 = vrot.lane.b32.xlu0 %v4381, 94
        %v4408 = vpop.permute.xlu0 %4407
        %4409 = vrot.lane.b32.xlu0 %v4382, 94
        %v4410 = vpop.permute.xlu0 %4409
        %4411 = vrot.lane.b32.xlu0 %v4383, 94
        %v4412 = vpop.permute.xlu0 %4411
        %4413 = vrot.lane.b32.xlu0 %v4384, 94
        %v4414 = vpop.permute.xlu0 %4413
        %4415 = vrot.lane.b32.xlu0 %v4385, 94
        %v4416 = vpop.permute.xlu0 %4415
        %4417 = vrot.lane.b32.xlu0 %v4386, 94
        %v4418 = vpop.permute.xlu0 %4417
        %4419 = vrot.lane.b32.xlu0 %v4387, 94
        %v4420 = vpop.permute.xlu0 %4419
        %4421 = vrot.lane.b32.xlu0 %v4388, 94
        %v4422 = vpop.permute.xlu0 %4421
        %4423 = vrot.lane.b32.xlu0 %v4389, 94
        %v4424 = vpop.permute.xlu0 %4423
        %4425 = vrot.lane.b32.xlu0 %v4390, 94
        %v4426 = vpop.permute.xlu0 %4425
        %v4427 = vsel %vm4081, %v4404, %v4406
        %v4428 = vsel %vm4081, %v4406, %v4408
        %v4429 = vsel %vm4081, %v4410, %v4412
        %v4430 = vsel %vm4081, %v4412, %v4414
        %v4431 = vsel %vm4081, %v4416, %v4418
        %v4432 = vsel %vm4081, %v4418, %v4420
        %v4433 = vsel %vm4081, %v4422, %v4424
        %v4434 = vsel %vm4081, %v4424, %v4426
        %v4443 = vadd.f32 %v4328, %v4427
        %v4444 = vadd.f32 %v4329, %v4428
        %v4445 = vadd.f32 %v4330, %v4429
        %v4446 = vadd.f32 %v4331, %v4430
        %v4447 = vadd.f32 %v4332, %v4431
        %v4448 = vadd.f32 %v4333, %v4432
        %v4449 = vadd.f32 %v4334, %v4433
        %v4450 = vadd.f32 %v4335, %v4434
        %v4451 = vld [vmem:[%s2] sm:$0xff]
        %v4452 = vld [vmem:[%s2 + $0x8] sm:$0xff]
        %v4453 = vld [vmem:[%s2 + $0x10] sm:$0xff]
        %v4454 = vld [vmem:[%s2 + $0x18] sm:$0xff]
        %4456 = vset.pattern.permute.xlu0 0
        %4457 = vperm.xlu0 %4456, %v4451
        %v4458 = vpop.permute.xlu0 %4457
        %4461 = vset.pattern.permute.xlu0 0
        %4462 = vperm.xlu0 %4461, %v4452
        %v4463 = vpop.permute.xlu0 %4462
        %4466 = vset.pattern.permute.xlu0 0
        %4467 = vperm.xlu0 %4466, %v4453
        %v4468 = vpop.permute.xlu0 %4467
        %4471 = vset.pattern.permute.xlu0 0
        %4472 = vperm.xlu0 %4471, %v4454
        %v4473 = vpop.permute.xlu0 %4472
        %v4475 = vadd.f32 %v4443, %v4458
        %v4476 = vadd.f32 %v4444, %v4458
        %v4477 = vadd.f32 %v4445, %v4463
        %v4478 = vadd.f32 %v4446, %v4463
        %v4479 = vadd.f32 %v4447, %v4468
        %v4480 = vadd.f32 %v4448, %v4468
        %v4481 = vadd.f32 %v4449, %v4473
        %v4482 = vadd.f32 %v4450, %v4473
        %v4483 = vmax.f32 %v4475, 0.0
        %v4484 = vmax.f32 %v4476, 0.0
        %v4485 = vmax.f32 %v4477, 0.0
        %v4486 = vmax.f32 %v4478, 0.0
        %v4487 = vmax.f32 %v4479, 0.0
        %v4488 = vmax.f32 %v4480, 0.0
        %v4489 = vmax.f32 %v4481, 0.0
        %v4490 = vmax.f32 %v4482, 0.0
        %v4491 = vld [vmem:[%s3] sm:$0xf]
        %4493 = vset.pattern.permute.xlu0 0
        %4494 = vperm.xlu0 %4493, %v4491
        %v4495 = vpop.permute.xlu0 %4494
        %v4497 = vlaneseq
        %v4498 = vshrl.u32 %v4497, 7
        %v4499 = vsub.s32 0, %v4498
        %v4500 = vrot.slane %v4483, %v4499
        %v4501 = vlaneseq
        %v4502 = vshrl.u32 %v4501, 7
        %v4503 = vsub.s32 0, %v4502
        %v4504 = vrot.slane %v4484, %v4503
        %v4505 = vmul.f32 %v4495, %v4500
        %v4506 = vmul.f32 %v4495, %v4504
        %v4507 = vadd.f32 %v4505, 0.0
        %v4508 = vadd.f32 %v4506, 0.0
        %4509 = vset.pattern.permute.xlu0 1
        %4510 = vperm.xlu0 %4509, %v4491
        %v4511 = vpop.permute.xlu0 %4510
        %v4513 = vlaneseq
        %v4514 = vshrl.u32 %v4513, 7
        %v4515 = vsub.s32 1, %v4514
        %v4516 = vrot.slane %v4483, %v4515
        %v4517 = vlaneseq
        %v4518 = vshrl.u32 %v4517, 7
        %v4519 = vsub.s32 1, %v4518
        %v4520 = vrot.slane %v4484, %v4519
        %v4521 = vmul.f32 %v4511, %v4516
        %v4522 = vmul.f32 %v4511, %v4520
        %v4523 = vadd.f32 %v4507, %v4521
        %v4524 = vadd.f32 %v4508, %v4522
        %4525 = vset.pattern.permute.xlu0 2
        %4526 = vperm.xlu0 %4525, %v4491
        %v4527 = vpop.permute.xlu0 %4526
        %v4529 = vlaneseq
        %v4530 = vshrl.u32 %v4529, 7
        %v4531 = vsub.s32 2, %v4530
        %v4532 = vrot.slane %v4483, %v4531
        %v4533 = vlaneseq
        %v4534 = vshrl.u32 %v4533, 7
        %v4535 = vsub.s32 2, %v4534
        %v4536 = vrot.slane %v4484, %v4535
        %v4537 = vmul.f32 %v4527, %v4532
        %v4538 = vmul.f32 %v4527, %v4536
        %v4539 = vadd.f32 %v4523, %v4537
        %v4540 = vadd.f32 %v4524, %v4538
        %4541 = vset.pattern.permute.xlu0 3
        %4542 = vperm.xlu0 %4541, %v4491
        %v4543 = vpop.permute.xlu0 %4542
        %v4545 = vlaneseq
        %v4546 = vshrl.u32 %v4545, 7
        %v4547 = vsub.s32 3, %v4546
        %v4548 = vrot.slane %v4483, %v4547
        %v4549 = vlaneseq
        %v4550 = vshrl.u32 %v4549, 7
        %v4551 = vsub.s32 3, %v4550
        %v4552 = vrot.slane %v4484, %v4551
        %v4553 = vmul.f32 %v4543, %v4548
        %v4554 = vmul.f32 %v4543, %v4552
        %v4555 = vadd.f32 %v4539, %v4553
        %v4556 = vadd.f32 %v4540, %v4554
        %4557 = vset.pattern.permute.xlu0 4
        %4558 = vperm.xlu0 %4557, %v4491
        %v4559 = vpop.permute.xlu0 %4558
        %v4561 = vlaneseq
        %v4562 = vshrl.u32 %v4561, 7
        %v4563 = vsub.s32 4, %v4562
        %v4564 = vrot.slane %v4483, %v4563
        %v4565 = vlaneseq
        %v4566 = vshrl.u32 %v4565, 7
        %v4567 = vsub.s32 4, %v4566
        %v4568 = vrot.slane %v4484, %v4567
        %v4569 = vmul.f32 %v4559, %v4564
        %v4570 = vmul.f32 %v4559, %v4568
        %v4571 = vadd.f32 %v4555, %v4569
        %v4572 = vadd.f32 %v4556, %v4570
        %4573 = vset.pattern.permute.xlu0 5
        %4574 = vperm.xlu0 %4573, %v4491
        %v4575 = vpop.permute.xlu0 %4574
        %v4577 = vlaneseq
        %v4578 = vshrl.u32 %v4577, 7
        %v4579 = vsub.s32 5, %v4578
        %v4580 = vrot.slane %v4483, %v4579
        %v4581 = vlaneseq
        %v4582 = vshrl.u32 %v4581, 7
        %v4583 = vsub.s32 5, %v4582
        %v4584 = vrot.slane %v4484, %v4583
        %v4585 = vmul.f32 %v4575, %v4580
        %v4586 = vmul.f32 %v4575, %v4584
        %v4587 = vadd.f32 %v4571, %v4585
        %v4588 = vadd.f32 %v4572, %v4586
        %4589 = vset.pattern.permute.xlu0 6
        %4590 = vperm.xlu0 %4589, %v4491
        %v4591 = vpop.permute.xlu0 %4590
        %v4593 = vlaneseq
        %v4594 = vshrl.u32 %v4593, 7
        %v4595 = vsub.s32 6, %v4594
        %v4596 = vrot.slane %v4483, %v4595
        %v4597 = vlaneseq
        %v4598 = vshrl.u32 %v4597, 7
        %v4599 = vsub.s32 6, %v4598
        %v4600 = vrot.slane %v4484, %v4599
        %v4601 = vmul.f32 %v4591, %v4596
        %v4602 = vmul.f32 %v4591, %v4600
        %v4603 = vadd.f32 %v4587, %v4601
        %v4604 = vadd.f32 %v4588, %v4602
        %4605 = vset.pattern.permute.xlu0 7
        %4606 = vperm.xlu0 %4605, %v4491
        %v4607 = vpop.permute.xlu0 %4606
        %v4609 = vlaneseq
        %v4610 = vshrl.u32 %v4609, 7
        %v4611 = vsub.s32 7, %v4610
        %v4612 = vrot.slane %v4483, %v4611
        %v4613 = vlaneseq
        %v4614 = vshrl.u32 %v4613, 7
        %v4615 = vsub.s32 7, %v4614
        %v4616 = vrot.slane %v4484, %v4615
        %v4617 = vmul.f32 %v4607, %v4612
        %v4618 = vmul.f32 %v4607, %v4616
        %v4619 = vadd.f32 %v4603, %v4617
        %v4620 = vadd.f32 %v4604, %v4618
        %4621 = vset.pattern.permute.xlu0 8
        %4622 = vperm.xlu0 %4621, %v4491
        %v4623 = vpop.permute.xlu0 %4622
        %v4625 = vlaneseq
        %v4626 = vshrl.u32 %v4625, 7
        %v4627 = vsub.s32 0, %v4626
        %v4628 = vrot.slane %v4485, %v4627
        %v4629 = vlaneseq
        %v4630 = vshrl.u32 %v4629, 7
        %v4631 = vsub.s32 0, %v4630
        %v4632 = vrot.slane %v4486, %v4631
        %v4633 = vmul.f32 %v4623, %v4628
        %v4634 = vmul.f32 %v4623, %v4632
        %v4635 = vadd.f32 %v4619, %v4633
        %v4636 = vadd.f32 %v4620, %v4634
        %4637 = vset.pattern.permute.xlu0 9
        %4638 = vperm.xlu0 %4637, %v4491
        %v4639 = vpop.permute.xlu0 %4638
        %v4641 = vlaneseq
        %v4642 = vshrl.u32 %v4641, 7
        %v4643 = vsub.s32 1, %v4642
        %v4644 = vrot.slane %v4485, %v4643
        %v4645 = vlaneseq
        %v4646 = vshrl.u32 %v4645, 7
        %v4647 = vsub.s32 1, %v4646
        %v4648 = vrot.slane %v4486, %v4647
        %v4649 = vmul.f32 %v4639, %v4644
        %v4650 = vmul.f32 %v4639, %v4648
        %v4651 = vadd.f32 %v4635, %v4649
        %v4652 = vadd.f32 %v4636, %v4650
        %4653 = vset.pattern.permute.xlu0 10
        %4654 = vperm.xlu0 %4653, %v4491
        %v4655 = vpop.permute.xlu0 %4654
        %v4657 = vlaneseq
        %v4658 = vshrl.u32 %v4657, 7
        %v4659 = vsub.s32 2, %v4658
        %v4660 = vrot.slane %v4485, %v4659
        %v4661 = vlaneseq
        %v4662 = vshrl.u32 %v4661, 7
        %v4663 = vsub.s32 2, %v4662
        %v4664 = vrot.slane %v4486, %v4663
        %v4665 = vmul.f32 %v4655, %v4660
        %v4666 = vmul.f32 %v4655, %v4664
        %v4667 = vadd.f32 %v4651, %v4665
        %v4668 = vadd.f32 %v4652, %v4666
        %4669 = vset.pattern.permute.xlu0 11
        %4670 = vperm.xlu0 %4669, %v4491
        %v4671 = vpop.permute.xlu0 %4670
        %v4673 = vlaneseq
        %v4674 = vshrl.u32 %v4673, 7
        %v4675 = vsub.s32 3, %v4674
        %v4676 = vrot.slane %v4485, %v4675
        %v4677 = vlaneseq
        %v4678 = vshrl.u32 %v4677, 7
        %v4679 = vsub.s32 3, %v4678
        %v4680 = vrot.slane %v4486, %v4679
        %v4681 = vmul.f32 %v4671, %v4676
        %v4682 = vmul.f32 %v4671, %v4680
        %v4683 = vadd.f32 %v4667, %v4681
        %v4684 = vadd.f32 %v4668, %v4682
        %4685 = vset.pattern.permute.xlu0 12
        %4686 = vperm.xlu0 %4685, %v4491
        %v4687 = vpop.permute.xlu0 %4686
        %v4689 = vlaneseq
        %v4690 = vshrl.u32 %v4689, 7
        %v4691 = vsub.s32 4, %v4690
        %v4692 = vrot.slane %v4485, %v4691
        %v4693 = vlaneseq
        %v4694 = vshrl.u32 %v4693, 7
        %v4695 = vsub.s32 4, %v4694
        %v4696 = vrot.slane %v4486, %v4695
        %v4697 = vmul.f32 %v4687, %v4692
        %v4698 = vmul.f32 %v4687, %v4696
        %v4699 = vadd.f32 %v4683, %v4697
        %v4700 = vadd.f32 %v4684, %v4698
        %4701 = vset.pattern.permute.xlu0 13
        %4702 = vperm.xlu0 %4701, %v4491
        %v4703 = vpop.permute.xlu0 %4702
        %v4705 = vlaneseq
        %v4706 = vshrl.u32 %v4705, 7
        %v4707 = vsub.s32 5, %v4706
        %v4708 = vrot.slane %v4485, %v4707
        %v4709 = vlaneseq
        %v4710 = vshrl.u32 %v4709, 7
        %v4711 = vsub.s32 5, %v4710
        %v4712 = vrot.slane %v4486, %v4711
        %v4713 = vmul.f32 %v4703, %v4708
        %v4714 = vmul.f32 %v4703, %v4712
        %v4715 = vadd.f32 %v4699, %v4713
        %v4716 = vadd.f32 %v4700, %v4714
        %4717 = vset.pattern.permute.xlu0 14
        %4718 = vperm.xlu0 %4717, %v4491
        %v4719 = vpop.permute.xlu0 %4718
        %v4721 = vlaneseq
        %v4722 = vshrl.u32 %v4721, 7
        %v4723 = vsub.s32 6, %v4722
        %v4724 = vrot.slane %v4485, %v4723
        %v4725 = vlaneseq
        %v4726 = vshrl.u32 %v4725, 7
        %v4727 = vsub.s32 6, %v4726
        %v4728 = vrot.slane %v4486, %v4727
        %v4729 = vmul.f32 %v4719, %v4724
        %v4730 = vmul.f32 %v4719, %v4728
        %v4731 = vadd.f32 %v4715, %v4729
        %v4732 = vadd.f32 %v4716, %v4730
        %4733 = vset.pattern.permute.xlu0 15
        %4734 = vperm.xlu0 %4733, %v4491
        %v4735 = vpop.permute.xlu0 %4734
        %v4737 = vlaneseq
        %v4738 = vshrl.u32 %v4737, 7
        %v4739 = vsub.s32 7, %v4738
        %v4740 = vrot.slane %v4485, %v4739
        %v4741 = vlaneseq
        %v4742 = vshrl.u32 %v4741, 7
        %v4743 = vsub.s32 7, %v4742
        %v4744 = vrot.slane %v4486, %v4743
        %v4745 = vmul.f32 %v4735, %v4740
        %v4746 = vmul.f32 %v4735, %v4744
        %v4747 = vadd.f32 %v4731, %v4745
        %v4748 = vadd.f32 %v4732, %v4746
        %4749 = vset.pattern.permute.xlu0 16
        %4750 = vperm.xlu0 %4749, %v4491
        %v4751 = vpop.permute.xlu0 %4750
        %v4753 = vlaneseq
        %v4754 = vshrl.u32 %v4753, 7
        %v4755 = vsub.s32 0, %v4754
        %v4756 = vrot.slane %v4487, %v4755
        %v4757 = vlaneseq
        %v4758 = vshrl.u32 %v4757, 7
        %v4759 = vsub.s32 0, %v4758
        %v4760 = vrot.slane %v4488, %v4759
        %v4761 = vmul.f32 %v4751, %v4756
        %v4762 = vmul.f32 %v4751, %v4760
        %v4763 = vadd.f32 %v4747, %v4761
        %v4764 = vadd.f32 %v4748, %v4762
        %4765 = vset.pattern.permute.xlu0 17
        %4766 = vperm.xlu0 %4765, %v4491
        %v4767 = vpop.permute.xlu0 %4766
        %v4769 = vlaneseq
        %v4770 = vshrl.u32 %v4769, 7
        %v4771 = vsub.s32 1, %v4770
        %v4772 = vrot.slane %v4487, %v4771
        %v4773 = vlaneseq
        %v4774 = vshrl.u32 %v4773, 7
        %v4775 = vsub.s32 1, %v4774
        %v4776 = vrot.slane %v4488, %v4775
        %v4777 = vmul.f32 %v4767, %v4772
        %v4778 = vmul.f32 %v4767, %v4776
        %v4779 = vadd.f32 %v4763, %v4777
        %v4780 = vadd.f32 %v4764, %v4778
        %4781 = vset.pattern.permute.xlu0 18
        %4782 = vperm.xlu0 %4781, %v4491
        %v4783 = vpop.permute.xlu0 %4782
        %v4785 = vlaneseq
        %v4786 = vshrl.u32 %v4785, 7
        %v4787 = vsub.s32 2, %v4786
        %v4788 = vrot.slane %v4487, %v4787
        %v4789 = vlaneseq
        %v4790 = vshrl.u32 %v4789, 7
        %v4791 = vsub.s32 2, %v4790
        %v4792 = vrot.slane %v4488, %v4791
        %v4793 = vmul.f32 %v4783, %v4788
        %v4794 = vmul.f32 %v4783, %v4792
        %v4795 = vadd.f32 %v4779, %v4793
        %v4796 = vadd.f32 %v4780, %v4794
        %4797 = vset.pattern.permute.xlu0 19
        %4798 = vperm.xlu0 %4797, %v4491
        %v4799 = vpop.permute.xlu0 %4798
        %v4801 = vlaneseq
        %v4802 = vshrl.u32 %v4801, 7
        %v4803 = vsub.s32 3, %v4802
        %v4804 = vrot.slane %v4487, %v4803
        %v4805 = vlaneseq
        %v4806 = vshrl.u32 %v4805, 7
        %v4807 = vsub.s32 3, %v4806
        %v4808 = vrot.slane %v4488, %v4807
        %v4809 = vmul.f32 %v4799, %v4804
        %v4810 = vmul.f32 %v4799, %v4808
        %v4811 = vadd.f32 %v4795, %v4809
        %v4812 = vadd.f32 %v4796, %v4810
        %4813 = vset.pattern.permute.xlu0 20
        %4814 = vperm.xlu0 %4813, %v4491
        %v4815 = vpop.permute.xlu0 %4814
        %v4817 = vlaneseq
        %v4818 = vshrl.u32 %v4817, 7
        %v4819 = vsub.s32 4, %v4818
        %v4820 = vrot.slane %v4487, %v4819
        %v4821 = vlaneseq
        %v4822 = vshrl.u32 %v4821, 7
        %v4823 = vsub.s32 4, %v4822
        %v4824 = vrot.slane %v4488, %v4823
        %v4825 = vmul.f32 %v4815, %v4820
        %v4826 = vmul.f32 %v4815, %v4824
        %v4827 = vadd.f32 %v4811, %v4825
        %v4828 = vadd.f32 %v4812, %v4826
        %4829 = vset.pattern.permute.xlu0 21
        %4830 = vperm.xlu0 %4829, %v4491
        %v4831 = vpop.permute.xlu0 %4830
        %v4833 = vlaneseq
        %v4834 = vshrl.u32 %v4833, 7
        %v4835 = vsub.s32 5, %v4834
        %v4836 = vrot.slane %v4487, %v4835
        %v4837 = vlaneseq
        %v4838 = vshrl.u32 %v4837, 7
        %v4839 = vsub.s32 5, %v4838
        %v4840 = vrot.slane %v4488, %v4839
        %v4841 = vmul.f32 %v4831, %v4836
        %v4842 = vmul.f32 %v4831, %v4840
        %v4843 = vadd.f32 %v4827, %v4841
        %v4844 = vadd.f32 %v4828, %v4842
        %4845 = vset.pattern.permute.xlu0 22
        %4846 = vperm.xlu0 %4845, %v4491
        %v4847 = vpop.permute.xlu0 %4846
        %v4849 = vlaneseq
        %v4850 = vshrl.u32 %v4849, 7
        %v4851 = vsub.s32 6, %v4850
        %v4852 = vrot.slane %v4487, %v4851
        %v4853 = vlaneseq
        %v4854 = vshrl.u32 %v4853, 7
        %v4855 = vsub.s32 6, %v4854
        %v4856 = vrot.slane %v4488, %v4855
        %v4857 = vmul.f32 %v4847, %v4852
        %v4858 = vmul.f32 %v4847, %v4856
        %v4859 = vadd.f32 %v4843, %v4857
        %v4860 = vadd.f32 %v4844, %v4858
        %4861 = vset.pattern.permute.xlu0 23
        %4862 = vperm.xlu0 %4861, %v4491
        %v4863 = vpop.permute.xlu0 %4862
        %v4865 = vlaneseq
        %v4866 = vshrl.u32 %v4865, 7
        %v4867 = vsub.s32 7, %v4866
        %v4868 = vrot.slane %v4487, %v4867
        %v4869 = vlaneseq
        %v4870 = vshrl.u32 %v4869, 7
        %v4871 = vsub.s32 7, %v4870
        %v4872 = vrot.slane %v4488, %v4871
        %v4873 = vmul.f32 %v4863, %v4868
        %v4874 = vmul.f32 %v4863, %v4872
        %v4875 = vadd.f32 %v4859, %v4873
        %v4876 = vadd.f32 %v4860, %v4874
        %4877 = vset.pattern.permute.xlu0 24
        %4878 = vperm.xlu0 %4877, %v4491
        %v4879 = vpop.permute.xlu0 %4878
        %v4881 = vlaneseq
        %v4882 = vshrl.u32 %v4881, 7
        %v4883 = vsub.s32 0, %v4882
        %v4884 = vrot.slane %v4489, %v4883
        %v4885 = vlaneseq
        %v4886 = vshrl.u32 %v4885, 7
        %v4887 = vsub.s32 0, %v4886
        %v4888 = vrot.slane %v4490, %v4887
        %v4889 = vmul.f32 %v4879, %v4884
        %v4890 = vmul.f32 %v4879, %v4888
        %v4891 = vadd.f32 %v4875, %v4889
        %v4892 = vadd.f32 %v4876, %v4890
        %4893 = vset.pattern.permute.xlu0 25
        %4894 = vperm.xlu0 %4893, %v4491
        %v4895 = vpop.permute.xlu0 %4894
        %v4897 = vlaneseq
        %v4898 = vshrl.u32 %v4897, 7
        %v4899 = vsub.s32 1, %v4898
        %v4900 = vrot.slane %v4489, %v4899
        %v4901 = vlaneseq
        %v4902 = vshrl.u32 %v4901, 7
        %v4903 = vsub.s32 1, %v4902
        %v4904 = vrot.slane %v4490, %v4903
        %v4905 = vmul.f32 %v4895, %v4900
        %v4906 = vmul.f32 %v4895, %v4904
        %v4907 = vadd.f32 %v4891, %v4905
        %v4908 = vadd.f32 %v4892, %v4906
        %4909 = vset.pattern.permute.xlu0 26
        %4910 = vperm.xlu0 %4909, %v4491
        %v4911 = vpop.permute.xlu0 %4910
        %v4913 = vlaneseq
        %v4914 = vshrl.u32 %v4913, 7
        %v4915 = vsub.s32 2, %v4914
        %v4916 = vrot.slane %v4489, %v4915
        %v4917 = vlaneseq
        %v4918 = vshrl.u32 %v4917, 7
        %v4919 = vsub.s32 2, %v4918
        %v4920 = vrot.slane %v4490, %v4919
        %v4921 = vmul.f32 %v4911, %v4916
        %v4922 = vmul.f32 %v4911, %v4920
        %v4923 = vadd.f32 %v4907, %v4921
        %v4924 = vadd.f32 %v4908, %v4922
        %4925 = vset.pattern.permute.xlu0 27
        %4926 = vperm.xlu0 %4925, %v4491
        %v4927 = vpop.permute.xlu0 %4926
        %v4929 = vlaneseq
        %v4930 = vshrl.u32 %v4929, 7
        %v4931 = vsub.s32 3, %v4930
        %v4932 = vrot.slane %v4489, %v4931
        %v4933 = vlaneseq
        %v4934 = vshrl.u32 %v4933, 7
        %v4935 = vsub.s32 3, %v4934
        %v4936 = vrot.slane %v4490, %v4935
        %v4937 = vmul.f32 %v4927, %v4932
        %v4938 = vmul.f32 %v4927, %v4936
        %v4939 = vadd.f32 %v4923, %v4937
        %v4940 = vadd.f32 %v4924, %v4938
        %4941 = vset.pattern.permute.xlu0 28
        %4942 = vperm.xlu0 %4941, %v4491
        %v4943 = vpop.permute.xlu0 %4942
        %v4945 = vlaneseq
        %v4946 = vshrl.u32 %v4945, 7
        %v4947 = vsub.s32 4, %v4946
        %v4948 = vrot.slane %v4489, %v4947
        %v4949 = vlaneseq
        %v4950 = vshrl.u32 %v4949, 7
        %v4951 = vsub.s32 4, %v4950
        %v4952 = vrot.slane %v4490, %v4951
        %v4953 = vmul.f32 %v4943, %v4948
        %v4954 = vmul.f32 %v4943, %v4952
        %v4955 = vadd.f32 %v4939, %v4953
        %v4956 = vadd.f32 %v4940, %v4954
        %4957 = vset.pattern.permute.xlu0 29
        %4958 = vperm.xlu0 %4957, %v4491
        %v4959 = vpop.permute.xlu0 %4958
        %v4961 = vlaneseq
        %v4962 = vshrl.u32 %v4961, 7
        %v4963 = vsub.s32 5, %v4962
        %v4964 = vrot.slane %v4489, %v4963
        %v4965 = vlaneseq
        %v4966 = vshrl.u32 %v4965, 7
        %v4967 = vsub.s32 5, %v4966
        %v4968 = vrot.slane %v4490, %v4967
        %v4969 = vmul.f32 %v4959, %v4964
        %v4970 = vmul.f32 %v4959, %v4968
        %v4971 = vadd.f32 %v4955, %v4969
        %v4972 = vadd.f32 %v4956, %v4970
        %4973 = vset.pattern.permute.xlu0 30
        %4974 = vperm.xlu0 %4973, %v4491
        %v4975 = vpop.permute.xlu0 %4974
        %v4977 = vlaneseq
        %v4978 = vshrl.u32 %v4977, 7
        %v4979 = vsub.s32 6, %v4978
        %v4980 = vrot.slane %v4489, %v4979
        %v4981 = vlaneseq
        %v4982 = vshrl.u32 %v4981, 7
        %v4983 = vsub.s32 6, %v4982
        %v4984 = vrot.slane %v4490, %v4983
        %v4985 = vmul.f32 %v4975, %v4980
        %v4986 = vmul.f32 %v4975, %v4984
        %v4987 = vadd.f32 %v4971, %v4985
        %v4988 = vadd.f32 %v4972, %v4986
        %4989 = vset.pattern.permute.xlu0 31
        %4990 = vperm.xlu0 %4989, %v4491
        %v4991 = vpop.permute.xlu0 %4990
        %v4993 = vlaneseq
        %v4994 = vshrl.u32 %v4993, 7
        %v4995 = vsub.s32 7, %v4994
        %v4996 = vrot.slane %v4489, %v4995
        %v4997 = vlaneseq
        %v4998 = vshrl.u32 %v4997, 7
        %v4999 = vsub.s32 7, %v4998
        %v5000 = vrot.slane %v4490, %v4999
        %v5001 = vmul.f32 %v4991, %v4996
        %v5002 = vmul.f32 %v4991, %v5000
        %v5003 = vadd.f32 %v4987, %v5001
        %v5004 = vadd.f32 %v4988, %v5002
        %v5007 = vcombine.low %v5003, %v5004
        %v5009 = vadd.f32 %v250, %v5007
        %v5010 = vld [vmem:[%s4] sm:$0xf]
        %5012 = vset.pattern.permute.xlu0 0
        %5013 = vperm.xlu0 %5012, %v5010
        %v5014 = vpop.permute.xlu0 %5013
        %v5016 = vunpack.c.l.s4 839922192
        %v5017 = vunpack.c.0.s8 %v5016
        %v5018 = vlaneseq
        %v5019 = vshrl.u32 %v5018, 7
        %v5020 = vsub.s32 %v5017, %v5019
        %v5021 = vrot.slane %v5014, %v5020
        %v5023 = vadd.f32 %v5009, %v5021
        %5024 = vst [vmem:[%s244] sm:$0xff] %v5023
        %s5025 = sand.u32 %s159, 1
        %s5026 = scalar_lea.sflag [#allocation4], %s5025
        %s5027 = sand.u32 %s159, 1
        %s5028 = smul.addr %s5027, 8
        %s5029 = scalar_lea.vmem [#allocation3], %s5028
        // Predicated region
        $region45: #{tpu_custom_call.1} parent=43 // pred_check
          %p5030 = pneg %p169
        $region46: #{tpu_custom_call.1} parent=43 // pred_check_branch
          %5032 = sbr.rel (%p5030) target = $region48
        $region47: #{tpu_custom_call.1} parent=43 // pred_region
          %s5034 = ssub.s32 128, 128
          %5035 = vsyncadd %s5026, %s5034
          %s5036 = smul.addr %s20, 2
          %s5037 = smul.addr %s5036, 64
          %s5038 = scalar_lea.hbm %s6, %s5037
          %s5040 = sshll.u32 %s5029, 4
          %s5041 = int_to_ptr.vmem [resolvable:$true] %s5040
          %5043 = dma.vmem_to_hbm [thread:$0]  %s5041, 128, %s5038, %s5026
        $region48: #{tpu_custom_call.1} parent=43 // pred_fallthru
          _
      $region44: #{tpu_custom_call.1} parent=5 // pred_fallthru
        _
      %p5044 = scmp.le.s32.totalorder 2, %s15
      // Predicated region
      $region49: #{tpu_custom_call.1} parent=5 // pred_check
        %p5045 = pneg %p5044
      $region50: #{tpu_custom_call.1} parent=5 // pred_check_branch
        %5047 = sbr.rel (%p5045) target = $region52
      $region51: #{tpu_custom_call.1} parent=5 // pred_region
        %s5048 = ssub.s32 %s15, 2
        // Predicated region
        $region53: #{tpu_custom_call.1} parent=51 // pred_check
          %p5049 = pneg %p175
        $region54: #{tpu_custom_call.1} parent=51 // pred_check_branch
          %5051 = sbr.rel (%p5049) target = $region56
        $region55: #{tpu_custom_call.1} parent=51 // pred_region
          %s5052 = sand.u32 %s160, 1
          %s5053 = scalar_lea.sflag [#allocation4], %s5052
          %s5054 = sand.u32 %s160, 1
          %s5055 = smul.addr %s5054, 8
          %s5056 = scalar_lea.vmem [#allocation3], %s5055
          %5057 = dma.done %s5053, 128
        $region56: #{tpu_custom_call.1} parent=51 // pred_fallthru
          _
      $region52: #{tpu_custom_call.1} parent=5 // pred_fallthru
        _
    $region6: #{tpu_custom_call.1} parent=1 // loop_footer
      %s19 = sadd.s32 1, %s15
    $region7: #{tpu_custom_call.1} parent=1 // loop_footer_branch
      %14 = sbr.rel target = $region3
    $region8: #{tpu_custom_call.1} parent=1 // loop_exit
      _
    %5058 = vsyncpa [#allocation4], 1
    %s5059 = scalar_lea.sflag [#allocation4], 1
    %5060 = vsyncpa %s5059, 1

</llo_original>
